<compile_context>
chip_gen: v6e
topology: v6e:2x2x1
jax: 0.10.0
libtpu: 0.0.40
codegen_flags: <defaults>
</compile_context>

<pallas_src>
import jax
import jax.numpy as jnp
import numpy as np
from jax.experimental import pallas as pl
from jax.experimental.pallas import tpu as pltpu


def _cos_denoise_kernel(xr_ref, xt_ref,
                        w1_ref, b1_ref, w23_ref, b23_ref, w4_ref, b4_ref,
                        or_ref, ot_ref, pad_ref):
    _, H, W, C = xr_ref.shape
    HW = H * W
    M = 2 * HW  # both images stacked along rows

    # --- stack rgb & ther and run a single shared conv chain -----------------
    x2 = jnp.concatenate([xr_ref[0].reshape(HW, C),
                          xt_ref[0].reshape(HW, C)], axis=0)          # (M, C)

    # conv1: 1x1 conv == one channel matmul on the MXU for both images
    t1 = jnp.dot(x2, w1_ref[...],
                 preferred_element_type=jnp.float32) + b1_ref[...]     # (M, C)

    # Zero only the halo border of the persistent scratch (interior is fully
    # overwritten each step); cheap vs. a full-scratch memset, and correct
    # under "parallel" megacore sharding since it is redone every step.
    pad_ref[:, 0:2, :, :] = jnp.zeros((2, 2, W + 4, C), jnp.float32)
    pad_ref[:, H + 2:H + 4, :, :] = jnp.zeros((2, 2, W + 4, C), jnp.float32)
    pad_ref[:, 2:2 + H, 0:2, :] = jnp.zeros((2, H, 2, C), jnp.float32)
    pad_ref[:, 2:2 + H, W + 2:W + 4, :] = jnp.zeros((2, H, 2, C), jnp.float32)
    pad_ref[:, 2:2 + H, 2:2 + W, :] = t1.reshape(2, H, W, C)

    # conv2 (3x3, dil=1, pad=1) + conv3 (3x3, dil=2, pad=2), fused per tap:
    # LHS = concat(dil1_tap, dil2_tap) -> (M, 2C), RHS = stacked (2C, C) weight.
    acc = jnp.zeros((M, C), jnp.float32) + b23_ref[...]                # b2 + b3
    for ky in range(3):
        for kx in range(3):
            p1 = pad_ref[:, 1 + ky:1 + ky + H, 1 + kx:1 + kx + W, :].reshape(M, C)
            p2 = pad_ref[:, 2 * ky:2 * ky + H, 2 * kx:2 * kx + W, :].reshape(M, C)
            lhs = jnp.concatenate([p1, p2], axis=-1)                   # (M, 2C)
            acc = acc + jnp.dot(lhs, w23_ref[ky, kx, :, :],
                                preferred_element_type=jnp.float32)

    # conv4: 1x1 conv
    y2 = jnp.dot(acc, w4_ref[...],
                 preferred_element_type=jnp.float32) + b4_ref[...]     # (M, C)
    yr = y2[:HW]
    yt = y2[HW:]

    # --- fused cosine-similarity epilogue (5 reductions + scalar algebra) ----
    # Matches: A = normalize(flat, eps=1e-12); A -= mean(A);
    #          sim = 1 - <Ar,At> / (||Ar|| * ||At|| + 1e-6)
    n = jnp.float32(HW * C)
    Sr = jnp.sum(yr, keepdims=True)                                    # (1, 1)
    St = jnp.sum(yt, keepdims=True)
    Qr = jnp.sum(yr * yr, keepdims=True)
    Qt = jnp.sum(yt * yt, keepdims=True)
    Dd = jnp.sum(yr * yt, keepdims=True)

    nr = jnp.maximum(jnp.sqrt(Qr), 1e-12)          # F.normalize eps
    nt = jnp.maximum(jnp.sqrt(Qt), 1e-12)
    sr = Sr / nr                                   # sum of normalized rgb
    st = St / nt
    dot_c = Dd / (nr * nt) - sr * st / n           # <centered r, centered t>
    var_r = jnp.maximum(Qr / (nr * nr) - sr * sr / n, 0.0)
    var_t = jnp.maximum(Qt / (nt * nt) - st * st / n, 0.0)
    sim = 1.0 - dot_c / (jnp.sqrt(var_r) * jnp.sqrt(var_t) + 1e-6)     # (1, 1)

    or_ref[0] = yr.reshape(H, W, C)
    ot_ref[0] = (yt * (1.0 + sim)).reshape(H, W, C)    # F_ther += F_ther * sim


def cos_denoise(x_rgb, x_ther, params):
    B, H, W, C = x_rgb.shape
    w1, b1, w2, b2, w3, b3, w4, b4 = params
    # Host-side weight/bias folding (done once, outside the kernel).
    w23 = jnp.concatenate([w2, w3], axis=2)     # (3, 3, 2C, C): [:C]=dil1, [C:]=dil2
    b23 = b2 + b3                               # (1, C)

    grid_spec = pltpu.PrefetchScalarGridSpec(
        num_scalar_prefetch=0,
        grid=(B,),
        in_specs=[
            pl.BlockSpec((1, H, W, C), lambda b: (b, 0, 0, 0)),      # F_rgb
            pl.BlockSpec((1, H, W, C), lambda b: (b, 0, 0, 0)),      # F_ther
            pl.BlockSpec((C, C), lambda b: (0, 0)),                  # w1
            pl.BlockSpec((1, C), lambda b: (0, 0)),                  # b1
            pl.BlockSpec((3, 3, 2 * C, C), lambda b: (0, 0, 0, 0)),  # w2||w3
            pl.BlockSpec((1, C), lambda b: (0, 0)),                  # b2+b3
            pl.BlockSpec((C, C), lambda b: (0, 0)),                  # w4
            pl.BlockSpec((1, C), lambda b: (0, 0)),                  # b4
        ],
        out_specs=[
            pl.BlockSpec((1, H, W, C), lambda b: (b, 0, 0, 0)),      # F_rgb out
            pl.BlockSpec((1, H, W, C), lambda b: (b, 0, 0, 0)),      # F_ther out
        ],
        scratch_shapes=[pltpu.VMEM((2, H + 4, W + 4, C), jnp.float32)],
    )
    return pl.pallas_call(
        _cos_denoise_kernel,
        out_shape=(jax.ShapeDtypeStruct((B, H, W, C), jnp.float32),
                   jax.ShapeDtypeStruct((B, H, W, C), jnp.float32)),
        grid_spec=grid_spec,
        # batch items are independent -> shard across TensorCores on v7x
        compiler_params=pltpu.CompilerParams(dimension_semantics=("parallel",)),
    )(x_rgb, x_ther, w1, b1, w23, b23, w4, b4)


def reference(xr, xt, params):
    """Pure-JAX (XLA) reference with the same NHWC layout / HWIO weights."""
    w1, b1, w2, b2, w3, b3, w4, b4 = params

    def c1(x, w, b):
        return jnp.einsum('bhwc,cd->bhwd', x, w) + b.reshape(1, 1, 1, -1)

    def c3(x, w, b, d):
        y = jax.lax.conv_general_dilated(
            x, w, window_strides=(1, 1),
            padding=((d, d), (d, d)), rhs_dilation=(d, d),
            dimension_numbers=('NHWC', 'HWIO', 'NHWC'))
        return y + b.reshape(1, 1, 1, -1)

    def chain(x):
        t1 = c1(x, w1, b1)
        return c1(c3(t1, w2, b2, 1) + c3(t1, w3, b3, 2), w4, b4)

    yr, yt = chain(xr), chain(xt)
    B = xr.shape[0]
    fr, ft = yr.reshape(B, -1), yt.reshape(B, -1)
    ar = fr / jnp.maximum(jnp.linalg.norm(fr, axis=1, keepdims=True), 1e-12)
    at = ft / jnp.maximum(jnp.linalg.norm(ft, axis=1, keepdims=True), 1e-12)
    arc = ar - ar.mean(axis=1, keepdims=True)
    atc = at - at.mean(axis=1, keepdims=True)
    sim = 1.0 - (arc * atc).sum(axis=1) / (
        jnp.linalg.norm(arc, axis=1) * jnp.linalg.norm(atc, axis=1) + 1e-6)
    return yr, yt * (1.0 + sim)[:, None, None, None]


if __name__ == "__main__":
    B, H, W, C = 2, 8, 8, 32   # small shapes; default module uses C=64
    key = jax.random.PRNGKey(0)
    ks = jax.random.split(key, 10)
    x_rgb = jax.random.normal(ks[0], (B, H, W, C), jnp.float32)
    x_ther = jax.random.normal(ks[1], (B, H, W, C), jnp.float32)
    # deterministic synthetic parameters (HWIO / (in, out) layouts)
    w1 = jax.random.normal(ks[2], (C, C), jnp.float32) * 0.1
    b1 = jax.random.normal(ks[3], (1, C), jnp.float32) * 0.1
    w2 = jax.random.normal(ks[4], (3, 3, C, C), jnp.float32) * 0.1
    b2 = jax.random.normal(ks[5], (1, C), jnp.float32) * 0.1
    w3 = jax.random.normal(ks[6], (3, 3, C, C), jnp.float32) * 0.1
    b3 = jax.random.normal(ks[7], (1, C), jnp.float32) * 0.1
    w4 = jax.random.normal(ks[8], (C, C), jnp.float32) * 0.1
    b4 = jax.random.normal(ks[9], (1, C), jnp.float32) * 0.1
    params = (w1, b1, w2, b2, w3, b3, w4, b4)

    out_rgb, out_ther = jax.block_until_ready(cos_denoise(x_rgb, x_ther, params))

    ref_rgb, ref_ther = reference(x_rgb, x_ther, params)
    assert np.allclose(np.asarray(out_rgb), np.asarray(ref_rgb), atol=1e-4, rtol=1e-4)
    assert np.allclose(np.asarray(out_ther), np.asarray(ref_ther), atol=1e-4, rtol=1e-4)
    print("KERNEL_OK")
</pallas_src>

<mosaic_0001>
module attributes {stable_mosaic.version = 11 : i64} {
  func.func @_cos_denoise_kernel(%arg0: i32, %arg1: memref<1x8x8x32xf32, #tpu.memory_space<vmem>>, %arg2: memref<1x8x8x32xf32, #tpu.memory_space<vmem>>, %arg3: memref<32x32xf32, #tpu.memory_space<vmem>>, %arg4: memref<1x32xf32, #tpu.memory_space<vmem>>, %arg5: memref<3x3x64x32xf32, #tpu.memory_space<vmem>>, %arg6: memref<1x32xf32, #tpu.memory_space<vmem>>, %arg7: memref<32x32xf32, #tpu.memory_space<vmem>>, %arg8: memref<1x32xf32, #tpu.memory_space<vmem>>, %arg9: memref<1x8x8x32xf32, #tpu.memory_space<vmem>>, %arg10: memref<1x8x8x32xf32, #tpu.memory_space<vmem>>, %arg11: memref<2x12x12x32xf32, #tpu.memory_space<vmem>>) attributes {dimension_semantics = [#tpu.dimension_semantics<parallel>], iteration_bounds = array<i64: 2>, scalar_prefetch = 0 : i64, scratch_operands = 1 : i64, tpu.core_type = #tpu.core_type<tc>, window_params = [{transform_indices = @transform_0, window_bounds = array<i64: 1, 8, 8, 32>}, {transform_indices = @transform_1, window_bounds = array<i64: 1, 8, 8, 32>}, {pipeline_mode = #tpu.pipeline_mode<synchronous>, transform_indices = @transform_2, window_bounds = array<i64: 32, 32>}, {pipeline_mode = #tpu.pipeline_mode<synchronous>, transform_indices = @transform_3, window_bounds = array<i64: 1, 32>}, {pipeline_mode = #tpu.pipeline_mode<synchronous>, transform_indices = @transform_4, window_bounds = array<i64: 3, 3, 64, 32>}, {pipeline_mode = #tpu.pipeline_mode<synchronous>, transform_indices = @transform_5, window_bounds = array<i64: 1, 32>}, {pipeline_mode = #tpu.pipeline_mode<synchronous>, transform_indices = @transform_6, window_bounds = array<i64: 32, 32>}, {pipeline_mode = #tpu.pipeline_mode<synchronous>, transform_indices = @transform_7, window_bounds = array<i64: 1, 32>}, {transform_indices = @transform_8, window_bounds = array<i64: 1, 8, 8, 32>}, {transform_indices = @transform_9, window_bounds = array<i64: 1, 8, 8, 32>}]} {
    %c0 = arith.constant 0 : index
    %c0_0 = arith.constant 0 : index
    %c0_1 = arith.constant 0 : index
    %c0_2 = arith.constant 0 : index
    %0 = vector.load %arg1[%c0, %c0_0, %c0_1, %c0_2] : memref<1x8x8x32xf32, #tpu.memory_space<vmem>>, vector<1x8x8x32xf32>
    %1 = vector.shape_cast %0 : vector<1x8x8x32xf32> to vector<8x8x32xf32>
    %2 = vector.shape_cast %1 : vector<8x8x32xf32> to vector<64x32xf32>
    %c0_3 = arith.constant 0 : index
    %c0_4 = arith.constant 0 : index
    %c0_5 = arith.constant 0 : index
    %c0_6 = arith.constant 0 : index
    %3 = vector.load %arg2[%c0_3, %c0_4, %c0_5, %c0_6] : memref<1x8x8x32xf32, #tpu.memory_space<vmem>>, vector<1x8x8x32xf32>
    %4 = vector.shape_cast %3 : vector<1x8x8x32xf32> to vector<8x8x32xf32>
    %5 = vector.shape_cast %4 : vector<8x8x32xf32> to vector<64x32xf32>
    %6 = tpu.concatenate %2, %5 in 0 : vector<64x32xf32>, vector<64x32xf32> -> vector<128x32xf32>
    %c0_7 = arith.constant 0 : index
    %c0_8 = arith.constant 0 : index
    %7 = vector.load %arg3[%c0_7, %c0_8] : memref<32x32xf32, #tpu.memory_space<vmem>>, vector<32x32xf32>
    %cst = arith.constant dense<0.000000e+00> : vector<128x32xf32>
    %8 = tpu.matmul %6, %7, %cst {dimension_numbers = #tpu.dot_dimension_numbers<[1], [0], [0], [1], [0, 0, 1, 1], [], []>} : vector<128x32xf32>, vector<32x32xf32>, vector<128x32xf32> -> vector<128x32xf32>
    %c0_9 = arith.constant 0 : index
    %c0_10 = arith.constant 0 : index
    %9 = vector.load %arg4[%c0_9, %c0_10] : memref<1x32xf32, #tpu.memory_space<vmem>>, vector<1x32xf32>
    %10 = vector.broadcast %9 : vector<1x32xf32> to vector<128x32xf32>
    %11 = arith.addf %8, %10 : vector<128x32xf32>
    %cst_11 = arith.constant 0.000000e+00 : f32
    %12 = vector.broadcast %cst_11 : f32 to vector<2x2x12x32xf32>
    %c0_12 = arith.constant 0 : index
    %c0_13 = arith.constant 0 : index
    %c0_14 = arith.constant 0 : index
    %c0_15 = arith.constant 0 : index
    %13 = vector.load %arg11[%c0_12, %c0_13, %c0_14, %c0_15] : memref<2x12x12x32xf32, #tpu.memory_space<vmem>>, vector<2x2x12x32xf32>
    tpu.vector_store %arg11[%c0_12, %c0_13, %c0_14, %c0_15], %12 {strides = array<i32>} : memref<2x12x12x32xf32, #tpu.memory_space<vmem>>, vector<2x2x12x32xf32>,
    %cst_16 = arith.constant 0.000000e+00 : f32
    %14 = vector.broadcast %cst_16 : f32 to vector<2x2x12x32xf32>
    %c0_17 = arith.constant 0 : index
    %c10 = arith.constant 10 : index
    %c0_18 = arith.constant 0 : index
    %c0_19 = arith.constant 0 : index
    %15 = vector.load %arg11[%c0_17, %c10, %c0_18, %c0_19] : memref<2x12x12x32xf32, #tpu.memory_space<vmem>>, vector<2x2x12x32xf32>
    tpu.vector_store %arg11[%c0_17, %c10, %c0_18, %c0_19], %14 {strides = array<i32>} : memref<2x12x12x32xf32, #tpu.memory_space<vmem>>, vector<2x2x12x32xf32>,
    %cst_20 = arith.constant 0.000000e+00 : f32
    %16 = vector.broadcast %cst_20 : f32 to vector<2x8x2x32xf32>
    %c0_21 = arith.constant 0 : index
    %c2 = arith.constant 2 : index
    %c0_22 = arith.constant 0 : index
    %c0_23 = arith.constant 0 : index
    %17 = vector.load %arg11[%c0_21, %c2, %c0_22, %c0_23] : memref<2x12x12x32xf32, #tpu.memory_space<vmem>>, vector<2x8x2x32xf32>
    tpu.vector_store %arg11[%c0_21, %c2, %c0_22, %c0_23], %16 {strides = array<i32>} : memref<2x12x12x32xf32, #tpu.memory_space<vmem>>, vector<2x8x2x32xf32>,
    %cst_24 = arith.constant 0.000000e+00 : f32
    %18 = vector.broadcast %cst_24 : f32 to vector<2x8x2x32xf32>
    %c0_25 = arith.constant 0 : index
    %c2_26 = arith.constant 2 : index
    %c10_27 = arith.constant 10 : index
    %c0_28 = arith.constant 0 : index
    %19 = vector.load %arg11[%c0_25, %c2_26, %c10_27, %c0_28] : memref<2x12x12x32xf32, #tpu.memory_space<vmem>>, vector<2x8x2x32xf32>
    tpu.vector_store %arg11[%c0_25, %c2_26, %c10_27, %c0_28], %18 {strides = array<i32>} : memref<2x12x12x32xf32, #tpu.memory_space<vmem>>, vector<2x8x2x32xf32>,
    %20 = vector.shape_cast %11 : vector<128x32xf32> to vector<2x8x8x32xf32>
    %c0_29 = arith.constant 0 : index
    %c2_30 = arith.constant 2 : index
    %c2_31 = arith.constant 2 : index
    %c0_32 = arith.constant 0 : index
    %21 = vector.load %arg11[%c0_29, %c2_30, %c2_31, %c0_32] : memref<2x12x12x32xf32, #tpu.memory_space<vmem>>, vector<2x8x8x32xf32>
    tpu.vector_store %arg11[%c0_29, %c2_30, %c2_31, %c0_32], %20 {strides = array<i32>} : memref<2x12x12x32xf32, #tpu.memory_space<vmem>>, vector<2x8x8x32xf32>,
    %cst_33 = arith.constant 0.000000e+00 : f32
    %22 = vector.broadcast %cst_33 : f32 to vector<128x32xf32>
    %c0_34 = arith.constant 0 : index
    %c0_35 = arith.constant 0 : index
    %23 = vector.load %arg6[%c0_34, %c0_35] : memref<1x32xf32, #tpu.memory_space<vmem>>, vector<1x32xf32>
    %24 = vector.broadcast %23 : vector<1x32xf32> to vector<128x32xf32>
    %25 = arith.addf %22, %24 : vector<128x32xf32>
    %c0_36 = arith.constant 0 : index
    %c1 = arith.constant 1 : index
    %c1_37 = arith.constant 1 : index
    %c0_38 = arith.constant 0 : index
    %26 = vector.load %arg11[%c0_36, %c1, %c1_37, %c0_38] : memref<2x12x12x32xf32, #tpu.memory_space<vmem>>, vector<2x8x8x32xf32>
    %27 = vector.shape_cast %26 : vector<2x8x8x32xf32> to vector<128x32xf32>
    %c0_39 = arith.constant 0 : index
    %c0_40 = arith.constant 0 : index
    %c0_41 = arith.constant 0 : index
    %c0_42 = arith.constant 0 : index
    %28 = vector.load %arg11[%c0_39, %c0_40, %c0_41, %c0_42] : memref<2x12x12x32xf32, #tpu.memory_space<vmem>>, vector<2x8x8x32xf32>
    %29 = vector.shape_cast %28 : vector<2x8x8x32xf32> to vector<128x32xf32>
    %30 = tpu.concatenate %27, %29 in 1 : vector<128x32xf32>, vector<128x32xf32> -> vector<128x64xf32>
    %c0_43 = arith.constant 0 : index
    %c0_44 = arith.constant 0 : index
    %c0_45 = arith.constant 0 : index
    %c0_46 = arith.constant 0 : index
    %31 = vector.load %arg5[%c0_43, %c0_44, %c0_45, %c0_46] : memref<3x3x64x32xf32, #tpu.memory_space<vmem>>, vector<1x1x64x32xf32>
    %32 = vector.shape_cast %31 : vector<1x1x64x32xf32> to vector<64x32xf32>
    %cst_47 = arith.constant dense<0.000000e+00> : vector<128x32xf32>
    %33 = tpu.matmul %30, %32, %cst_47 {dimension_numbers = #tpu.dot_dimension_numbers<[1], [0], [0], [1], [0, 0, 1, 1], [], []>} : vector<128x64xf32>, vector<64x32xf32>, vector<128x32xf32> -> vector<128x32xf32>
    %34 = arith.addf %25, %33 : vector<128x32xf32>
    %c0_48 = arith.constant 0 : index
    %c1_49 = arith.constant 1 : index
    %c2_50 = arith.constant 2 : index
    %c0_51 = arith.constant 0 : index
    %35 = vector.load %arg11[%c0_48, %c1_49, %c2_50, %c0_51] : memref<2x12x12x32xf32, #tpu.memory_space<vmem>>, vector<2x8x8x32xf32>
    %36 = vector.shape_cast %35 : vector<2x8x8x32xf32> to vector<128x32xf32>
    %c0_52 = arith.constant 0 : index
    %c0_53 = arith.constant 0 : index
    %c2_54 = arith.constant 2 : index
    %c0_55 = arith.constant 0 : index
    %37 = vector.load %arg11[%c0_52, %c0_53, %c2_54, %c0_55] : memref<2x12x12x32xf32, #tpu.memory_space<vmem>>, vector<2x8x8x32xf32>
    %38 = vector.shape_cast %37 : vector<2x8x8x32xf32> to vector<128x32xf32>
    %39 = tpu.concatenate %36, %38 in 1 : vector<128x32xf32>, vector<128x32xf32> -> vector<128x64xf32>
    %c0_56 = arith.constant 0 : index
    %c1_57 = arith.constant 1 : index
    %c0_58 = arith.constant 0 : index
    %c0_59 = arith.constant 0 : index
    %40 = vector.load %arg5[%c0_56, %c1_57, %c0_58, %c0_59] : memref<3x3x64x32xf32, #tpu.memory_space<vmem>>, vector<1x1x64x32xf32>
    %41 = vector.shape_cast %40 : vector<1x1x64x32xf32> to vector<64x32xf32>
    %cst_60 = arith.constant dense<0.000000e+00> : vector<128x32xf32>
    %42 = tpu.matmul %39, %41, %cst_60 {dimension_numbers = #tpu.dot_dimension_numbers<[1], [0], [0], [1], [0, 0, 1, 1], [], []>} : vector<128x64xf32>, vector<64x32xf32>, vector<128x32xf32> -> vector<128x32xf32>
    %43 = arith.addf %34, %42 : vector<128x32xf32>
    %c0_61 = arith.constant 0 : index
    %c1_62 = arith.constant 1 : index
    %c3 = arith.constant 3 : index
    %c0_63 = arith.constant 0 : index
    %44 = vector.load %arg11[%c0_61, %c1_62, %c3, %c0_63] : memref<2x12x12x32xf32, #tpu.memory_space<vmem>>, vector<2x8x8x32xf32>
    %45 = vector.shape_cast %44 : vector<2x8x8x32xf32> to vector<128x32xf32>
    %c0_64 = arith.constant 0 : index
    %c0_65 = arith.constant 0 : index
    %c4 = arith.constant 4 : index
    %c0_66 = arith.constant 0 : index
    %46 = vector.load %arg11[%c0_64, %c0_65, %c4, %c0_66] : memref<2x12x12x32xf32, #tpu.memory_space<vmem>>, vector<2x8x8x32xf32>
    %47 = vector.shape_cast %46 : vector<2x8x8x32xf32> to vector<128x32xf32>
    %48 = tpu.concatenate %45, %47 in 1 : vector<128x32xf32>, vector<128x32xf32> -> vector<128x64xf32>
    %c0_67 = arith.constant 0 : index
    %c2_68 = arith.constant 2 : index
    %c0_69 = arith.constant 0 : index
    %c0_70 = arith.constant 0 : index
    %49 = vector.load %arg5[%c0_67, %c2_68, %c0_69, %c0_70] : memref<3x3x64x32xf32, #tpu.memory_space<vmem>>, vector<1x1x64x32xf32>
    %50 = vector.shape_cast %49 : vector<1x1x64x32xf32> to vector<64x32xf32>
    %cst_71 = arith.constant dense<0.000000e+00> : vector<128x32xf32>
    %51 = tpu.matmul %48, %50, %cst_71 {dimension_numbers = #tpu.dot_dimension_numbers<[1], [0], [0], [1], [0, 0, 1, 1], [], []>} : vector<128x64xf32>, vector<64x32xf32>, vector<128x32xf32> -> vector<128x32xf32>
    %52 = arith.addf %43, %51 : vector<128x32xf32>
    %c0_72 = arith.constant 0 : index
    %c2_73 = arith.constant 2 : index
    %c1_74 = arith.constant 1 : index
    %c0_75 = arith.constant 0 : index
    %53 = vector.load %arg11[%c0_72, %c2_73, %c1_74, %c0_75] : memref<2x12x12x32xf32, #tpu.memory_space<vmem>>, vector<2x8x8x32xf32>
    %54 = vector.shape_cast %53 : vector<2x8x8x32xf32> to vector<128x32xf32>
    %c0_76 = arith.constant 0 : index
    %c2_77 = arith.constant 2 : index
    %c0_78 = arith.constant 0 : index
    %c0_79 = arith.constant 0 : index
    %55 = vector.load %arg11[%c0_76, %c2_77, %c0_78, %c0_79] : memref<2x12x12x32xf32, #tpu.memory_space<vmem>>, vector<2x8x8x32xf32>
    %56 = vector.shape_cast %55 : vector<2x8x8x32xf32> to vector<128x32xf32>
    %57 = tpu.concatenate %54, %56 in 1 : vector<128x32xf32>, vector<128x32xf32> -> vector<128x64xf32>
    %c1_80 = arith.constant 1 : index
    %c0_81 = arith.constant 0 : index
    %c0_82 = arith.constant 0 : index
    %c0_83 = arith.constant 0 : index
    %58 = vector.load %arg5[%c1_80, %c0_81, %c0_82, %c0_83] : memref<3x3x64x32xf32, #tpu.memory_space<vmem>>, vector<1x1x64x32xf32>
    %59 = vector.shape_cast %58 : vector<1x1x64x32xf32> to vector<64x32xf32>
    %cst_84 = arith.constant dense<0.000000e+00> : vector<128x32xf32>
    %60 = tpu.matmul %57, %59, %cst_84 {dimension_numbers = #tpu.dot_dimension_numbers<[1], [0], [0], [1], [0, 0, 1, 1], [], []>} : vector<128x64xf32>, vector<64x32xf32>, vector<128x32xf32> -> vector<128x32xf32>
    %61 = arith.addf %52, %60 : vector<128x32xf32>
    %c0_85 = arith.constant 0 : index
    %c2_86 = arith.constant 2 : index
    %c2_87 = arith.constant 2 : index
    %c0_88 = arith.constant 0 : index
    %62 = vector.load %arg11[%c0_85, %c2_86, %c2_87, %c0_88] : memref<2x12x12x32xf32, #tpu.memory_space<vmem>>, vector<2x8x8x32xf32>
    %63 = vector.shape_cast %62 : vector<2x8x8x32xf32> to vector<128x32xf32>
    %c0_89 = arith.constant 0 : index
    %c2_90 = arith.constant 2 : index
    %c2_91 = arith.constant 2 : index
    %c0_92 = arith.constant 0 : index
    %64 = vector.load %arg11[%c0_89, %c2_90, %c2_91, %c0_92] : memref<2x12x12x32xf32, #tpu.memory_space<vmem>>, vector<2x8x8x32xf32>
    %65 = vector.shape_cast %64 : vector<2x8x8x32xf32> to vector<128x32xf32>
    %66 = tpu.concatenate %63, %65 in 1 : vector<128x32xf32>, vector<128x32xf32> -> vector<128x64xf32>
    %c1_93 = arith.constant 1 : index
    %c1_94 = arith.constant 1 : index
    %c0_95 = arith.constant 0 : index
    %c0_96 = arith.constant 0 : index
    %67 = vector.load %arg5[%c1_93, %c1_94, %c0_95, %c0_96] : memref<3x3x64x32xf32, #tpu.memory_space<vmem>>, vector<1x1x64x32xf32>
    %68 = vector.shape_cast %67 : vector<1x1x64x32xf32> to vector<64x32xf32>
    %cst_97 = arith.constant dense<0.000000e+00> : vector<128x32xf32>
    %69 = tpu.matmul %66, %68, %cst_97 {dimension_numbers = #tpu.dot_dimension_numbers<[1], [0], [0], [1], [0, 0, 1, 1], [], []>} : vector<128x64xf32>, vector<64x32xf32>, vector<128x32xf32> -> vector<128x32xf32>
    %70 = arith.addf %61, %69 : vector<128x32xf32>
    %c0_98 = arith.constant 0 : index
    %c2_99 = arith.constant 2 : index
    %c3_100 = arith.constant 3 : index
    %c0_101 = arith.constant 0 : index
    %71 = vector.load %arg11[%c0_98, %c2_99, %c3_100, %c0_101] : memref<2x12x12x32xf32, #tpu.memory_space<vmem>>, vector<2x8x8x32xf32>
    %72 = vector.shape_cast %71 : vector<2x8x8x32xf32> to vector<128x32xf32>
    %c0_102 = arith.constant 0 : index
    %c2_103 = arith.constant 2 : index
    %c4_104 = arith.constant 4 : index
    %c0_105 = arith.constant 0 : index
    %73 = vector.load %arg11[%c0_102, %c2_103, %c4_104, %c0_105] : memref<2x12x12x32xf32, #tpu.memory_space<vmem>>, vector<2x8x8x32xf32>
    %74 = vector.shape_cast %73 : vector<2x8x8x32xf32> to vector<128x32xf32>
    %75 = tpu.concatenate %72, %74 in 1 : vector<128x32xf32>, vector<128x32xf32> -> vector<128x64xf32>
    %c1_106 = arith.constant 1 : index
    %c2_107 = arith.constant 2 : index
    %c0_108 = arith.constant 0 : index
    %c0_109 = arith.constant 0 : index
    %76 = vector.load %arg5[%c1_106, %c2_107, %c0_108, %c0_109] : memref<3x3x64x32xf32, #tpu.memory_space<vmem>>, vector<1x1x64x32xf32>
    %77 = vector.shape_cast %76 : vector<1x1x64x32xf32> to vector<64x32xf32>
    %cst_110 = arith.constant dense<0.000000e+00> : vector<128x32xf32>
    %78 = tpu.matmul %75, %77, %cst_110 {dimension_numbers = #tpu.dot_dimension_numbers<[1], [0], [0], [1], [0, 0, 1, 1], [], []>} : vector<128x64xf32>, vector<64x32xf32>, vector<128x32xf32> -> vector<128x32xf32>
    %79 = arith.addf %70, %78 : vector<128x32xf32>
    %c0_111 = arith.constant 0 : index
    %c3_112 = arith.constant 3 : index
    %c1_113 = arith.constant 1 : index
    %c0_114 = arith.constant 0 : index
    %80 = vector.load %arg11[%c0_111, %c3_112, %c1_113, %c0_114] : memref<2x12x12x32xf32, #tpu.memory_space<vmem>>, vector<2x8x8x32xf32>
    %81 = vector.shape_cast %80 : vector<2x8x8x32xf32> to vector<128x32xf32>
    %c0_115 = arith.constant 0 : index
    %c4_116 = arith.constant 4 : index
    %c0_117 = arith.constant 0 : index
    %c0_118 = arith.constant 0 : index
    %82 = vector.load %arg11[%c0_115, %c4_116, %c0_117, %c0_118] : memref<2x12x12x32xf32, #tpu.memory_space<vmem>>, vector<2x8x8x32xf32>
    %83 = vector.shape_cast %82 : vector<2x8x8x32xf32> to vector<128x32xf32>
    %84 = tpu.concatenate %81, %83 in 1 : vector<128x32xf32>, vector<128x32xf32> -> vector<128x64xf32>
    %c2_119 = arith.constant 2 : index
    %c0_120 = arith.constant 0 : index
    %c0_121 = arith.constant 0 : index
    %c0_122 = arith.constant 0 : index
    %85 = vector.load %arg5[%c2_119, %c0_120, %c0_121, %c0_122] : memref<3x3x64x32xf32, #tpu.memory_space<vmem>>, vector<1x1x64x32xf32>
    %86 = vector.shape_cast %85 : vector<1x1x64x32xf32> to vector<64x32xf32>
    %cst_123 = arith.constant dense<0.000000e+00> : vector<128x32xf32>
    %87 = tpu.matmul %84, %86, %cst_123 {dimension_numbers = #tpu.dot_dimension_numbers<[1], [0], [0], [1], [0, 0, 1, 1], [], []>} : vector<128x64xf32>, vector<64x32xf32>, vector<128x32xf32> -> vector<128x32xf32>
    %88 = arith.addf %79, %87 : vector<128x32xf32>
    %c0_124 = arith.constant 0 : index
    %c3_125 = arith.constant 3 : index
    %c2_126 = arith.constant 2 : index
    %c0_127 = arith.constant 0 : index
    %89 = vector.load %arg11[%c0_124, %c3_125, %c2_126, %c0_127] : memref<2x12x12x32xf32, #tpu.memory_space<vmem>>, vector<2x8x8x32xf32>
    %90 = vector.shape_cast %89 : vector<2x8x8x32xf32> to vector<128x32xf32>
    %c0_128 = arith.constant 0 : index
    %c4_129 = arith.constant 4 : index
    %c2_130 = arith.constant 2 : index
    %c0_131 = arith.constant 0 : index
    %91 = vector.load %arg11[%c0_128, %c4_129, %c2_130, %c0_131] : memref<2x12x12x32xf32, #tpu.memory_space<vmem>>, vector<2x8x8x32xf32>
    %92 = vector.shape_cast %91 : vector<2x8x8x32xf32> to vector<128x32xf32>
    %93 = tpu.concatenate %90, %92 in 1 : vector<128x32xf32>, vector<128x32xf32> -> vector<128x64xf32>
    %c2_132 = arith.constant 2 : index
    %c1_133 = arith.constant 1 : index
    %c0_134 = arith.constant 0 : index
    %c0_135 = arith.constant 0 : index
    %94 = vector.load %arg5[%c2_132, %c1_133, %c0_134, %c0_135] : memref<3x3x64x32xf32, #tpu.memory_space<vmem>>, vector<1x1x64x32xf32>
    %95 = vector.shape_cast %94 : vector<1x1x64x32xf32> to vector<64x32xf32>
    %cst_136 = arith.constant dense<0.000000e+00> : vector<128x32xf32>
    %96 = tpu.matmul %93, %95, %cst_136 {dimension_numbers = #tpu.dot_dimension_numbers<[1], [0], [0], [1], [0, 0, 1, 1], [], []>} : vector<128x64xf32>, vector<64x32xf32>, vector<128x32xf32> -> vector<128x32xf32>
    %97 = arith.addf %88, %96 : vector<128x32xf32>
    %c0_137 = arith.constant 0 : index
    %c3_138 = arith.constant 3 : index
    %c3_139 = arith.constant 3 : index
    %c0_140 = arith.constant 0 : index
    %98 = vector.load %arg11[%c0_137, %c3_138, %c3_139, %c0_140] : memref<2x12x12x32xf32, #tpu.memory_space<vmem>>, vector<2x8x8x32xf32>
    %99 = vector.shape_cast %98 : vector<2x8x8x32xf32> to vector<128x32xf32>
    %c0_141 = arith.constant 0 : index
    %c4_142 = arith.constant 4 : index
    %c4_143 = arith.constant 4 : index
    %c0_144 = arith.constant 0 : index
    %100 = vector.load %arg11[%c0_141, %c4_142, %c4_143, %c0_144] : memref<2x12x12x32xf32, #tpu.memory_space<vmem>>, vector<2x8x8x32xf32>
    %101 = vector.shape_cast %100 : vector<2x8x8x32xf32> to vector<128x32xf32>
    %102 = tpu.concatenate %99, %101 in 1 : vector<128x32xf32>, vector<128x32xf32> -> vector<128x64xf32>
    %c2_145 = arith.constant 2 : index
    %c2_146 = arith.constant 2 : index
    %c0_147 = arith.constant 0 : index
    %c0_148 = arith.constant 0 : index
    %103 = vector.load %arg5[%c2_145, %c2_146, %c0_147, %c0_148] : memref<3x3x64x32xf32, #tpu.memory_space<vmem>>, vector<1x1x64x32xf32>
    %104 = vector.shape_cast %103 : vector<1x1x64x32xf32> to vector<64x32xf32>
    %cst_149 = arith.constant dense<0.000000e+00> : vector<128x32xf32>
    %105 = tpu.matmul %102, %104, %cst_149 {dimension_numbers = #tpu.dot_dimension_numbers<[1], [0], [0], [1], [0, 0, 1, 1], [], []>} : vector<128x64xf32>, vector<64x32xf32>, vector<128x32xf32> -> vector<128x32xf32>
    %106 = arith.addf %97, %105 : vector<128x32xf32>
    %c0_150 = arith.constant 0 : index
    %c0_151 = arith.constant 0 : index
    %107 = vector.load %arg7[%c0_150, %c0_151] : memref<32x32xf32, #tpu.memory_space<vmem>>, vector<32x32xf32>
    %cst_152 = arith.constant dense<0.000000e+00> : vector<128x32xf32>
    %108 = tpu.matmul %106, %107, %cst_152 {dimension_numbers = #tpu.dot_dimension_numbers<[1], [0], [0], [1], [0, 0, 1, 1], [], []>} : vector<128x32xf32>, vector<32x32xf32>, vector<128x32xf32> -> vector<128x32xf32>
    %c0_153 = arith.constant 0 : index
    %c0_154 = arith.constant 0 : index
    %109 = vector.load %arg8[%c0_153, %c0_154] : memref<1x32xf32, #tpu.memory_space<vmem>>, vector<1x32xf32>
    %110 = vector.broadcast %109 : vector<1x32xf32> to vector<128x32xf32>
    %111 = arith.addf %108, %110 : vector<128x32xf32>
    %112 = vector.extract_strided_slice %111 {offsets = [0, 0], sizes = [64, 32], strides = [1, 1]} : vector<128x32xf32> to vector<64x32xf32>
    %113 = vector.extract_strided_slice %111 {offsets = [64, 0], sizes = [64, 32], strides = [1, 1]} : vector<128x32xf32> to vector<64x32xf32>
    %114 = vector.shape_cast %112 : vector<64x32xf32> to vector<1x64x32xf32>
    %cst_155 = arith.constant dense<0.000000e+00> : vector<1xf32>
    %115 = vector.multi_reduction <add>, %114, %cst_155 [1, 2] : vector<1x64x32xf32> to vector<1xf32>
    %116 = vector.shape_cast %115 : vector<1xf32> to vector<1x1x1xf32>
    %117 = vector.extract %116[0, 0, 0] : f32 from vector<1x1x1xf32>
    %118 = vector.broadcast %117 : f32 to vector<1x1xf32>
    %119 = vector.shape_cast %113 : vector<64x32xf32> to vector<1x64x32xf32>
    %cst_156 = arith.constant dense<0.000000e+00> : vector<1xf32>
    %120 = vector.multi_reduction <add>, %119, %cst_156 [1, 2] : vector<1x64x32xf32> to vector<1xf32>
    %121 = vector.shape_cast %120 : vector<1xf32> to vector<1x1x1xf32>
    %122 = vector.extract %121[0, 0, 0] : f32 from vector<1x1x1xf32>
    %123 = vector.broadcast %122 : f32 to vector<1x1xf32>
    %124 = arith.mulf %112, %112 : vector<64x32xf32>
    %125 = vector.shape_cast %124 : vector<64x32xf32> to vector<1x64x32xf32>
    %cst_157 = arith.constant dense<0.000000e+00> : vector<1xf32>
    %126 = vector.multi_reduction <add>, %125, %cst_157 [1, 2] : vector<1x64x32xf32> to vector<1xf32>
    %127 = vector.shape_cast %126 : vector<1xf32> to vector<1x1x1xf32>
    %128 = vector.extract %127[0, 0, 0] : f32 from vector<1x1x1xf32>
    %129 = vector.broadcast %128 : f32 to vector<1x1xf32>
    %130 = arith.mulf %113, %113 : vector<64x32xf32>
    %131 = vector.shape_cast %130 : vector<64x32xf32> to vector<1x64x32xf32>
    %cst_158 = arith.constant dense<0.000000e+00> : vector<1xf32>
    %132 = vector.multi_reduction <add>, %131, %cst_158 [1, 2] : vector<1x64x32xf32> to vector<1xf32>
    %133 = vector.shape_cast %132 : vector<1xf32> to vector<1x1x1xf32>
    %134 = vector.extract %133[0, 0, 0] : f32 from vector<1x1x1xf32>
    %135 = vector.broadcast %134 : f32 to vector<1x1xf32>
    %136 = arith.mulf %112, %113 : vector<64x32xf32>
    %137 = vector.shape_cast %136 : vector<64x32xf32> to vector<1x64x32xf32>
    %cst_159 = arith.constant dense<0.000000e+00> : vector<1xf32>
    %138 = vector.multi_reduction <add>, %137, %cst_159 [1, 2] : vector<1x64x32xf32> to vector<1xf32>
    %139 = vector.shape_cast %138 : vector<1xf32> to vector<1x1x1xf32>
    %140 = vector.extract %139[0, 0, 0] : f32 from vector<1x1x1xf32>
    %141 = vector.broadcast %140 : f32 to vector<1x1xf32>
    %142 = math.sqrt %129 : vector<1x1xf32>
    %cst_160 = arith.constant 9.99999996E-13 : f32
    %143 = vector.broadcast %cst_160 : f32 to vector<1x1xf32>
    %144 = arith.maximumf %142, %143 : vector<1x1xf32>
    %145 = math.sqrt %135 : vector<1x1xf32>
    %cst_161 = arith.constant 9.99999996E-13 : f32
    %146 = vector.broadcast %cst_161 : f32 to vector<1x1xf32>
    %147 = arith.maximumf %145, %146 : vector<1x1xf32>
    %148 = arith.divf %118, %144 : vector<1x1xf32>
    %149 = arith.divf %123, %147 : vector<1x1xf32>
    %150 = arith.mulf %144, %147 : vector<1x1xf32>
    %151 = arith.divf %141, %150 : vector<1x1xf32>
    %152 = arith.mulf %148, %149 : vector<1x1xf32>
    %cst_162 = arith.constant 2.048000e+03 : f32
    %153 = vector.broadcast %cst_162 : f32 to vector<1x1xf32>
    %154 = arith.divf %152, %153 : vector<1x1xf32>
    %155 = arith.subf %151, %154 : vector<1x1xf32>
    %156 = arith.mulf %144, %144 : vector<1x1xf32>
    %157 = arith.divf %129, %156 : vector<1x1xf32>
    %158 = arith.mulf %148, %148 : vector<1x1xf32>
    %cst_163 = arith.constant 2.048000e+03 : f32
    %159 = vector.broadcast %cst_163 : f32 to vector<1x1xf32>
    %160 = arith.divf %158, %159 : vector<1x1xf32>
    %161 = arith.subf %157, %160 : vector<1x1xf32>
    %cst_164 = arith.constant 0.000000e+00 : f32
    %162 = vector.broadcast %cst_164 : f32 to vector<1x1xf32>
    %163 = arith.maximumf %161, %162 : vector<1x1xf32>
    %164 = arith.mulf %147, %147 : vector<1x1xf32>
    %165 = arith.divf %135, %164 : vector<1x1xf32>
    %166 = arith.mulf %149, %149 : vector<1x1xf32>
    %cst_165 = arith.constant 2.048000e+03 : f32
    %167 = vector.broadcast %cst_165 : f32 to vector<1x1xf32>
    %168 = arith.divf %166, %167 : vector<1x1xf32>
    %169 = arith.subf %165, %168 : vector<1x1xf32>
    %cst_166 = arith.constant 0.000000e+00 : f32
    %170 = vector.broadcast %cst_166 : f32 to vector<1x1xf32>
    %171 = arith.maximumf %169, %170 : vector<1x1xf32>
    %172 = math.sqrt %163 : vector<1x1xf32>
    %173 = math.sqrt %171 : vector<1x1xf32>
    %174 = arith.mulf %172, %173 : vector<1x1xf32>
    %cst_167 = arith.constant 9.99999997E-7 : f32
    %175 = vector.broadcast %cst_167 : f32 to vector<1x1xf32>
    %176 = arith.addf %174, %175 : vector<1x1xf32>
    %177 = arith.divf %155, %176 : vector<1x1xf32>
    %cst_168 = arith.constant 1.000000e+00 : f32
    %178 = vector.broadcast %cst_168 : f32 to vector<1x1xf32>
    %179 = arith.subf %178, %177 : vector<1x1xf32>
    %180 = vector.shape_cast %112 : vector<64x32xf32> to vector<8x8x32xf32>
    %c0_169 = arith.constant 0 : index
    %c0_170 = arith.constant 0 : index
    %c0_171 = arith.constant 0 : index
    %c0_172 = arith.constant 0 : index
    %181 = vector.load %arg9[%c0_169, %c0_170, %c0_171, %c0_172] : memref<1x8x8x32xf32, #tpu.memory_space<vmem>>, vector<1x8x8x32xf32>
    %182 = vector.shape_cast %181 : vector<1x8x8x32xf32> to vector<8x8x32xf32>
    %183 = vector.shape_cast %180 : vector<8x8x32xf32> to vector<1x8x8x32xf32>
    tpu.vector_store %arg9[%c0_169, %c0_170, %c0_171, %c0_172], %183 {strides = array<i32>} : memref<1x8x8x32xf32, #tpu.memory_space<vmem>>, vector<1x8x8x32xf32>,
    %cst_173 = arith.constant 1.000000e+00 : f32
    %184 = vector.broadcast %cst_173 : f32 to vector<1x1xf32>
    %185 = arith.addf %184, %179 : vector<1x1xf32>
    %186 = vector.broadcast %185 : vector<1x1xf32> to vector<64x32xf32>
    %187 = arith.mulf %113, %186 : vector<64x32xf32>
    %188 = vector.shape_cast %187 : vector<64x32xf32> to vector<8x8x32xf32>
    %c0_174 = arith.constant 0 : index
    %c0_175 = arith.constant 0 : index
    %c0_176 = arith.constant 0 : index
    %c0_177 = arith.constant 0 : index
    %189 = vector.load %arg10[%c0_174, %c0_175, %c0_176, %c0_177] : memref<1x8x8x32xf32, #tpu.memory_space<vmem>>, vector<1x8x8x32xf32>
    %190 = vector.shape_cast %189 : vector<1x8x8x32xf32> to vector<8x8x32xf32>
    %191 = vector.shape_cast %188 : vector<8x8x32xf32> to vector<1x8x8x32xf32>
    tpu.vector_store %arg10[%c0_174, %c0_175, %c0_176, %c0_177], %191 {strides = array<i32>} : memref<1x8x8x32xf32, #tpu.memory_space<vmem>>, vector<1x8x8x32xf32>,
    return
  }
  func.func @transform_0(%arg0: i32) -> (i32, i32, i32, i32) {
    %c0_i32 = arith.constant 0 : i32
    %c0_i32_0 = arith.constant 0 : i32
    %c0_i32_1 = arith.constant 0 : i32
    %c0_i32_2 = arith.constant 0 : i32
    return %arg0, %c0_i32, %c0_i32_0, %c0_i32_1 : i32, i32, i32, i32
  }
  func.func @transform_1(%arg0: i32) -> (i32, i32, i32, i32) {
    %c0_i32 = arith.constant 0 : i32
    %c0_i32_0 = arith.constant 0 : i32
    %c0_i32_1 = arith.constant 0 : i32
    %c0_i32_2 = arith.constant 0 : i32
    return %arg0, %c0_i32, %c0_i32_0, %c0_i32_1 : i32, i32, i32, i32
  }
  func.func @transform_2(%arg0: i32) -> (i32, i32) {
    %c0_i32 = arith.constant 0 : i32
    %c0_i32_0 = arith.constant 0 : i32
    %c0_i32_1 = arith.constant 0 : i32
    return %c0_i32, %c0_i32_0 : i32, i32
  }
  func.func @transform_3(%arg0: i32) -> (i32, i32) {
    %c0_i32 = arith.constant 0 : i32
    %c0_i32_0 = arith.constant 0 : i32
    %c0_i32_1 = arith.constant 0 : i32
    return %c0_i32, %c0_i32_0 : i32, i32
  }
  func.func @transform_4(%arg0: i32) -> (i32, i32, i32, i32) {
    %c0_i32 = arith.constant 0 : i32
    %c0_i32_0 = arith.constant 0 : i32
    %c0_i32_1 = arith.constant 0 : i32
    %c0_i32_2 = arith.constant 0 : i32
    %c0_i32_3 = arith.constant 0 : i32
    return %c0_i32, %c0_i32_0, %c0_i32_1, %c0_i32_2 : i32, i32, i32, i32
  }
  func.func @transform_5(%arg0: i32) -> (i32, i32) {
    %c0_i32 = arith.constant 0 : i32
    %c0_i32_0 = arith.constant 0 : i32
    %c0_i32_1 = arith.constant 0 : i32
    return %c0_i32, %c0_i32_0 : i32, i32
  }
  func.func @transform_6(%arg0: i32) -> (i32, i32) {
    %c0_i32 = arith.constant 0 : i32
    %c0_i32_0 = arith.constant 0 : i32
    %c0_i32_1 = arith.constant 0 : i32
    return %c0_i32, %c0_i32_0 : i32, i32
  }
  func.func @transform_7(%arg0: i32) -> (i32, i32) {
    %c0_i32 = arith.constant 0 : i32
    %c0_i32_0 = arith.constant 0 : i32
    %c0_i32_1 = arith.constant 0 : i32
    return %c0_i32, %c0_i32_0 : i32, i32
  }
  func.func @transform_8(%arg0: i32) -> (i32, i32, i32, i32) {
    %c0_i32 = arith.constant 0 : i32
    %c0_i32_0 = arith.constant 0 : i32
    %c0_i32_1 = arith.constant 0 : i32
    %c0_i32_2 = arith.constant 0 : i32
    return %arg0, %c0_i32, %c0_i32_0, %c0_i32_1 : i32, i32, i32, i32
  }
  func.func @transform_9(%arg0: i32) -> (i32, i32, i32, i32) {
    %c0_i32 = arith.constant 0 : i32
    %c0_i32_0 = arith.constant 0 : i32
    %c0_i32_1 = arith.constant 0 : i32
    %c0_i32_2 = arith.constant 0 : i32
    return %arg0, %c0_i32, %c0_i32_0, %c0_i32_1 : i32, i32, i32, i32
  }
}

</mosaic_0001>

<llo_original>
// kernel: tpu_custom_call.1
$region0: #{tpu_custom_call.1}
  #allocation0 [shape = 'u32[]', space=smem, size = 0x4, offset = 0x4, fixed_abs, tag = 'smem constant byte address 0x4 - core index']
  #allocation1 [shape = 'u32[144,128]{1,0:T(1,128)}', space=vmem, size = 0x12000, scoped, tag = 'internal scratch']
  #allocation2 [shape = 'f32[2,12,12,32]{3,2,1,0:T(8,128)}', space=vmem, size = 0x30000, scoped, tag = 'scratch operand']
  %s0 = inlined_call_operand.vmem [shape: f32[2,8,8,32], index: 0, kind: input, shape index: {}]
  %s1 = inlined_call_operand.vmem [shape: f32[2,8,8,32], index: 1, kind: input, shape index: {}]
  %s2 = inlined_call_operand.vmem [shape: f32[32,32], index: 2, kind: input, shape index: {}]
  %s3 = inlined_call_operand.vmem [shape: f32[1,32], index: 3, kind: input, shape index: {}]
  %s4 = inlined_call_operand.vmem [shape: f32[3,3,64,32], index: 4, kind: input, shape index: {}]
  %s5 = inlined_call_operand.vmem [shape: f32[1,32], index: 5, kind: input, shape index: {}]
  %s6 = inlined_call_operand.vmem [shape: f32[32,32], index: 6, kind: input, shape index: {}]
  %s7 = inlined_call_operand.vmem [shape: f32[1,32], index: 7, kind: input, shape index: {}]
  %s8 = inlined_call_operand.hbm [shape: f32[2,8,8,32], index: 8, kind: output, shape index: {0}]
  %s9 = inlined_call_operand.hbm [shape: f32[2,8,8,32], index: 9, kind: output, shape index: {1}]
  %10 = xla_tuple %s8, %s9
  %s11 = sld [smem:[#allocation0]]
  $region73: #{tpu_custom_call.1} parent=0
    _
  %s13 = ssub.s32 1, %s11
  %s14 = scalar_select 0, %s13, %s11
  $region1: #{tpu_custom_call.1} parent=0
    #allocation3 [shape = 'u8[65536]{0}', space=vmem, size = 0x10000, scoped, tag = 'output window, operand 0']
    #allocation4 [shape = 's32[2]{0}', space=sflag, size = 0x8, scoped, tag = 'scoped memory for tpu_custom_call.1']
    #allocation5 [shape = 'u8[65536]{0}', space=vmem, size = 0x10000, scoped, tag = 'output window, operand 1']
    #allocation6 [shape = 's32[2]{0}', space=sflag, size = 0x8, scoped, tag = 'scoped memory for tpu_custom_call.1']
    %15 = vsyncpa [#allocation4], 0
    %s16 = scalar_lea.sflag [#allocation4], 1
    %17 = vsyncpa %s16, 0
    %18 = vsyncpa [#allocation6], 0
    %s19 = scalar_lea.sflag [#allocation6], 1
    %20 = vsyncpa %s19, 0
    loop: start=0, step=1, limit=4
    $region2: #{tpu_custom_call.1} parent=1 // loop_pre_header
      _
    $region3: #{tpu_custom_call.1} parent=1 // loop_header
      %s22 = sphi 0, %s26
      %p23 = scmp.ge.s32.totalorder %s22, 4
      %s32 = sphi 0, %s34
      %s35 = sphi 0, %s32
      %s36 = sphi 0, %s35
      %s52 = sphi 0, %s36
      %s58 = sphi 0, %s60
      %s61 = sphi 0, %s58
      %s62 = sphi 0, %s61
      %s78 = sphi 0, %s62
      %s82 = sphi 0, %s82
      %s84 = sphi 0, %s82
      %s85 = sphi 0, %s84
      %s99 = sphi 0, %s85
      %s103 = sphi 0, %s103
      %s105 = sphi 0, %s103
      %s106 = sphi 0, %s105
      %s120 = sphi 0, %s106
      %s124 = sphi 0, %s124
      %s126 = sphi 0, %s124
      %s127 = sphi 0, %s126
      %s141 = sphi 0, %s127
      %s145 = sphi 0, %s145
      %s147 = sphi 0, %s145
      %s148 = sphi 0, %s147
      %s162 = sphi 0, %s148
      %s166 = sphi 0, %s166
      %s168 = sphi 0, %s166
      %s169 = sphi 0, %s168
      %s183 = sphi 0, %s169
      %s187 = sphi 0, %s187
      %s189 = sphi 0, %s187
      %s190 = sphi 0, %s189
      %s204 = sphi 0, %s190
      %s210 = sphi 0, %s212
      %s213 = sphi 0, %s210
      %s214 = sphi 0, %s213
      %s230 = sphi 0, %s214
      %s236 = sphi 0, %s238
      %s239 = sphi 0, %s236
      %s240 = sphi 0, %s239
      %s256 = sphi 0, %s240
    $region4: #{tpu_custom_call.1} parent=1 // loop_header_branch
      %25 = sbr.rel (%p23) target = $region8
    $region5: #{tpu_custom_call.1} parent=1 // loop_body
      %s27 = ssub.s32 %s22, 1
      %s28 = ssub.s32 %s22, 2
      %s29 = sadd.s32 %s22, 1
      %s30 = ssub.s32 %s22, %s29
      %p31 = scmp.eq.s32.totalorder %s30, 0
      %s33 = sadd.s32 %s32, 1
      %s34 = scalar_select %p31, %s32, %s33
      %p37 = pneg %p31
      %p38 = scmp.eq.s32.totalorder %s22, 1
      %p39 = por %p37, %p38
      %p40 = scmp.ne.s32.totalorder %s32, %s35
      %p41 = scmp.eq.s32.totalorder %s22, 0
      %p42 = por %p40, %p41
      %p43 = scmp.ne.s32.totalorder %s32, %s35
      %p44 = scmp.eq.s32.totalorder %s27, 1
      %p45 = por %p43, %p44
      %p46 = scmp.ne.s32.totalorder %s35, %s36
      %p47 = scmp.eq.s32.totalorder %s27, 0
      %p48 = por %p46, %p47
      %p49 = scmp.ne.s32.totalorder %s35, %s36
      %p50 = scmp.eq.s32.totalorder %s28, 1
      %p51 = por %p49, %p50
      %p53 = scmp.ne.s32.totalorder %s36, %s52
      %p54 = scmp.eq.s32.totalorder %s28, 0
      %p55 = por %p53, %p54
      %s56 = ssub.s32 %s22, %s29
      %p57 = scmp.eq.s32.totalorder %s56, 0
      %s59 = sadd.s32 %s58, 1
      %s60 = scalar_select %p57, %s58, %s59
      %p63 = pneg %p57
      %p64 = scmp.eq.s32.totalorder %s22, 1
      %p65 = por %p63, %p64
      %p66 = scmp.ne.s32.totalorder %s58, %s61
      %p67 = scmp.eq.s32.totalorder %s22, 0
      %p68 = por %p66, %p67
      %p69 = scmp.ne.s32.totalorder %s58, %s61
      %p70 = scmp.eq.s32.totalorder %s27, 1
      %p71 = por %p69, %p70
      %p72 = scmp.ne.s32.totalorder %s61, %s62
      %p73 = scmp.eq.s32.totalorder %s27, 0
      %p74 = por %p72, %p73
      %p75 = scmp.ne.s32.totalorder %s61, %s62
      %p76 = scmp.eq.s32.totalorder %s28, 1
      %p77 = por %p75, %p76
      %p79 = scmp.ne.s32.totalorder %s62, %s78
      %p80 = scmp.eq.s32.totalorder %s28, 0
      %p81 = por %p79, %p80
      %s83 = sadd.s32 %s82, 1
      %p86 = scmp.eq.s32.totalorder %s22, 1
      %p87 = scmp.ne.s32.totalorder %s82, %s84
      %p88 = scmp.eq.s32.totalorder %s22, 0
      %p89 = por %p87, %p88
      %p90 = scmp.ne.s32.totalorder %s82, %s84
      %p91 = scmp.eq.s32.totalorder %s27, 1
      %p92 = por %p90, %p91
      %p93 = scmp.ne.s32.totalorder %s84, %s85
      %p94 = scmp.eq.s32.totalorder %s27, 0
      %p95 = por %p93, %p94
      %p96 = scmp.ne.s32.totalorder %s84, %s85
      %p97 = scmp.eq.s32.totalorder %s28, 1
      %p98 = por %p96, %p97
      %p100 = scmp.ne.s32.totalorder %s85, %s99
      %p101 = scmp.eq.s32.totalorder %s28, 0
      %p102 = por %p100, %p101
      %s104 = sadd.s32 %s103, 1
      %p107 = scmp.eq.s32.totalorder %s22, 1
      %p108 = scmp.ne.s32.totalorder %s103, %s105
      %p109 = scmp.eq.s32.totalorder %s22, 0
      %p110 = por %p108, %p109
      %p111 = scmp.ne.s32.totalorder %s103, %s105
      %p112 = scmp.eq.s32.totalorder %s27, 1
      %p113 = por %p111, %p112
      %p114 = scmp.ne.s32.totalorder %s105, %s106
      %p115 = scmp.eq.s32.totalorder %s27, 0
      %p116 = por %p114, %p115
      %p117 = scmp.ne.s32.totalorder %s105, %s106
      %p118 = scmp.eq.s32.totalorder %s28, 1
      %p119 = por %p117, %p118
      %p121 = scmp.ne.s32.totalorder %s106, %s120
      %p122 = scmp.eq.s32.totalorder %s28, 0
      %p123 = por %p121, %p122
      %s125 = sadd.s32 %s124, 1
      %p128 = scmp.eq.s32.totalorder %s22, 1
      %p129 = scmp.ne.s32.totalorder %s124, %s126
      %p130 = scmp.eq.s32.totalorder %s22, 0
      %p131 = por %p129, %p130
      %p132 = scmp.ne.s32.totalorder %s124, %s126
      %p133 = scmp.eq.s32.totalorder %s27, 1
      %p134 = por %p132, %p133
      %p135 = scmp.ne.s32.totalorder %s126, %s127
      %p136 = scmp.eq.s32.totalorder %s27, 0
      %p137 = por %p135, %p136
      %p138 = scmp.ne.s32.totalorder %s126, %s127
      %p139 = scmp.eq.s32.totalorder %s28, 1
      %p140 = por %p138, %p139
      %p142 = scmp.ne.s32.totalorder %s127, %s141
      %p143 = scmp.eq.s32.totalorder %s28, 0
      %p144 = por %p142, %p143
      %s146 = sadd.s32 %s145, 1
      %p149 = scmp.eq.s32.totalorder %s22, 1
      %p150 = scmp.ne.s32.totalorder %s145, %s147
      %p151 = scmp.eq.s32.totalorder %s22, 0
      %p152 = por %p150, %p151
      %p153 = scmp.ne.s32.totalorder %s145, %s147
      %p154 = scmp.eq.s32.totalorder %s27, 1
      %p155 = por %p153, %p154
      %p156 = scmp.ne.s32.totalorder %s147, %s148
      %p157 = scmp.eq.s32.totalorder %s27, 0
      %p158 = por %p156, %p157
      %p159 = scmp.ne.s32.totalorder %s147, %s148
      %p160 = scmp.eq.s32.totalorder %s28, 1
      %p161 = por %p159, %p160
      %p163 = scmp.ne.s32.totalorder %s148, %s162
      %p164 = scmp.eq.s32.totalorder %s28, 0
      %p165 = por %p163, %p164
      %s167 = sadd.s32 %s166, 1
      %p170 = scmp.eq.s32.totalorder %s22, 1
      %p171 = scmp.ne.s32.totalorder %s166, %s168
      %p172 = scmp.eq.s32.totalorder %s22, 0
      %p173 = por %p171, %p172
      %p174 = scmp.ne.s32.totalorder %s166, %s168
      %p175 = scmp.eq.s32.totalorder %s27, 1
      %p176 = por %p174, %p175
      %p177 = scmp.ne.s32.totalorder %s168, %s169
      %p178 = scmp.eq.s32.totalorder %s27, 0
      %p179 = por %p177, %p178
      %p180 = scmp.ne.s32.totalorder %s168, %s169
      %p181 = scmp.eq.s32.totalorder %s28, 1
      %p182 = por %p180, %p181
      %p184 = scmp.ne.s32.totalorder %s169, %s183
      %p185 = scmp.eq.s32.totalorder %s28, 0
      %p186 = por %p184, %p185
      %s188 = sadd.s32 %s187, 1
      %p191 = scmp.eq.s32.totalorder %s22, 1
      %p192 = scmp.ne.s32.totalorder %s187, %s189
      %p193 = scmp.eq.s32.totalorder %s22, 0
      %p194 = por %p192, %p193
      %p195 = scmp.ne.s32.totalorder %s187, %s189
      %p196 = scmp.eq.s32.totalorder %s27, 1
      %p197 = por %p195, %p196
      %p198 = scmp.ne.s32.totalorder %s189, %s190
      %p199 = scmp.eq.s32.totalorder %s27, 0
      %p200 = por %p198, %p199
      %p201 = scmp.ne.s32.totalorder %s189, %s190
      %p202 = scmp.eq.s32.totalorder %s28, 1
      %p203 = por %p201, %p202
      %p205 = scmp.ne.s32.totalorder %s190, %s204
      %p206 = scmp.eq.s32.totalorder %s28, 0
      %p207 = por %p205, %p206
      %s208 = ssub.s32 %s22, %s29
      %p209 = scmp.eq.s32.totalorder %s208, 0
      %s211 = sadd.s32 %s210, 1
      %s212 = scalar_select %p209, %s210, %s211
      %p215 = pneg %p209
      %p216 = scmp.eq.s32.totalorder %s22, 1
      %p217 = por %p215, %p216
      %p218 = scmp.ne.s32.totalorder %s210, %s213
      %p219 = scmp.eq.s32.totalorder %s22, 0
      %p220 = por %p218, %p219
      %p221 = scmp.ne.s32.totalorder %s210, %s213
      %p222 = scmp.eq.s32.totalorder %s27, 1
      %p223 = por %p221, %p222
      %p224 = scmp.ne.s32.totalorder %s213, %s214
      %p225 = scmp.eq.s32.totalorder %s27, 0
      %p226 = por %p224, %p225
      %p227 = scmp.ne.s32.totalorder %s213, %s214
      %p228 = scmp.eq.s32.totalorder %s28, 1
      %p229 = por %p227, %p228
      %p231 = scmp.ne.s32.totalorder %s214, %s230
      %p232 = scmp.eq.s32.totalorder %s28, 0
      %p233 = por %p231, %p232
      %s234 = ssub.s32 %s22, %s29
      %p235 = scmp.eq.s32.totalorder %s234, 0
      %s237 = sadd.s32 %s236, 1
      %s238 = scalar_select %p235, %s236, %s237
      %p241 = pneg %p235
      %p242 = scmp.eq.s32.totalorder %s22, 1
      %p243 = por %p241, %p242
      %p244 = scmp.ne.s32.totalorder %s236, %s239
      %p245 = scmp.eq.s32.totalorder %s22, 0
      %p246 = por %p244, %p245
      %p247 = scmp.ne.s32.totalorder %s236, %s239
      %p248 = scmp.eq.s32.totalorder %s27, 1
      %p249 = por %p247, %p248
      %p250 = scmp.ne.s32.totalorder %s239, %s240
      %p251 = scmp.eq.s32.totalorder %s27, 0
      %p252 = por %p250, %p251
      %p253 = scmp.ne.s32.totalorder %s239, %s240
      %p254 = scmp.eq.s32.totalorder %s28, 1
      %p255 = por %p253, %p254
      %p257 = scmp.ne.s32.totalorder %s240, %s256
      %p258 = scmp.eq.s32.totalorder %s28, 0
      %p259 = por %p257, %p258
      %p260 = scmp.le.s32.totalorder 1, %s22
      %p261 = scmp.lt.s32.totalorder %s22, 3
      %p262 = pnand %p260, %p261
      %p263 = pneg %p262
      // Predicated region
      $region9: #{tpu_custom_call.1} parent=5 // pred_check
        _
      $region10: #{tpu_custom_call.1} parent=5 // pred_check_branch
        %265 = sbr.rel (%p262) target = $region12
      $region11: #{tpu_custom_call.1} parent=5 // pred_region
        %s266 = ssub.s32 %s22, 1
        // Predicated region
        $region13: #{tpu_custom_call.1} parent=11 // pred_check
          %p267 = pneg %p95
        $region14: #{tpu_custom_call.1} parent=11 // pred_check_branch
          %269 = sbr.rel (%p267) target = $region16
        $region15: #{tpu_custom_call.1} parent=11 // pred_region
          _
        $region16: #{tpu_custom_call.1} parent=11 // pred_fallthru
          _
        // Predicated region
        $region17: #{tpu_custom_call.1} parent=11 // pred_check
          %p270 = pneg %p116
        $region18: #{tpu_custom_call.1} parent=11 // pred_check_branch
          %272 = sbr.rel (%p270) target = $region20
        $region19: #{tpu_custom_call.1} parent=11 // pred_region
          _
        $region20: #{tpu_custom_call.1} parent=11 // pred_fallthru
          _
        // Predicated region
        $region21: #{tpu_custom_call.1} parent=11 // pred_check
          %p273 = pneg %p137
        $region22: #{tpu_custom_call.1} parent=11 // pred_check_branch
          %275 = sbr.rel (%p273) target = $region24
        $region23: #{tpu_custom_call.1} parent=11 // pred_region
          _
        $region24: #{tpu_custom_call.1} parent=11 // pred_fallthru
          _
        // Predicated region
        $region25: #{tpu_custom_call.1} parent=11 // pred_check
          %p276 = pneg %p158
        $region26: #{tpu_custom_call.1} parent=11 // pred_check_branch
          %278 = sbr.rel (%p276) target = $region28
        $region27: #{tpu_custom_call.1} parent=11 // pred_region
          _
        $region28: #{tpu_custom_call.1} parent=11 // pred_fallthru
          _
        // Predicated region
        $region29: #{tpu_custom_call.1} parent=11 // pred_check
          %p279 = pneg %p179
        $region30: #{tpu_custom_call.1} parent=11 // pred_check_branch
          %281 = sbr.rel (%p279) target = $region32
        $region31: #{tpu_custom_call.1} parent=11 // pred_region
          _
        $region32: #{tpu_custom_call.1} parent=11 // pred_fallthru
          _
        // Predicated region
        $region33: #{tpu_custom_call.1} parent=11 // pred_check
          %p282 = pneg %p200
        $region34: #{tpu_custom_call.1} parent=11 // pred_check_branch
          %284 = sbr.rel (%p282) target = $region36
        $region35: #{tpu_custom_call.1} parent=11 // pred_region
          _
        $region36: #{tpu_custom_call.1} parent=11 // pred_fallthru
          _
      $region12: #{tpu_custom_call.1} parent=5 // pred_fallthru
        _
      %p285 = scmp.lt.s32.totalorder %s22, 2
      // Predicated region
      $region37: #{tpu_custom_call.1} parent=5 // pred_check
        %p286 = pneg %p285
      $region38: #{tpu_custom_call.1} parent=5 // pred_check_branch
        %288 = sbr.rel (%p286) target = $region40
      $region39: #{tpu_custom_call.1} parent=5 // pred_region
        // Predicated region
        $region41: #{tpu_custom_call.1} parent=39 // pred_check
          %p289 = pneg %p42
        $region42: #{tpu_custom_call.1} parent=39 // pred_check_branch
          %291 = sbr.rel (%p289) target = $region44
        $region43: #{tpu_custom_call.1} parent=39 // pred_region
          %p292 = scmp.lt.s32.totalorder %s22, 1
          %s293 = scalar_select %p292, %s22, 1
          %s294 = smul.addr %s293, 8
          %s295 = smul.addr %s294, 8
          %s296 = scalar_lea.vmem %s0, %s295
        $region44: #{tpu_custom_call.1} parent=39 // pred_fallthru
          _
        // Predicated region
        $region45: #{tpu_custom_call.1} parent=39 // pred_check
          %p297 = pneg %p68
        $region46: #{tpu_custom_call.1} parent=39 // pred_check_branch
          %299 = sbr.rel (%p297) target = $region48
        $region47: #{tpu_custom_call.1} parent=39 // pred_region
          %p300 = scmp.lt.s32.totalorder %s22, 1
          %s301 = scalar_select %p300, %s22, 1
          %s302 = smul.addr %s301, 8
          %s303 = smul.addr %s302, 8
          %s304 = scalar_lea.vmem %s1, %s303
        $region48: #{tpu_custom_call.1} parent=39 // pred_fallthru
          _
      $region40: #{tpu_custom_call.1} parent=5 // pred_fallthru
        _
      %p305 = scmp.le.s32.totalorder 1, %s22
      %p306 = scmp.lt.s32.totalorder %s22, 3
      %p307 = pnand %p305, %p306
      %p308 = pneg %p307
      // Predicated region
      $region49: #{tpu_custom_call.1} parent=5 // pred_check
        _
      $region50: #{tpu_custom_call.1} parent=5 // pred_check_branch
        %310 = sbr.rel (%p307) target = $region52
      $region51: #{tpu_custom_call.1} parent=5 // pred_region
        %s311 = ssub.s32 %s22, 1
        %p312 = scmp.lt.s32.totalorder %s27, 1
        %s313 = scalar_select %p312, %s27, 1
        %s314 = smul.addr %s313, 8
        %s315 = smul.addr %s314, 8
        %s316 = scalar_lea.vmem %s0, %s315
        %p317 = pneg %p48
        %p318 = pneg %p45
        %p319 = scmp.lt.s32.totalorder %s27, 1
        %s320 = scalar_select %p319, %s27, 1
        %s321 = smul.addr %s320, 8
        %s322 = smul.addr %s321, 8
        %s323 = scalar_lea.vmem %s1, %s322
        %p324 = pneg %p74
        %p325 = pneg %p71
        %p326 = pneg %p95
        %p327 = pneg %p92
        %p328 = pneg %p116
        %p329 = pneg %p113
        %p330 = pneg %p137
        %p331 = pneg %p134
        %p332 = pneg %p158
        %p333 = pneg %p155
        %p334 = pneg %p179
        %p335 = pneg %p176
        %p336 = pneg %p200
        %p337 = pneg %p197
        %p338 = pneg %p226
        %p339 = pneg %p223
        %s340 = sand.u32 %s213, 1
        %s341 = scalar_lea.sflag [#allocation4], %s340
        %s342 = sand.u32 %s213, 1
        %s343 = smul.addr %s342, 64
        %s344 = scalar_lea.vmem [#allocation3], %s343
        %p345 = pneg %p252
        %p346 = pneg %p249
        %s347 = sand.u32 %s239, 1
        %s348 = scalar_lea.sflag [#allocation6], %s347
        %s349 = sand.u32 %s239, 1
        %s350 = smul.addr %s349, 64
        %s351 = scalar_lea.vmem [#allocation5], %s350
        %p352 = scmp.lt.s32.totalorder %s27, 1
        %s353 = scalar_select %p352, %s27, 1
        %s354 = smul.addr %s353, 8
        %s355 = smul.addr %s354, 8
        %s356 = scalar_lea.vmem %s0, %s355
        %p357 = scmp.lt.s32.totalorder %s27, 1
        %s358 = scalar_select %p357, %s27, 1
        %s359 = smul.addr %s358, 8
        %s360 = smul.addr %s359, 8
        %s361 = scalar_lea.vmem %s1, %s360
        %v362 = vld [vmem:[%s356] sm:$0xff]
        %v363 = vld [vmem:[%s356 + $0x8] sm:$0xff]
        %v364 = vld [vmem:[%s356 + $0x10] sm:$0xff]
        %v365 = vld [vmem:[%s356 + $0x18] sm:$0xff]
        %v366 = vld [vmem:[%s356 + $0x20] sm:$0xff]
        %v367 = vld [vmem:[%s356 + $0x28] sm:$0xff]
        %v368 = vld [vmem:[%s356 + $0x30] sm:$0xff]
        %v369 = vld [vmem:[%s356 + $0x38] sm:$0xff]
        %v370 = vld [vmem:[%s361] sm:$0xff]
        %v371 = vld [vmem:[%s361 + $0x8] sm:$0xff]
        %v372 = vld [vmem:[%s361 + $0x10] sm:$0xff]
        %v373 = vld [vmem:[%s361 + $0x18] sm:$0xff]
        %v374 = vld [vmem:[%s361 + $0x20] sm:$0xff]
        %v375 = vld [vmem:[%s361 + $0x28] sm:$0xff]
        %v376 = vld [vmem:[%s361 + $0x30] sm:$0xff]
        %v377 = vld [vmem:[%s361 + $0x38] sm:$0xff]
        %v378 = vld [vmem:[%s2] sm:$0xff]
        %v379 = vld [vmem:[%s2 + $0x8] sm:$0xff]
        %v380 = vld [vmem:[%s2 + $0x10] sm:$0xff]
        %v381 = vld [vmem:[%s2 + $0x18] sm:$0xff]
        %v382 = vld [vmem:[%s3] sm:$0x1]
        %v384 = vlaneseq
        %v385 = vshrl.u32 %v384, 7
        %v386 = vsub.s32 0, %v385
        %v387 = vrot.slane %v382, %v386
        %vm389 = vcmask 261120
        %v391 = vsel %vm389, %v362, 0
        %v394 = vsel %vm389, %v363, 0
        %v397 = vsel %vm389, %v364, 0
        %v400 = vsel %vm389, %v365, 0
        %v403 = vsel %vm389, %v366, 0
        %v406 = vsel %vm389, %v367, 0
        %v409 = vsel %vm389, %v368, 0
        %v412 = vsel %vm389, %v369, 0
        %v415 = vsel %vm389, %v370, 0
        %v418 = vsel %vm389, %v371, 0
        %v421 = vsel %vm389, %v372, 0
        %v424 = vsel %vm389, %v373, 0
        %v427 = vsel %vm389, %v374, 0
        %v430 = vsel %vm389, %v375, 0
        %v433 = vsel %vm389, %v376, 0
        %v436 = vsel %vm389, %v377, 0
        %438 = vmatprep.subr.mxu0 0.0
        %439 = vmatpush1.msra.mxu0 0.0
        %440 = vmatprep.subr.mxu0 0.0
        %441 = vmatpush1.msra.mxu0 0.0
        %442 = vmatprep.subr.mxu0 0.0
        %443 = vmatpush1.msra.mxu0 0.0
        %444 = vmatprep.subr.mxu0 0.0
        %445 = vmatpush1.msra.mxu0 0.0
        %446 = vmatprep.subr.mxu0 0.0
        %447 = vmatpush1.msra.mxu0 0.0
        %448 = vmatprep.subr.mxu0 0.0
        %449 = vmatpush1.msra.mxu0 0.0
        %450 = vmatprep.subr.mxu0 0.0
        %451 = vmatpush1.msra.mxu0 0.0
        %452 = vmatprep.subr.mxu0 0.0
        %453 = vmatpush1.msra.mxu0 0.0
        %454 = vmatprep.subr.mxu0 0.0
        %455 = vmatpush1.msra.mxu0 0.0
        %456 = vmatprep.subr.mxu0 0.0
        %457 = vmatpush1.msra.mxu0 0.0
        %458 = vmatprep.subr.mxu0 0.0
        %459 = vmatpush1.msra.mxu0 0.0
        %460 = vmatprep.subr.mxu0 0.0
        %461 = vmatpush1.msra.mxu0 0.0
        %462 = vmatprep.subr.mxu0 0.0
        %463 = vmatpush1.msra.mxu0 %v381
        %464 = vmatprep.subr.mxu0 0.0
        %465 = vmatpush1.msra.mxu0 %v380
        %466 = vmatprep.subr.mxu0 0.0
        %467 = vmatpush1.msra.mxu0 %v379
        %468 = vmatprep.subr.mxu0 0.0
        %469 = vmatpush1.msra.mxu0 %v378
        %470 = vmatprep.subr.mxu0 0.0
        %471 = vmatpush2.msra.mxu0 0.0
        %472 = vmatprep.subr.mxu0 0.0
        %473 = vmatpush2.msra.mxu0 0.0
        %474 = vmatprep.subr.mxu0 0.0
        %475 = vmatpush2.msra.mxu0 0.0
        %476 = vmatprep.subr.mxu0 0.0
        %477 = vmatpush2.msra.mxu0 0.0
        %478 = vmatprep.subr.mxu0 0.0
        %479 = vmatpush2.msra.mxu0 0.0
        %480 = vmatprep.subr.mxu0 0.0
        %481 = vmatpush2.msra.mxu0 0.0
        %482 = vmatprep.subr.mxu0 0.0
        %483 = vmatpush2.msra.mxu0 0.0
        %484 = vmatprep.subr.mxu0 0.0
        %485 = vmatpush2.msra.mxu0 0.0
        %486 = vmatprep.subr.mxu0 0.0
        %487 = vmatpush2.msra.mxu0 0.0
        %488 = vmatprep.subr.mxu0 0.0
        %489 = vmatpush2.msra.mxu0 0.0
        %490 = vmatprep.subr.mxu0 0.0
        %491 = vmatpush2.msra.mxu0 0.0
        %492 = vmatprep.subr.mxu0 0.0
        %493 = vmatpush2.msra.mxu0 0.0
        %494 = vmatprep.subr.mxu0 0.0
        %495 = vmatpush2.msra.mxu0 0.0
        %496 = vmatprep.subr.mxu0 0.0
        %497 = vmatpush2.msra.mxu0 0.0
        %498 = vmatprep.subr.mxu0 0.0
        %499 = vmatpush2.msra.mxu0 0.0
        %500 = vmatprep.subr.mxu0 0.0
        %501 = vmatpush2.msra.mxu0 0.0
        %502 = vmatprep.mubr.f32.mxu0 0.0
        %503 = vmatmul.mubr.f32.gmra.mxu0 %v391
        %v504 = vpop.f32.mrf.mxu0
        %v505 = vadd.f32 %v387, %v504
        %v506 = vpop.f32.mrf.mxu0
        %507 = vmatprep.mubr.f32.mxu0 0.0
        %508 = vmatmul.mubr.f32.gmra.mxu0 %v394
        %v509 = vpop.f32.mrf.mxu0
        %v510 = vadd.f32 %v387, %v509
        %v511 = vpop.f32.mrf.mxu0
        %512 = vmatprep.mubr.f32.mxu0 0.0
        %513 = vmatmul.mubr.f32.gmra.mxu0 %v397
        %v514 = vpop.f32.mrf.mxu0
        %v515 = vadd.f32 %v387, %v514
        %v516 = vpop.f32.mrf.mxu0
        %517 = vmatprep.mubr.f32.mxu0 0.0
        %518 = vmatmul.mubr.f32.gmra.mxu0 %v400
        %v519 = vpop.f32.mrf.mxu0
        %v520 = vadd.f32 %v387, %v519
        %v521 = vpop.f32.mrf.mxu0
        %522 = vmatprep.mubr.f32.mxu0 0.0
        %523 = vmatmul.mubr.f32.gmra.mxu0 %v403
        %v524 = vpop.f32.mrf.mxu0
        %v525 = vadd.f32 %v387, %v524
        %v526 = vpop.f32.mrf.mxu0
        %527 = vmatprep.mubr.f32.mxu0 0.0
        %528 = vmatmul.mubr.f32.gmra.mxu0 %v406
        %v529 = vpop.f32.mrf.mxu0
        %v530 = vadd.f32 %v387, %v529
        %v531 = vpop.f32.mrf.mxu0
        %532 = vmatprep.mubr.f32.mxu0 0.0
        %533 = vmatmul.mubr.f32.gmra.mxu0 %v409
        %v534 = vpop.f32.mrf.mxu0
        %v535 = vadd.f32 %v387, %v534
        %v536 = vpop.f32.mrf.mxu0
        %537 = vmatprep.mubr.f32.mxu0 0.0
        %538 = vmatmul.mubr.f32.gmra.mxu0 %v412
        %v539 = vpop.f32.mrf.mxu0
        %v540 = vadd.f32 %v387, %v539
        %v541 = vpop.f32.mrf.mxu0
        %542 = vmatprep.mubr.f32.mxu0 0.0
        %543 = vmatmul.mubr.f32.gmra.mxu0 %v415
        %v544 = vpop.f32.mrf.mxu0
        %v545 = vadd.f32 %v387, %v544
        %v546 = vpop.f32.mrf.mxu0
        %547 = vmatprep.mubr.f32.mxu0 0.0
        %548 = vmatmul.mubr.f32.gmra.mxu0 %v418
        %v549 = vpop.f32.mrf.mxu0
        %v550 = vadd.f32 %v387, %v549
        %v551 = vpop.f32.mrf.mxu0
        %552 = vmatprep.mubr.f32.mxu0 0.0
        %553 = vmatmul.mubr.f32.gmra.mxu0 %v421
        %v554 = vpop.f32.mrf.mxu0
        %v555 = vadd.f32 %v387, %v554
        %v556 = vpop.f32.mrf.mxu0
        %557 = vmatprep.mubr.f32.mxu0 0.0
        %558 = vmatmul.mubr.f32.gmra.mxu0 %v424
        %v559 = vpop.f32.mrf.mxu0
        %v560 = vadd.f32 %v387, %v559
        %v561 = vpop.f32.mrf.mxu0
        %562 = vmatprep.mubr.f32.mxu0 0.0
        %563 = vmatmul.mubr.f32.gmra.mxu0 %v427
        %v564 = vpop.f32.mrf.mxu0
        %v565 = vadd.f32 %v387, %v564
        %v566 = vpop.f32.mrf.mxu0
        %567 = vmatprep.mubr.f32.mxu0 0.0
        %568 = vmatmul.mubr.f32.gmra.mxu0 %v430
        %v569 = vpop.f32.mrf.mxu0
        %v570 = vadd.f32 %v387, %v569
        %v571 = vpop.f32.mrf.mxu0
        %572 = vmatprep.mubr.f32.mxu0 0.0
        %573 = vmatmul.mubr.f32.gmra.mxu0 %v433
        %v574 = vpop.f32.mrf.mxu0
        %v575 = vadd.f32 %v387, %v574
        %v576 = vpop.f32.mrf.mxu0
        %577 = vmatprep.mubr.f32.mxu0 0.0
        %578 = vmatmul.mubr.f32.gmra.mxu0 %v436
        %v579 = vpop.f32.mrf.mxu0
        %v580 = vadd.f32 %v387, %v579
        %v581 = vpop.f32.mrf.mxu0
        %582 = vdwg.mxu0
        %583 = vst.msk [vmem:[#allocation2] sm:$0xff] %vm389, 0.0
        %vm584 = vcmask 257024
        %585 = vst.msk [vmem:[#allocation2 + $0x8] sm:$0xf] %vm584, 0.0
        %586 = vst.msk [vmem:[#allocation2 + $0x10] sm:$0xff] %vm389, 0.0
        %587 = vst.msk [vmem:[#allocation2 + $0x18] sm:$0xf] %vm584, 0.0
        %588 = vst.msk [vmem:[#allocation2 + $0xc0] sm:$0xff] %vm389, 0.0
        %589 = vst.msk [vmem:[#allocation2 + $0xc8] sm:$0xf] %vm584, 0.0
        %590 = vst.msk [vmem:[#allocation2 + $0xd0] sm:$0xff] %vm389, 0.0
        %591 = vst.msk [vmem:[#allocation2 + $0xd8] sm:$0xf] %vm584, 0.0
        %s592 = scalar_lea.vmem [#allocation2], 160
        %593 = vst.msk [vmem:[%s592] sm:$0xff] %vm389, 0.0
        %594 = vst.msk [vmem:[%s592 + $0x8] sm:$0xf] %vm584, 0.0
        %595 = vst.msk [vmem:[%s592 + $0x10] sm:$0xff] %vm389, 0.0
        %596 = vst.msk [vmem:[%s592 + $0x18] sm:$0xf] %vm584, 0.0
        %597 = vst.msk [vmem:[%s592 + $0xc0] sm:$0xff] %vm389, 0.0
        %598 = vst.msk [vmem:[%s592 + $0xc8] sm:$0xf] %vm584, 0.0
        %599 = vst.msk [vmem:[%s592 + $0xd0] sm:$0xff] %vm389, 0.0
        %600 = vst.msk [vmem:[%s592 + $0xd8] sm:$0xf] %vm584, 0.0
        %s601 = scalar_lea.vmem [#allocation2], 32
        %vm602 = vcmask 254976
        %603 = vst.msk [vmem:[%s601] sm:$0x3] %vm602, 0.0
        %604 = vst.msk [vmem:[%s601 + $0x10] sm:$0x3] %vm602, 0.0
        %605 = vst.msk [vmem:[%s601 + $0x20] sm:$0x3] %vm602, 0.0
        %606 = vst.msk [vmem:[%s601 + $0x30] sm:$0x3] %vm602, 0.0
        %607 = vst.msk [vmem:[%s601 + $0x40] sm:$0x3] %vm602, 0.0
        %608 = vst.msk [vmem:[%s601 + $0x50] sm:$0x3] %vm602, 0.0
        %609 = vst.msk [vmem:[%s601 + $0x60] sm:$0x3] %vm602, 0.0
        %610 = vst.msk [vmem:[%s601 + $0x70] sm:$0x3] %vm602, 0.0
        %611 = vst.msk [vmem:[%s601 + $0xc0] sm:$0x3] %vm602, 0.0
        %612 = vst.msk [vmem:[%s601 + $0xd0] sm:$0x3] %vm602, 0.0
        %613 = vst.msk [vmem:[%s601 + $0xe0] sm:$0x3] %vm602, 0.0
        %614 = vst.msk [vmem:[%s601 + $0xf0] sm:$0x3] %vm602, 0.0
        %615 = vst.msk [vmem:[%s601 + $0x100] sm:$0x3] %vm602, 0.0
        %616 = vst.msk [vmem:[%s601 + $0x110] sm:$0x3] %vm602, 0.0
        %617 = vst.msk [vmem:[%s601 + $0x120] sm:$0x3] %vm602, 0.0
        %618 = vst.msk [vmem:[%s601 + $0x130] sm:$0x3] %vm602, 0.0
        %619 = vst.msk [vmem:[%s601 + $0xa] sm:$0x3] %vm602, 0.0
        %620 = vst.msk [vmem:[%s601 + $0x1a] sm:$0x3] %vm602, 0.0
        %621 = vst.msk [vmem:[%s601 + $0x2a] sm:$0x3] %vm602, 0.0
        %622 = vst.msk [vmem:[%s601 + $0x3a] sm:$0x3] %vm602, 0.0
        %623 = vst.msk [vmem:[%s601 + $0x4a] sm:$0x3] %vm602, 0.0
        %624 = vst.msk [vmem:[%s601 + $0x5a] sm:$0x3] %vm602, 0.0
        %625 = vst.msk [vmem:[%s601 + $0x6a] sm:$0x3] %vm602, 0.0
        %626 = vst.msk [vmem:[%s601 + $0x7a] sm:$0x3] %vm602, 0.0
        %627 = vst.msk [vmem:[%s601 + $0xca] sm:$0x3] %vm602, 0.0
        %628 = vst.msk [vmem:[%s601 + $0xda] sm:$0x3] %vm602, 0.0
        %629 = vst.msk [vmem:[%s601 + $0xea] sm:$0x3] %vm602, 0.0
        %630 = vst.msk [vmem:[%s601 + $0xfa] sm:$0x3] %vm602, 0.0
        %631 = vst.msk [vmem:[%s601 + $0x10a] sm:$0x3] %vm602, 0.0
        %632 = vst.msk [vmem:[%s601 + $0x11a] sm:$0x3] %vm602, 0.0
        %633 = vst.msk [vmem:[%s601 + $0x12a] sm:$0x3] %vm602, 0.0
        %634 = vst.msk [vmem:[%s601 + $0x13a] sm:$0x3] %vm602, 0.0
        %635 = vst.msk [vmem:[%s601 + $0x2] sm:$0xff] %vm389, %v505
        %636 = vst.msk [vmem:[%s601 + $0x12] sm:$0xff] %vm389, %v510
        %637 = vst.msk [vmem:[%s601 + $0x22] sm:$0xff] %vm389, %v515
        %638 = vst.msk [vmem:[%s601 + $0x32] sm:$0xff] %vm389, %v520
        %639 = vst.msk [vmem:[%s601 + $0x42] sm:$0xff] %vm389, %v525
        %640 = vst.msk [vmem:[%s601 + $0x52] sm:$0xff] %vm389, %v530
        %641 = vst.msk [vmem:[%s601 + $0x62] sm:$0xff] %vm389, %v535
        %642 = vst.msk [vmem:[%s601 + $0x72] sm:$0xff] %vm389, %v540
        %643 = vst.msk [vmem:[%s601 + $0xc2] sm:$0xff] %vm389, %v545
        %644 = vst.msk [vmem:[%s601 + $0xd2] sm:$0xff] %vm389, %v550
        %645 = vst.msk [vmem:[%s601 + $0xe2] sm:$0xff] %vm389, %v555
        %646 = vst.msk [vmem:[%s601 + $0xf2] sm:$0xff] %vm389, %v560
        %647 = vst.msk [vmem:[%s601 + $0x102] sm:$0xff] %vm389, %v565
        %648 = vst.msk [vmem:[%s601 + $0x112] sm:$0xff] %vm389, %v570
        %649 = vst.msk [vmem:[%s601 + $0x122] sm:$0xff] %vm389, %v575
        %650 = vst.msk [vmem:[%s601 + $0x132] sm:$0xff] %vm389, %v580
        %v651 = vld [vmem:[%s5] sm:$0x1]
        %v653 = vlaneseq
        %v654 = vshrl.u32 %v653, 7
        %v655 = vsub.s32 0, %v654
        %v656 = vrot.slane %v651, %v655
        %v658 = vadd.f32 %v656, 0.0
        %s659 = scalar_lea.vmem [#allocation2], 16
        %v660 = vld [vmem:[%s659 + $0x1] sm:$0xff]
        %v661 = vld [vmem:[%s659 + $0x11] sm:$0xff]
        %v662 = vld [vmem:[%s659 + $0x21] sm:$0xff]
        %v663 = vld [vmem:[%s659 + $0x31] sm:$0xff]
        %v664 = vld [vmem:[%s659 + $0x41] sm:$0xff]
        %v665 = vld [vmem:[%s659 + $0x51] sm:$0xff]
        %v666 = vld [vmem:[%s659 + $0x61] sm:$0xff]
        %v667 = vld [vmem:[%s659 + $0x71] sm:$0xff]
        %v668 = vld [vmem:[%s659 + $0xc1] sm:$0xff]
        %v669 = vld [vmem:[%s659 + $0xd1] sm:$0xff]
        %v670 = vld [vmem:[%s659 + $0xe1] sm:$0xff]
        %v671 = vld [vmem:[%s659 + $0xf1] sm:$0xff]
        %v672 = vld [vmem:[%s659 + $0x101] sm:$0xff]
        %v673 = vld [vmem:[%s659 + $0x111] sm:$0xff]
        %v674 = vld [vmem:[%s659 + $0x121] sm:$0xff]
        %v675 = vld [vmem:[%s659 + $0x131] sm:$0xff]
        %v676 = vld [vmem:[#allocation2] sm:$0xff]
        %v677 = vld [vmem:[#allocation2 + $0x10] sm:$0xff]
        %v678 = vld [vmem:[#allocation2 + $0x20] sm:$0xff]
        %v679 = vld [vmem:[#allocation2 + $0x30] sm:$0xff]
        %v680 = vld [vmem:[#allocation2 + $0x40] sm:$0xff]
        %v681 = vld [vmem:[#allocation2 + $0x50] sm:$0xff]
        %v682 = vld [vmem:[#allocation2 + $0x60] sm:$0xff]
        %v683 = vld [vmem:[#allocation2 + $0x70] sm:$0xff]
        %v684 = vld [vmem:[#allocation2 + $0xc0] sm:$0xff]
        %v685 = vld [vmem:[#allocation2 + $0xd0] sm:$0xff]
        %v686 = vld [vmem:[#allocation2 + $0xe0] sm:$0xff]
        %v687 = vld [vmem:[#allocation2 + $0xf0] sm:$0xff]
        %v688 = vld [vmem:[#allocation2 + $0x100] sm:$0xff]
        %v689 = vld [vmem:[#allocation2 + $0x110] sm:$0xff]
        %v690 = vld [vmem:[#allocation2 + $0x120] sm:$0xff]
        %v691 = vld [vmem:[#allocation2 + $0x130] sm:$0xff]
        %708 = vrot.lane.b32.xlu0 %v676, 32
        %v709 = vpop.permute.xlu0 %708
        %710 = vrot.lane.b32.xlu0 %v677, 32
        %v711 = vpop.permute.xlu0 %710
        %712 = vrot.lane.b32.xlu0 %v678, 32
        %v713 = vpop.permute.xlu0 %712
        %714 = vrot.lane.b32.xlu0 %v679, 32
        %v715 = vpop.permute.xlu0 %714
        %716 = vrot.lane.b32.xlu0 %v680, 32
        %v717 = vpop.permute.xlu0 %716
        %718 = vrot.lane.b32.xlu0 %v681, 32
        %v719 = vpop.permute.xlu0 %718
        %720 = vrot.lane.b32.xlu0 %v682, 32
        %v721 = vpop.permute.xlu0 %720
        %722 = vrot.lane.b32.xlu0 %v683, 32
        %v723 = vpop.permute.xlu0 %722
        %724 = vrot.lane.b32.xlu0 %v684, 32
        %v725 = vpop.permute.xlu0 %724
        %726 = vrot.lane.b32.xlu0 %v685, 32
        %v727 = vpop.permute.xlu0 %726
        %728 = vrot.lane.b32.xlu0 %v686, 32
        %v729 = vpop.permute.xlu0 %728
        %730 = vrot.lane.b32.xlu0 %v687, 32
        %v731 = vpop.permute.xlu0 %730
        %732 = vrot.lane.b32.xlu0 %v688, 32
        %v733 = vpop.permute.xlu0 %732
        %734 = vrot.lane.b32.xlu0 %v689, 32
        %v735 = vpop.permute.xlu0 %734
        %736 = vrot.lane.b32.xlu0 %v690, 32
        %v737 = vpop.permute.xlu0 %736
        %738 = vrot.lane.b32.xlu0 %v691, 32
        %v739 = vpop.permute.xlu0 %738
        %v756 = vsel %vm389, %v660, %v709
        %v757 = vsel %vm389, %v661, %v711
        %v758 = vsel %vm389, %v662, %v713
        %v759 = vsel %vm389, %v663, %v715
        %v760 = vsel %vm389, %v664, %v717
        %v761 = vsel %vm389, %v665, %v719
        %v762 = vsel %vm389, %v666, %v721
        %v763 = vsel %vm389, %v667, %v723
        %v764 = vsel %vm389, %v668, %v725
        %v765 = vsel %vm389, %v669, %v727
        %v766 = vsel %vm389, %v670, %v729
        %v767 = vsel %vm389, %v671, %v731
        %v768 = vsel %vm389, %v672, %v733
        %v769 = vsel %vm389, %v673, %v735
        %v770 = vsel %vm389, %v674, %v737
        %v771 = vsel %vm389, %v675, %v739
        %v772 = vld [vmem:[%s4] sm:$0xff]
        %v773 = vld [vmem:[%s4 + $0x8] sm:$0xff]
        %v774 = vld [vmem:[%s4 + $0x10] sm:$0xff]
        %v775 = vld [vmem:[%s4 + $0x18] sm:$0xff]
        %v776 = vld [vmem:[%s4 + $0x20] sm:$0xff]
        %v777 = vld [vmem:[%s4 + $0x28] sm:$0xff]
        %v778 = vld [vmem:[%s4 + $0x30] sm:$0xff]
        %v779 = vld [vmem:[%s4 + $0x38] sm:$0xff]
        %vm780 = vcmask 523264
        %v782 = vsel %vm780, %v756, 0
        %v785 = vsel %vm780, %v757, 0
        %v788 = vsel %vm780, %v758, 0
        %v791 = vsel %vm780, %v759, 0
        %v794 = vsel %vm780, %v760, 0
        %v797 = vsel %vm780, %v761, 0
        %v800 = vsel %vm780, %v762, 0
        %v803 = vsel %vm780, %v763, 0
        %v806 = vsel %vm780, %v764, 0
        %v809 = vsel %vm780, %v765, 0
        %v812 = vsel %vm780, %v766, 0
        %v815 = vsel %vm780, %v767, 0
        %v818 = vsel %vm780, %v768, 0
        %v821 = vsel %vm780, %v769, 0
        %v824 = vsel %vm780, %v770, 0
        %v827 = vsel %vm780, %v771, 0
        %829 = vmatprep.subr.mxu0 0.0
        %830 = vmatpush1.msra.mxu0 0.0
        %831 = vmatprep.subr.mxu0 0.0
        %832 = vmatpush1.msra.mxu0 0.0
        %833 = vmatprep.subr.mxu0 0.0
        %834 = vmatpush1.msra.mxu0 0.0
        %835 = vmatprep.subr.mxu0 0.0
        %836 = vmatpush1.msra.mxu0 0.0
        %837 = vmatprep.subr.mxu0 0.0
        %838 = vmatpush1.msra.mxu0 0.0
        %839 = vmatprep.subr.mxu0 0.0
        %840 = vmatpush1.msra.mxu0 0.0
        %841 = vmatprep.subr.mxu0 0.0
        %842 = vmatpush1.msra.mxu0 0.0
        %843 = vmatprep.subr.mxu0 0.0
        %844 = vmatpush1.msra.mxu0 0.0
        %845 = vmatprep.subr.mxu0 0.0
        %846 = vmatpush1.msra.mxu0 %v779
        %847 = vmatprep.subr.mxu0 0.0
        %848 = vmatpush1.msra.mxu0 %v778
        %849 = vmatprep.subr.mxu0 0.0
        %850 = vmatpush1.msra.mxu0 %v777
        %851 = vmatprep.subr.mxu0 0.0
        %852 = vmatpush1.msra.mxu0 %v776
        %853 = vmatprep.subr.mxu0 0.0
        %854 = vmatpush1.msra.mxu0 %v775
        %855 = vmatprep.subr.mxu0 0.0
        %856 = vmatpush1.msra.mxu0 %v774
        %857 = vmatprep.subr.mxu0 0.0
        %858 = vmatpush1.msra.mxu0 %v773
        %859 = vmatprep.subr.mxu0 0.0
        %860 = vmatpush1.msra.mxu0 %v772
        %861 = vmatprep.subr.mxu0 0.0
        %862 = vmatpush2.msra.mxu0 0.0
        %863 = vmatprep.subr.mxu0 0.0
        %864 = vmatpush2.msra.mxu0 0.0
        %865 = vmatprep.subr.mxu0 0.0
        %866 = vmatpush2.msra.mxu0 0.0
        %867 = vmatprep.subr.mxu0 0.0
        %868 = vmatpush2.msra.mxu0 0.0
        %869 = vmatprep.subr.mxu0 0.0
        %870 = vmatpush2.msra.mxu0 0.0
        %871 = vmatprep.subr.mxu0 0.0
        %872 = vmatpush2.msra.mxu0 0.0
        %873 = vmatprep.subr.mxu0 0.0
        %874 = vmatpush2.msra.mxu0 0.0
        %875 = vmatprep.subr.mxu0 0.0
        %876 = vmatpush2.msra.mxu0 0.0
        %877 = vmatprep.subr.mxu0 0.0
        %878 = vmatpush2.msra.mxu0 0.0
        %879 = vmatprep.subr.mxu0 0.0
        %880 = vmatpush2.msra.mxu0 0.0
        %881 = vmatprep.subr.mxu0 0.0
        %882 = vmatpush2.msra.mxu0 0.0
        %883 = vmatprep.subr.mxu0 0.0
        %884 = vmatpush2.msra.mxu0 0.0
        %885 = vmatprep.subr.mxu0 0.0
        %886 = vmatpush2.msra.mxu0 0.0
        %887 = vmatprep.subr.mxu0 0.0
        %888 = vmatpush2.msra.mxu0 0.0
        %889 = vmatprep.subr.mxu0 0.0
        %890 = vmatpush2.msra.mxu0 0.0
        %891 = vmatprep.subr.mxu0 0.0
        %892 = vmatpush2.msra.mxu0 0.0
        %893 = vmatprep.mubr.f32.mxu0 0.0
        %894 = vmatmul.mubr.f32.gmra.mxu0 %v782
        %v895 = vpop.f32.mrf.mxu0
        %v896 = vadd.f32 0.0, %v895
        %v897 = vpop.f32.mrf.mxu0
        %898 = vmatprep.mubr.f32.mxu0 0.0
        %899 = vmatmul.mubr.f32.gmra.mxu0 %v785
        %v900 = vpop.f32.mrf.mxu0
        %v901 = vadd.f32 0.0, %v900
        %v902 = vpop.f32.mrf.mxu0
        %903 = vmatprep.mubr.f32.mxu0 0.0
        %904 = vmatmul.mubr.f32.gmra.mxu0 %v788
        %v905 = vpop.f32.mrf.mxu0
        %v906 = vadd.f32 0.0, %v905
        %v907 = vpop.f32.mrf.mxu0
        %908 = vmatprep.mubr.f32.mxu0 0.0
        %909 = vmatmul.mubr.f32.gmra.mxu0 %v791
        %v910 = vpop.f32.mrf.mxu0
        %v911 = vadd.f32 0.0, %v910
        %v912 = vpop.f32.mrf.mxu0
        %913 = vmatprep.mubr.f32.mxu0 0.0
        %914 = vmatmul.mubr.f32.gmra.mxu0 %v794
        %v915 = vpop.f32.mrf.mxu0
        %v916 = vadd.f32 0.0, %v915
        %v917 = vpop.f32.mrf.mxu0
        %918 = vmatprep.mubr.f32.mxu0 0.0
        %919 = vmatmul.mubr.f32.gmra.mxu0 %v797
        %v920 = vpop.f32.mrf.mxu0
        %v921 = vadd.f32 0.0, %v920
        %v922 = vpop.f32.mrf.mxu0
        %923 = vmatprep.mubr.f32.mxu0 0.0
        %924 = vmatmul.mubr.f32.gmra.mxu0 %v800
        %v925 = vpop.f32.mrf.mxu0
        %v926 = vadd.f32 0.0, %v925
        %v927 = vpop.f32.mrf.mxu0
        %928 = vmatprep.mubr.f32.mxu0 0.0
        %929 = vmatmul.mubr.f32.gmra.mxu0 %v803
        %v930 = vpop.f32.mrf.mxu0
        %v931 = vadd.f32 0.0, %v930
        %v932 = vpop.f32.mrf.mxu0
        %933 = vmatprep.mubr.f32.mxu0 0.0
        %934 = vmatmul.mubr.f32.gmra.mxu0 %v806
        %v935 = vpop.f32.mrf.mxu0
        %v936 = vadd.f32 0.0, %v935
        %v937 = vpop.f32.mrf.mxu0
        %938 = vmatprep.mubr.f32.mxu0 0.0
        %939 = vmatmul.mubr.f32.gmra.mxu0 %v809
        %v940 = vpop.f32.mrf.mxu0
        %v941 = vadd.f32 0.0, %v940
        %v942 = vpop.f32.mrf.mxu0
        %943 = vmatprep.mubr.f32.mxu0 0.0
        %944 = vmatmul.mubr.f32.gmra.mxu0 %v812
        %v945 = vpop.f32.mrf.mxu0
        %v946 = vadd.f32 0.0, %v945
        %v947 = vpop.f32.mrf.mxu0
        %948 = vmatprep.mubr.f32.mxu0 0.0
        %949 = vmatmul.mubr.f32.gmra.mxu0 %v815
        %v950 = vpop.f32.mrf.mxu0
        %v951 = vadd.f32 0.0, %v950
        %v952 = vpop.f32.mrf.mxu0
        %953 = vmatprep.mubr.f32.mxu0 0.0
        %954 = vmatmul.mubr.f32.gmra.mxu0 %v818
        %v955 = vpop.f32.mrf.mxu0
        %v956 = vadd.f32 0.0, %v955
        %v957 = vpop.f32.mrf.mxu0
        %958 = vmatprep.mubr.f32.mxu0 0.0
        %959 = vmatmul.mubr.f32.gmra.mxu0 %v821
        %v960 = vpop.f32.mrf.mxu0
        %v961 = vadd.f32 0.0, %v960
        %v962 = vpop.f32.mrf.mxu0
        %963 = vmatprep.mubr.f32.mxu0 0.0
        %964 = vmatmul.mubr.f32.gmra.mxu0 %v824
        %v965 = vpop.f32.mrf.mxu0
        %v966 = vadd.f32 0.0, %v965
        %v967 = vpop.f32.mrf.mxu0
        %968 = vmatprep.mubr.f32.mxu0 0.0
        %969 = vmatmul.mubr.f32.gmra.mxu0 %v827
        %v970 = vpop.f32.mrf.mxu0
        %v971 = vadd.f32 0.0, %v970
        %v972 = vpop.f32.mrf.mxu0
        %973 = vdwg.mxu0
        %v974 = vadd.f32 %v658, %v896
        %v975 = vadd.f32 %v658, %v901
        %v976 = vadd.f32 %v658, %v906
        %v977 = vadd.f32 %v658, %v911
        %v978 = vadd.f32 %v658, %v916
        %v979 = vadd.f32 %v658, %v921
        %v980 = vadd.f32 %v658, %v926
        %v981 = vadd.f32 %v658, %v931
        %v982 = vadd.f32 %v658, %v936
        %v983 = vadd.f32 %v658, %v941
        %v984 = vadd.f32 %v658, %v946
        %v985 = vadd.f32 %v658, %v951
        %v986 = vadd.f32 %v658, %v956
        %v987 = vadd.f32 %v658, %v961
        %v988 = vadd.f32 %v658, %v966
        %v989 = vadd.f32 %v658, %v971
        %v990 = vld [vmem:[%s659 + $0x2] sm:$0xff]
        %v991 = vld [vmem:[%s659 + $0x12] sm:$0xff]
        %v992 = vld [vmem:[%s659 + $0x22] sm:$0xff]
        %v993 = vld [vmem:[%s659 + $0x32] sm:$0xff]
        %v994 = vld [vmem:[%s659 + $0x42] sm:$0xff]
        %v995 = vld [vmem:[%s659 + $0x52] sm:$0xff]
        %v996 = vld [vmem:[%s659 + $0x62] sm:$0xff]
        %v997 = vld [vmem:[%s659 + $0x72] sm:$0xff]
        %v998 = vld [vmem:[%s659 + $0xc2] sm:$0xff]
        %v999 = vld [vmem:[%s659 + $0xd2] sm:$0xff]
        %v1000 = vld [vmem:[%s659 + $0xe2] sm:$0xff]
        %v1001 = vld [vmem:[%s659 + $0xf2] sm:$0xff]
        %v1002 = vld [vmem:[%s659 + $0x102] sm:$0xff]
        %v1003 = vld [vmem:[%s659 + $0x112] sm:$0xff]
        %v1004 = vld [vmem:[%s659 + $0x122] sm:$0xff]
        %v1005 = vld [vmem:[%s659 + $0x132] sm:$0xff]
        %v1006 = vld [vmem:[#allocation2 + $0x2] sm:$0xff]
        %v1007 = vld [vmem:[#allocation2 + $0x12] sm:$0xff]
        %v1008 = vld [vmem:[#allocation2 + $0x22] sm:$0xff]
        %v1009 = vld [vmem:[#allocation2 + $0x32] sm:$0xff]
        %v1010 = vld [vmem:[#allocation2 + $0x42] sm:$0xff]
        %v1011 = vld [vmem:[#allocation2 + $0x52] sm:$0xff]
        %v1012 = vld [vmem:[#allocation2 + $0x62] sm:$0xff]
        %v1013 = vld [vmem:[#allocation2 + $0x72] sm:$0xff]
        %v1014 = vld [vmem:[#allocation2 + $0xc2] sm:$0xff]
        %v1015 = vld [vmem:[#allocation2 + $0xd2] sm:$0xff]
        %v1016 = vld [vmem:[#allocation2 + $0xe2] sm:$0xff]
        %v1017 = vld [vmem:[#allocation2 + $0xf2] sm:$0xff]
        %v1018 = vld [vmem:[#allocation2 + $0x102] sm:$0xff]
        %v1019 = vld [vmem:[#allocation2 + $0x112] sm:$0xff]
        %v1020 = vld [vmem:[#allocation2 + $0x122] sm:$0xff]
        %v1021 = vld [vmem:[#allocation2 + $0x132] sm:$0xff]
        %1038 = vrot.lane.b32.xlu0 %v1006, 32
        %v1039 = vpop.permute.xlu0 %1038
        %1040 = vrot.lane.b32.xlu0 %v1007, 32
        %v1041 = vpop.permute.xlu0 %1040
        %1042 = vrot.lane.b32.xlu0 %v1008, 32
        %v1043 = vpop.permute.xlu0 %1042
        %1044 = vrot.lane.b32.xlu0 %v1009, 32
        %v1045 = vpop.permute.xlu0 %1044
        %1046 = vrot.lane.b32.xlu0 %v1010, 32
        %v1047 = vpop.permute.xlu0 %1046
        %1048 = vrot.lane.b32.xlu0 %v1011, 32
        %v1049 = vpop.permute.xlu0 %1048
        %1050 = vrot.lane.b32.xlu0 %v1012, 32
        %v1051 = vpop.permute.xlu0 %1050
        %1052 = vrot.lane.b32.xlu0 %v1013, 32
        %v1053 = vpop.permute.xlu0 %1052
        %1054 = vrot.lane.b32.xlu0 %v1014, 32
        %v1055 = vpop.permute.xlu0 %1054
        %1056 = vrot.lane.b32.xlu0 %v1015, 32
        %v1057 = vpop.permute.xlu0 %1056
        %1058 = vrot.lane.b32.xlu0 %v1016, 32
        %v1059 = vpop.permute.xlu0 %1058
        %1060 = vrot.lane.b32.xlu0 %v1017, 32
        %v1061 = vpop.permute.xlu0 %1060
        %1062 = vrot.lane.b32.xlu0 %v1018, 32
        %v1063 = vpop.permute.xlu0 %1062
        %1064 = vrot.lane.b32.xlu0 %v1019, 32
        %v1065 = vpop.permute.xlu0 %1064
        %1066 = vrot.lane.b32.xlu0 %v1020, 32
        %v1067 = vpop.permute.xlu0 %1066
        %1068 = vrot.lane.b32.xlu0 %v1021, 32
        %v1069 = vpop.permute.xlu0 %1068
        %v1086 = vsel %vm389, %v990, %v1039
        %v1087 = vsel %vm389, %v991, %v1041
        %v1088 = vsel %vm389, %v992, %v1043
        %v1089 = vsel %vm389, %v993, %v1045
        %v1090 = vsel %vm389, %v994, %v1047
        %v1091 = vsel %vm389, %v995, %v1049
        %v1092 = vsel %vm389, %v996, %v1051
        %v1093 = vsel %vm389, %v997, %v1053
        %v1094 = vsel %vm389, %v998, %v1055
        %v1095 = vsel %vm389, %v999, %v1057
        %v1096 = vsel %vm389, %v1000, %v1059
        %v1097 = vsel %vm389, %v1001, %v1061
        %v1098 = vsel %vm389, %v1002, %v1063
        %v1099 = vsel %vm389, %v1003, %v1065
        %v1100 = vsel %vm389, %v1004, %v1067
        %v1101 = vsel %vm389, %v1005, %v1069
        %s1102 = scalar_lea.vmem %s4, 64
        %v1103 = vld [vmem:[%s1102] sm:$0xff]
        %v1104 = vld [vmem:[%s1102 + $0x8] sm:$0xff]
        %v1105 = vld [vmem:[%s1102 + $0x10] sm:$0xff]
        %v1106 = vld [vmem:[%s1102 + $0x18] sm:$0xff]
        %v1107 = vld [vmem:[%s1102 + $0x20] sm:$0xff]
        %v1108 = vld [vmem:[%s1102 + $0x28] sm:$0xff]
        %v1109 = vld [vmem:[%s1102 + $0x30] sm:$0xff]
        %v1110 = vld [vmem:[%s1102 + $0x38] sm:$0xff]
        %v1112 = vsel %vm780, %v1086, 0
        %v1115 = vsel %vm780, %v1087, 0
        %v1118 = vsel %vm780, %v1088, 0
        %v1121 = vsel %vm780, %v1089, 0
        %v1124 = vsel %vm780, %v1090, 0
        %v1127 = vsel %vm780, %v1091, 0
        %v1130 = vsel %vm780, %v1092, 0
        %v1133 = vsel %vm780, %v1093, 0
        %v1136 = vsel %vm780, %v1094, 0
        %v1139 = vsel %vm780, %v1095, 0
        %v1142 = vsel %vm780, %v1096, 0
        %v1145 = vsel %vm780, %v1097, 0
        %v1148 = vsel %vm780, %v1098, 0
        %v1151 = vsel %vm780, %v1099, 0
        %v1154 = vsel %vm780, %v1100, 0
        %v1157 = vsel %vm780, %v1101, 0
        %1159 = vmatprep.subr.mxu0 0.0
        %1160 = vmatpush1.msra.mxu0 0.0
        %1161 = vmatprep.subr.mxu0 0.0
        %1162 = vmatpush1.msra.mxu0 0.0
        %1163 = vmatprep.subr.mxu0 0.0
        %1164 = vmatpush1.msra.mxu0 0.0
        %1165 = vmatprep.subr.mxu0 0.0
        %1166 = vmatpush1.msra.mxu0 0.0
        %1167 = vmatprep.subr.mxu0 0.0
        %1168 = vmatpush1.msra.mxu0 0.0
        %1169 = vmatprep.subr.mxu0 0.0
        %1170 = vmatpush1.msra.mxu0 0.0
        %1171 = vmatprep.subr.mxu0 0.0
        %1172 = vmatpush1.msra.mxu0 0.0
        %1173 = vmatprep.subr.mxu0 0.0
        %1174 = vmatpush1.msra.mxu0 0.0
        %1175 = vmatprep.subr.mxu0 0.0
        %1176 = vmatpush1.msra.mxu0 %v1110
        %1177 = vmatprep.subr.mxu0 0.0
        %1178 = vmatpush1.msra.mxu0 %v1109
        %1179 = vmatprep.subr.mxu0 0.0
        %1180 = vmatpush1.msra.mxu0 %v1108
        %1181 = vmatprep.subr.mxu0 0.0
        %1182 = vmatpush1.msra.mxu0 %v1107
        %1183 = vmatprep.subr.mxu0 0.0
        %1184 = vmatpush1.msra.mxu0 %v1106
        %1185 = vmatprep.subr.mxu0 0.0
        %1186 = vmatpush1.msra.mxu0 %v1105
        %1187 = vmatprep.subr.mxu0 0.0
        %1188 = vmatpush1.msra.mxu0 %v1104
        %1189 = vmatprep.subr.mxu0 0.0
        %1190 = vmatpush1.msra.mxu0 %v1103
        %1191 = vmatprep.subr.mxu0 0.0
        %1192 = vmatpush2.msra.mxu0 0.0
        %1193 = vmatprep.subr.mxu0 0.0
        %1194 = vmatpush2.msra.mxu0 0.0
        %1195 = vmatprep.subr.mxu0 0.0
        %1196 = vmatpush2.msra.mxu0 0.0
        %1197 = vmatprep.subr.mxu0 0.0
        %1198 = vmatpush2.msra.mxu0 0.0
        %1199 = vmatprep.subr.mxu0 0.0
        %1200 = vmatpush2.msra.mxu0 0.0
        %1201 = vmatprep.subr.mxu0 0.0
        %1202 = vmatpush2.msra.mxu0 0.0
        %1203 = vmatprep.subr.mxu0 0.0
        %1204 = vmatpush2.msra.mxu0 0.0
        %1205 = vmatprep.subr.mxu0 0.0
        %1206 = vmatpush2.msra.mxu0 0.0
        %1207 = vmatprep.subr.mxu0 0.0
        %1208 = vmatpush2.msra.mxu0 0.0
        %1209 = vmatprep.subr.mxu0 0.0
        %1210 = vmatpush2.msra.mxu0 0.0
        %1211 = vmatprep.subr.mxu0 0.0
        %1212 = vmatpush2.msra.mxu0 0.0
        %1213 = vmatprep.subr.mxu0 0.0
        %1214 = vmatpush2.msra.mxu0 0.0
        %1215 = vmatprep.subr.mxu0 0.0
        %1216 = vmatpush2.msra.mxu0 0.0
        %1217 = vmatprep.subr.mxu0 0.0
        %1218 = vmatpush2.msra.mxu0 0.0
        %1219 = vmatprep.subr.mxu0 0.0
        %1220 = vmatpush2.msra.mxu0 0.0
        %1221 = vmatprep.subr.mxu0 0.0
        %1222 = vmatpush2.msra.mxu0 0.0
        %1223 = vmatprep.mubr.f32.mxu0 0.0
        %1224 = vmatmul.mubr.f32.gmra.mxu0 %v1112
        %v1225 = vpop.f32.mrf.mxu0
        %v1226 = vadd.f32 0.0, %v1225
        %v1227 = vpop.f32.mrf.mxu0
        %1228 = vmatprep.mubr.f32.mxu0 0.0
        %1229 = vmatmul.mubr.f32.gmra.mxu0 %v1115
        %v1230 = vpop.f32.mrf.mxu0
        %v1231 = vadd.f32 0.0, %v1230
        %v1232 = vpop.f32.mrf.mxu0
        %1233 = vmatprep.mubr.f32.mxu0 0.0
        %1234 = vmatmul.mubr.f32.gmra.mxu0 %v1118
        %v1235 = vpop.f32.mrf.mxu0
        %v1236 = vadd.f32 0.0, %v1235
        %v1237 = vpop.f32.mrf.mxu0
        %1238 = vmatprep.mubr.f32.mxu0 0.0
        %1239 = vmatmul.mubr.f32.gmra.mxu0 %v1121
        %v1240 = vpop.f32.mrf.mxu0
        %v1241 = vadd.f32 0.0, %v1240
        %v1242 = vpop.f32.mrf.mxu0
        %1243 = vmatprep.mubr.f32.mxu0 0.0
        %1244 = vmatmul.mubr.f32.gmra.mxu0 %v1124
        %v1245 = vpop.f32.mrf.mxu0
        %v1246 = vadd.f32 0.0, %v1245
        %v1247 = vpop.f32.mrf.mxu0
        %1248 = vmatprep.mubr.f32.mxu0 0.0
        %1249 = vmatmul.mubr.f32.gmra.mxu0 %v1127
        %v1250 = vpop.f32.mrf.mxu0
        %v1251 = vadd.f32 0.0, %v1250
        %v1252 = vpop.f32.mrf.mxu0
        %1253 = vmatprep.mubr.f32.mxu0 0.0
        %1254 = vmatmul.mubr.f32.gmra.mxu0 %v1130
        %v1255 = vpop.f32.mrf.mxu0
        %v1256 = vadd.f32 0.0, %v1255
        %v1257 = vpop.f32.mrf.mxu0
        %1258 = vmatprep.mubr.f32.mxu0 0.0
        %1259 = vmatmul.mubr.f32.gmra.mxu0 %v1133
        %v1260 = vpop.f32.mrf.mxu0
        %v1261 = vadd.f32 0.0, %v1260
        %v1262 = vpop.f32.mrf.mxu0
        %1263 = vmatprep.mubr.f32.mxu0 0.0
        %1264 = vmatmul.mubr.f32.gmra.mxu0 %v1136
        %v1265 = vpop.f32.mrf.mxu0
        %v1266 = vadd.f32 0.0, %v1265
        %v1267 = vpop.f32.mrf.mxu0
        %1268 = vmatprep.mubr.f32.mxu0 0.0
        %1269 = vmatmul.mubr.f32.gmra.mxu0 %v1139
        %v1270 = vpop.f32.mrf.mxu0
        %v1271 = vadd.f32 0.0, %v1270
        %v1272 = vpop.f32.mrf.mxu0
        %1273 = vmatprep.mubr.f32.mxu0 0.0
        %1274 = vmatmul.mubr.f32.gmra.mxu0 %v1142
        %v1275 = vpop.f32.mrf.mxu0
        %v1276 = vadd.f32 0.0, %v1275
        %v1277 = vpop.f32.mrf.mxu0
        %1278 = vmatprep.mubr.f32.mxu0 0.0
        %1279 = vmatmul.mubr.f32.gmra.mxu0 %v1145
        %v1280 = vpop.f32.mrf.mxu0
        %v1281 = vadd.f32 0.0, %v1280
        %v1282 = vpop.f32.mrf.mxu0
        %1283 = vmatprep.mubr.f32.mxu0 0.0
        %1284 = vmatmul.mubr.f32.gmra.mxu0 %v1148
        %v1285 = vpop.f32.mrf.mxu0
        %v1286 = vadd.f32 0.0, %v1285
        %v1287 = vpop.f32.mrf.mxu0
        %1288 = vmatprep.mubr.f32.mxu0 0.0
        %1289 = vmatmul.mubr.f32.gmra.mxu0 %v1151
        %v1290 = vpop.f32.mrf.mxu0
        %v1291 = vadd.f32 0.0, %v1290
        %v1292 = vpop.f32.mrf.mxu0
        %1293 = vmatprep.mubr.f32.mxu0 0.0
        %1294 = vmatmul.mubr.f32.gmra.mxu0 %v1154
        %v1295 = vpop.f32.mrf.mxu0
        %v1296 = vadd.f32 0.0, %v1295
        %v1297 = vpop.f32.mrf.mxu0
        %1298 = vmatprep.mubr.f32.mxu0 0.0
        %1299 = vmatmul.mubr.f32.gmra.mxu0 %v1157
        %v1300 = vpop.f32.mrf.mxu0
        %v1301 = vadd.f32 0.0, %v1300
        %v1302 = vpop.f32.mrf.mxu0
        %1303 = vdwg.mxu0
        %v1304 = vadd.f32 %v974, %v1226
        %v1305 = vadd.f32 %v975, %v1231
        %v1306 = vadd.f32 %v976, %v1236
        %v1307 = vadd.f32 %v977, %v1241
        %v1308 = vadd.f32 %v978, %v1246
        %v1309 = vadd.f32 %v979, %v1251
        %v1310 = vadd.f32 %v980, %v1256
        %v1311 = vadd.f32 %v981, %v1261
        %v1312 = vadd.f32 %v982, %v1266
        %v1313 = vadd.f32 %v983, %v1271
        %v1314 = vadd.f32 %v984, %v1276
        %v1315 = vadd.f32 %v985, %v1281
        %v1316 = vadd.f32 %v986, %v1286
        %v1317 = vadd.f32 %v987, %v1291
        %v1318 = vadd.f32 %v988, %v1296
        %v1319 = vadd.f32 %v989, %v1301
        %v1320 = vld [vmem:[%s659 + $0x3] sm:$0xff]
        %v1321 = vld [vmem:[%s659 + $0x13] sm:$0xff]
        %v1322 = vld [vmem:[%s659 + $0x23] sm:$0xff]
        %v1323 = vld [vmem:[%s659 + $0x33] sm:$0xff]
        %v1324 = vld [vmem:[%s659 + $0x43] sm:$0xff]
        %v1325 = vld [vmem:[%s659 + $0x53] sm:$0xff]
        %v1326 = vld [vmem:[%s659 + $0x63] sm:$0xff]
        %v1327 = vld [vmem:[%s659 + $0x73] sm:$0xff]
        %v1328 = vld [vmem:[%s659 + $0xc3] sm:$0xff]
        %v1329 = vld [vmem:[%s659 + $0xd3] sm:$0xff]
        %v1330 = vld [vmem:[%s659 + $0xe3] sm:$0xff]
        %v1331 = vld [vmem:[%s659 + $0xf3] sm:$0xff]
        %v1332 = vld [vmem:[%s659 + $0x103] sm:$0xff]
        %v1333 = vld [vmem:[%s659 + $0x113] sm:$0xff]
        %v1334 = vld [vmem:[%s659 + $0x123] sm:$0xff]
        %v1335 = vld [vmem:[%s659 + $0x133] sm:$0xff]
        %v1336 = vld [vmem:[#allocation2 + $0x4] sm:$0xff]
        %v1337 = vld [vmem:[#allocation2 + $0x14] sm:$0xff]
        %v1338 = vld [vmem:[#allocation2 + $0x24] sm:$0xff]
        %v1339 = vld [vmem:[#allocation2 + $0x34] sm:$0xff]
        %v1340 = vld [vmem:[#allocation2 + $0x44] sm:$0xff]
        %v1341 = vld [vmem:[#allocation2 + $0x54] sm:$0xff]
        %v1342 = vld [vmem:[#allocation2 + $0x64] sm:$0xff]
        %v1343 = vld [vmem:[#allocation2 + $0x74] sm:$0xff]
        %v1344 = vld [vmem:[#allocation2 + $0xc4] sm:$0xff]
        %v1345 = vld [vmem:[#allocation2 + $0xd4] sm:$0xff]
        %v1346 = vld [vmem:[#allocation2 + $0xe4] sm:$0xff]
        %v1347 = vld [vmem:[#allocation2 + $0xf4] sm:$0xff]
        %v1348 = vld [vmem:[#allocation2 + $0x104] sm:$0xff]
        %v1349 = vld [vmem:[#allocation2 + $0x114] sm:$0xff]
        %v1350 = vld [vmem:[#allocation2 + $0x124] sm:$0xff]
        %v1351 = vld [vmem:[#allocation2 + $0x134] sm:$0xff]
        %1368 = vrot.lane.b32.xlu0 %v1336, 32
        %v1369 = vpop.permute.xlu0 %1368
        %1370 = vrot.lane.b32.xlu0 %v1337, 32
        %v1371 = vpop.permute.xlu0 %1370
        %1372 = vrot.lane.b32.xlu0 %v1338, 32
        %v1373 = vpop.permute.xlu0 %1372
        %1374 = vrot.lane.b32.xlu0 %v1339, 32
        %v1375 = vpop.permute.xlu0 %1374
        %1376 = vrot.lane.b32.xlu0 %v1340, 32
        %v1377 = vpop.permute.xlu0 %1376
        %1378 = vrot.lane.b32.xlu0 %v1341, 32
        %v1379 = vpop.permute.xlu0 %1378
        %1380 = vrot.lane.b32.xlu0 %v1342, 32
        %v1381 = vpop.permute.xlu0 %1380
        %1382 = vrot.lane.b32.xlu0 %v1343, 32
        %v1383 = vpop.permute.xlu0 %1382
        %1384 = vrot.lane.b32.xlu0 %v1344, 32
        %v1385 = vpop.permute.xlu0 %1384
        %1386 = vrot.lane.b32.xlu0 %v1345, 32
        %v1387 = vpop.permute.xlu0 %1386
        %1388 = vrot.lane.b32.xlu0 %v1346, 32
        %v1389 = vpop.permute.xlu0 %1388
        %1390 = vrot.lane.b32.xlu0 %v1347, 32
        %v1391 = vpop.permute.xlu0 %1390
        %1392 = vrot.lane.b32.xlu0 %v1348, 32
        %v1393 = vpop.permute.xlu0 %1392
        %1394 = vrot.lane.b32.xlu0 %v1349, 32
        %v1395 = vpop.permute.xlu0 %1394
        %1396 = vrot.lane.b32.xlu0 %v1350, 32
        %v1397 = vpop.permute.xlu0 %1396
        %1398 = vrot.lane.b32.xlu0 %v1351, 32
        %v1399 = vpop.permute.xlu0 %1398
        %v1416 = vsel %vm389, %v1320, %v1369
        %v1417 = vsel %vm389, %v1321, %v1371
        %v1418 = vsel %vm389, %v1322, %v1373
        %v1419 = vsel %vm389, %v1323, %v1375
        %v1420 = vsel %vm389, %v1324, %v1377
        %v1421 = vsel %vm389, %v1325, %v1379
        %v1422 = vsel %vm389, %v1326, %v1381
        %v1423 = vsel %vm389, %v1327, %v1383
        %v1424 = vsel %vm389, %v1328, %v1385
        %v1425 = vsel %vm389, %v1329, %v1387
        %v1426 = vsel %vm389, %v1330, %v1389
        %v1427 = vsel %vm389, %v1331, %v1391
        %v1428 = vsel %vm389, %v1332, %v1393
        %v1429 = vsel %vm389, %v1333, %v1395
        %v1430 = vsel %vm389, %v1334, %v1397
        %v1431 = vsel %vm389, %v1335, %v1399
        %s1432 = scalar_lea.vmem %s4, 128
        %v1433 = vld [vmem:[%s1432] sm:$0xff]
        %v1434 = vld [vmem:[%s1432 + $0x8] sm:$0xff]
        %v1435 = vld [vmem:[%s1432 + $0x10] sm:$0xff]
        %v1436 = vld [vmem:[%s1432 + $0x18] sm:$0xff]
        %v1437 = vld [vmem:[%s1432 + $0x20] sm:$0xff]
        %v1438 = vld [vmem:[%s1432 + $0x28] sm:$0xff]
        %v1439 = vld [vmem:[%s1432 + $0x30] sm:$0xff]
        %v1440 = vld [vmem:[%s1432 + $0x38] sm:$0xff]
        %v1442 = vsel %vm780, %v1416, 0
        %v1445 = vsel %vm780, %v1417, 0
        %v1448 = vsel %vm780, %v1418, 0
        %v1451 = vsel %vm780, %v1419, 0
        %v1454 = vsel %vm780, %v1420, 0
        %v1457 = vsel %vm780, %v1421, 0
        %v1460 = vsel %vm780, %v1422, 0
        %v1463 = vsel %vm780, %v1423, 0
        %v1466 = vsel %vm780, %v1424, 0
        %v1469 = vsel %vm780, %v1425, 0
        %v1472 = vsel %vm780, %v1426, 0
        %v1475 = vsel %vm780, %v1427, 0
        %v1478 = vsel %vm780, %v1428, 0
        %v1481 = vsel %vm780, %v1429, 0
        %v1484 = vsel %vm780, %v1430, 0
        %v1487 = vsel %vm780, %v1431, 0
        %1489 = vmatprep.subr.mxu0 0.0
        %1490 = vmatpush1.msra.mxu0 0.0
        %1491 = vmatprep.subr.mxu0 0.0
        %1492 = vmatpush1.msra.mxu0 0.0
        %1493 = vmatprep.subr.mxu0 0.0
        %1494 = vmatpush1.msra.mxu0 0.0
        %1495 = vmatprep.subr.mxu0 0.0
        %1496 = vmatpush1.msra.mxu0 0.0
        %1497 = vmatprep.subr.mxu0 0.0
        %1498 = vmatpush1.msra.mxu0 0.0
        %1499 = vmatprep.subr.mxu0 0.0
        %1500 = vmatpush1.msra.mxu0 0.0
        %1501 = vmatprep.subr.mxu0 0.0
        %1502 = vmatpush1.msra.mxu0 0.0
        %1503 = vmatprep.subr.mxu0 0.0
        %1504 = vmatpush1.msra.mxu0 0.0
        %1505 = vmatprep.subr.mxu0 0.0
        %1506 = vmatpush1.msra.mxu0 %v1440
        %1507 = vmatprep.subr.mxu0 0.0
        %1508 = vmatpush1.msra.mxu0 %v1439
        %1509 = vmatprep.subr.mxu0 0.0
        %1510 = vmatpush1.msra.mxu0 %v1438
        %1511 = vmatprep.subr.mxu0 0.0
        %1512 = vmatpush1.msra.mxu0 %v1437
        %1513 = vmatprep.subr.mxu0 0.0
        %1514 = vmatpush1.msra.mxu0 %v1436
        %1515 = vmatprep.subr.mxu0 0.0
        %1516 = vmatpush1.msra.mxu0 %v1435
        %1517 = vmatprep.subr.mxu0 0.0
        %1518 = vmatpush1.msra.mxu0 %v1434
        %1519 = vmatprep.subr.mxu0 0.0
        %1520 = vmatpush1.msra.mxu0 %v1433
        %1521 = vmatprep.subr.mxu0 0.0
        %1522 = vmatpush2.msra.mxu0 0.0
        %1523 = vmatprep.subr.mxu0 0.0
        %1524 = vmatpush2.msra.mxu0 0.0
        %1525 = vmatprep.subr.mxu0 0.0
        %1526 = vmatpush2.msra.mxu0 0.0
        %1527 = vmatprep.subr.mxu0 0.0
        %1528 = vmatpush2.msra.mxu0 0.0
        %1529 = vmatprep.subr.mxu0 0.0
        %1530 = vmatpush2.msra.mxu0 0.0
        %1531 = vmatprep.subr.mxu0 0.0
        %1532 = vmatpush2.msra.mxu0 0.0
        %1533 = vmatprep.subr.mxu0 0.0
        %1534 = vmatpush2.msra.mxu0 0.0
        %1535 = vmatprep.subr.mxu0 0.0
        %1536 = vmatpush2.msra.mxu0 0.0
        %1537 = vmatprep.subr.mxu0 0.0
        %1538 = vmatpush2.msra.mxu0 0.0
        %1539 = vmatprep.subr.mxu0 0.0
        %1540 = vmatpush2.msra.mxu0 0.0
        %1541 = vmatprep.subr.mxu0 0.0
        %1542 = vmatpush2.msra.mxu0 0.0
        %1543 = vmatprep.subr.mxu0 0.0
        %1544 = vmatpush2.msra.mxu0 0.0
        %1545 = vmatprep.subr.mxu0 0.0
        %1546 = vmatpush2.msra.mxu0 0.0
        %1547 = vmatprep.subr.mxu0 0.0
        %1548 = vmatpush2.msra.mxu0 0.0
        %1549 = vmatprep.subr.mxu0 0.0
        %1550 = vmatpush2.msra.mxu0 0.0
        %1551 = vmatprep.subr.mxu0 0.0
        %1552 = vmatpush2.msra.mxu0 0.0
        %1553 = vmatprep.mubr.f32.mxu0 0.0
        %1554 = vmatmul.mubr.f32.gmra.mxu0 %v1442
        %v1555 = vpop.f32.mrf.mxu0
        %v1556 = vadd.f32 0.0, %v1555
        %v1557 = vpop.f32.mrf.mxu0
        %1558 = vmatprep.mubr.f32.mxu0 0.0
        %1559 = vmatmul.mubr.f32.gmra.mxu0 %v1445
        %v1560 = vpop.f32.mrf.mxu0
        %v1561 = vadd.f32 0.0, %v1560
        %v1562 = vpop.f32.mrf.mxu0
        %1563 = vmatprep.mubr.f32.mxu0 0.0
        %1564 = vmatmul.mubr.f32.gmra.mxu0 %v1448
        %v1565 = vpop.f32.mrf.mxu0
        %v1566 = vadd.f32 0.0, %v1565
        %v1567 = vpop.f32.mrf.mxu0
        %1568 = vmatprep.mubr.f32.mxu0 0.0
        %1569 = vmatmul.mubr.f32.gmra.mxu0 %v1451
        %v1570 = vpop.f32.mrf.mxu0
        %v1571 = vadd.f32 0.0, %v1570
        %v1572 = vpop.f32.mrf.mxu0
        %1573 = vmatprep.mubr.f32.mxu0 0.0
        %1574 = vmatmul.mubr.f32.gmra.mxu0 %v1454
        %v1575 = vpop.f32.mrf.mxu0
        %v1576 = vadd.f32 0.0, %v1575
        %v1577 = vpop.f32.mrf.mxu0
        %1578 = vmatprep.mubr.f32.mxu0 0.0
        %1579 = vmatmul.mubr.f32.gmra.mxu0 %v1457
        %v1580 = vpop.f32.mrf.mxu0
        %v1581 = vadd.f32 0.0, %v1580
        %v1582 = vpop.f32.mrf.mxu0
        %1583 = vmatprep.mubr.f32.mxu0 0.0
        %1584 = vmatmul.mubr.f32.gmra.mxu0 %v1460
        %v1585 = vpop.f32.mrf.mxu0
        %v1586 = vadd.f32 0.0, %v1585
        %v1587 = vpop.f32.mrf.mxu0
        %1588 = vmatprep.mubr.f32.mxu0 0.0
        %1589 = vmatmul.mubr.f32.gmra.mxu0 %v1463
        %v1590 = vpop.f32.mrf.mxu0
        %v1591 = vadd.f32 0.0, %v1590
        %v1592 = vpop.f32.mrf.mxu0
        %1593 = vmatprep.mubr.f32.mxu0 0.0
        %1594 = vmatmul.mubr.f32.gmra.mxu0 %v1466
        %v1595 = vpop.f32.mrf.mxu0
        %v1596 = vadd.f32 0.0, %v1595
        %v1597 = vpop.f32.mrf.mxu0
        %1598 = vmatprep.mubr.f32.mxu0 0.0
        %1599 = vmatmul.mubr.f32.gmra.mxu0 %v1469
        %v1600 = vpop.f32.mrf.mxu0
        %v1601 = vadd.f32 0.0, %v1600
        %v1602 = vpop.f32.mrf.mxu0
        %1603 = vmatprep.mubr.f32.mxu0 0.0
        %1604 = vmatmul.mubr.f32.gmra.mxu0 %v1472
        %v1605 = vpop.f32.mrf.mxu0
        %v1606 = vadd.f32 0.0, %v1605
        %v1607 = vpop.f32.mrf.mxu0
        %1608 = vmatprep.mubr.f32.mxu0 0.0
        %1609 = vmatmul.mubr.f32.gmra.mxu0 %v1475
        %v1610 = vpop.f32.mrf.mxu0
        %v1611 = vadd.f32 0.0, %v1610
        %v1612 = vpop.f32.mrf.mxu0
        %1613 = vmatprep.mubr.f32.mxu0 0.0
        %1614 = vmatmul.mubr.f32.gmra.mxu0 %v1478
        %v1615 = vpop.f32.mrf.mxu0
        %v1616 = vadd.f32 0.0, %v1615
        %v1617 = vpop.f32.mrf.mxu0
        %1618 = vmatprep.mubr.f32.mxu0 0.0
        %1619 = vmatmul.mubr.f32.gmra.mxu0 %v1481
        %v1620 = vpop.f32.mrf.mxu0
        %v1621 = vadd.f32 0.0, %v1620
        %v1622 = vpop.f32.mrf.mxu0
        %1623 = vmatprep.mubr.f32.mxu0 0.0
        %1624 = vmatmul.mubr.f32.gmra.mxu0 %v1484
        %v1625 = vpop.f32.mrf.mxu0
        %v1626 = vadd.f32 0.0, %v1625
        %v1627 = vpop.f32.mrf.mxu0
        %1628 = vmatprep.mubr.f32.mxu0 0.0
        %1629 = vmatmul.mubr.f32.gmra.mxu0 %v1487
        %v1630 = vpop.f32.mrf.mxu0
        %v1631 = vadd.f32 0.0, %v1630
        %v1632 = vpop.f32.mrf.mxu0
        %1633 = vdwg.mxu0
        %v1634 = vadd.f32 %v1304, %v1556
        %v1635 = vadd.f32 %v1305, %v1561
        %v1636 = vadd.f32 %v1306, %v1566
        %v1637 = vadd.f32 %v1307, %v1571
        %v1638 = vadd.f32 %v1308, %v1576
        %v1639 = vadd.f32 %v1309, %v1581
        %v1640 = vadd.f32 %v1310, %v1586
        %v1641 = vadd.f32 %v1311, %v1591
        %v1642 = vadd.f32 %v1312, %v1596
        %v1643 = vadd.f32 %v1313, %v1601
        %v1644 = vadd.f32 %v1314, %v1606
        %v1645 = vadd.f32 %v1315, %v1611
        %v1646 = vadd.f32 %v1316, %v1616
        %v1647 = vadd.f32 %v1317, %v1621
        %v1648 = vadd.f32 %v1318, %v1626
        %v1649 = vadd.f32 %v1319, %v1631
        %v1650 = vld [vmem:[%s601 + $0x1] sm:$0xff]
        %v1651 = vld [vmem:[%s601 + $0x11] sm:$0xff]
        %v1652 = vld [vmem:[%s601 + $0x21] sm:$0xff]
        %v1653 = vld [vmem:[%s601 + $0x31] sm:$0xff]
        %v1654 = vld [vmem:[%s601 + $0x41] sm:$0xff]
        %v1655 = vld [vmem:[%s601 + $0x51] sm:$0xff]
        %v1656 = vld [vmem:[%s601 + $0x61] sm:$0xff]
        %v1657 = vld [vmem:[%s601 + $0x71] sm:$0xff]
        %v1658 = vld [vmem:[%s601 + $0xc1] sm:$0xff]
        %v1659 = vld [vmem:[%s601 + $0xd1] sm:$0xff]
        %v1660 = vld [vmem:[%s601 + $0xe1] sm:$0xff]
        %v1661 = vld [vmem:[%s601 + $0xf1] sm:$0xff]
        %v1662 = vld [vmem:[%s601 + $0x101] sm:$0xff]
        %v1663 = vld [vmem:[%s601 + $0x111] sm:$0xff]
        %v1664 = vld [vmem:[%s601 + $0x121] sm:$0xff]
        %v1665 = vld [vmem:[%s601 + $0x131] sm:$0xff]
        %v1666 = vld [vmem:[%s601] sm:$0xff]
        %v1667 = vld [vmem:[%s601 + $0x10] sm:$0xff]
        %v1668 = vld [vmem:[%s601 + $0x20] sm:$0xff]
        %v1669 = vld [vmem:[%s601 + $0x30] sm:$0xff]
        %v1670 = vld [vmem:[%s601 + $0x40] sm:$0xff]
        %v1671 = vld [vmem:[%s601 + $0x50] sm:$0xff]
        %v1672 = vld [vmem:[%s601 + $0x60] sm:$0xff]
        %v1673 = vld [vmem:[%s601 + $0x70] sm:$0xff]
        %v1674 = vld [vmem:[%s601 + $0xc0] sm:$0xff]
        %v1675 = vld [vmem:[%s601 + $0xd0] sm:$0xff]
        %v1676 = vld [vmem:[%s601 + $0xe0] sm:$0xff]
        %v1677 = vld [vmem:[%s601 + $0xf0] sm:$0xff]
        %v1678 = vld [vmem:[%s601 + $0x100] sm:$0xff]
        %v1679 = vld [vmem:[%s601 + $0x110] sm:$0xff]
        %v1680 = vld [vmem:[%s601 + $0x120] sm:$0xff]
        %v1681 = vld [vmem:[%s601 + $0x130] sm:$0xff]
        %1698 = vrot.lane.b32.xlu0 %v1666, 32
        %v1699 = vpop.permute.xlu0 %1698
        %1700 = vrot.lane.b32.xlu0 %v1667, 32
        %v1701 = vpop.permute.xlu0 %1700
        %1702 = vrot.lane.b32.xlu0 %v1668, 32
        %v1703 = vpop.permute.xlu0 %1702
        %1704 = vrot.lane.b32.xlu0 %v1669, 32
        %v1705 = vpop.permute.xlu0 %1704
        %1706 = vrot.lane.b32.xlu0 %v1670, 32
        %v1707 = vpop.permute.xlu0 %1706
        %1708 = vrot.lane.b32.xlu0 %v1671, 32
        %v1709 = vpop.permute.xlu0 %1708
        %1710 = vrot.lane.b32.xlu0 %v1672, 32
        %v1711 = vpop.permute.xlu0 %1710
        %1712 = vrot.lane.b32.xlu0 %v1673, 32
        %v1713 = vpop.permute.xlu0 %1712
        %1714 = vrot.lane.b32.xlu0 %v1674, 32
        %v1715 = vpop.permute.xlu0 %1714
        %1716 = vrot.lane.b32.xlu0 %v1675, 32
        %v1717 = vpop.permute.xlu0 %1716
        %1718 = vrot.lane.b32.xlu0 %v1676, 32
        %v1719 = vpop.permute.xlu0 %1718
        %1720 = vrot.lane.b32.xlu0 %v1677, 32
        %v1721 = vpop.permute.xlu0 %1720
        %1722 = vrot.lane.b32.xlu0 %v1678, 32
        %v1723 = vpop.permute.xlu0 %1722
        %1724 = vrot.lane.b32.xlu0 %v1679, 32
        %v1725 = vpop.permute.xlu0 %1724
        %1726 = vrot.lane.b32.xlu0 %v1680, 32
        %v1727 = vpop.permute.xlu0 %1726
        %1728 = vrot.lane.b32.xlu0 %v1681, 32
        %v1729 = vpop.permute.xlu0 %1728
        %v1746 = vsel %vm389, %v1650, %v1699
        %v1747 = vsel %vm389, %v1651, %v1701
        %v1748 = vsel %vm389, %v1652, %v1703
        %v1749 = vsel %vm389, %v1653, %v1705
        %v1750 = vsel %vm389, %v1654, %v1707
        %v1751 = vsel %vm389, %v1655, %v1709
        %v1752 = vsel %vm389, %v1656, %v1711
        %v1753 = vsel %vm389, %v1657, %v1713
        %v1754 = vsel %vm389, %v1658, %v1715
        %v1755 = vsel %vm389, %v1659, %v1717
        %v1756 = vsel %vm389, %v1660, %v1719
        %v1757 = vsel %vm389, %v1661, %v1721
        %v1758 = vsel %vm389, %v1662, %v1723
        %v1759 = vsel %vm389, %v1663, %v1725
        %v1760 = vsel %vm389, %v1664, %v1727
        %v1761 = vsel %vm389, %v1665, %v1729
        %s1762 = scalar_lea.vmem %s4, 192
        %v1763 = vld [vmem:[%s1762] sm:$0xff]
        %v1764 = vld [vmem:[%s1762 + $0x8] sm:$0xff]
        %v1765 = vld [vmem:[%s1762 + $0x10] sm:$0xff]
        %v1766 = vld [vmem:[%s1762 + $0x18] sm:$0xff]
        %v1767 = vld [vmem:[%s1762 + $0x20] sm:$0xff]
        %v1768 = vld [vmem:[%s1762 + $0x28] sm:$0xff]
        %v1769 = vld [vmem:[%s1762 + $0x30] sm:$0xff]
        %v1770 = vld [vmem:[%s1762 + $0x38] sm:$0xff]
        %v1772 = vsel %vm780, %v1746, 0
        %v1775 = vsel %vm780, %v1747, 0
        %v1778 = vsel %vm780, %v1748, 0
        %v1781 = vsel %vm780, %v1749, 0
        %v1784 = vsel %vm780, %v1750, 0
        %v1787 = vsel %vm780, %v1751, 0
        %v1790 = vsel %vm780, %v1752, 0
        %v1793 = vsel %vm780, %v1753, 0
        %v1796 = vsel %vm780, %v1754, 0
        %v1799 = vsel %vm780, %v1755, 0
        %v1802 = vsel %vm780, %v1756, 0
        %v1805 = vsel %vm780, %v1757, 0
        %v1808 = vsel %vm780, %v1758, 0
        %v1811 = vsel %vm780, %v1759, 0
        %v1814 = vsel %vm780, %v1760, 0
        %v1817 = vsel %vm780, %v1761, 0
        %1819 = vmatprep.subr.mxu0 0.0
        %1820 = vmatpush1.msra.mxu0 0.0
        %1821 = vmatprep.subr.mxu0 0.0
        %1822 = vmatpush1.msra.mxu0 0.0
        %1823 = vmatprep.subr.mxu0 0.0
        %1824 = vmatpush1.msra.mxu0 0.0
        %1825 = vmatprep.subr.mxu0 0.0
        %1826 = vmatpush1.msra.mxu0 0.0
        %1827 = vmatprep.subr.mxu0 0.0
        %1828 = vmatpush1.msra.mxu0 0.0
        %1829 = vmatprep.subr.mxu0 0.0
        %1830 = vmatpush1.msra.mxu0 0.0
        %1831 = vmatprep.subr.mxu0 0.0
        %1832 = vmatpush1.msra.mxu0 0.0
        %1833 = vmatprep.subr.mxu0 0.0
        %1834 = vmatpush1.msra.mxu0 0.0
        %1835 = vmatprep.subr.mxu0 0.0
        %1836 = vmatpush1.msra.mxu0 %v1770
        %1837 = vmatprep.subr.mxu0 0.0
        %1838 = vmatpush1.msra.mxu0 %v1769
        %1839 = vmatprep.subr.mxu0 0.0
        %1840 = vmatpush1.msra.mxu0 %v1768
        %1841 = vmatprep.subr.mxu0 0.0
        %1842 = vmatpush1.msra.mxu0 %v1767
        %1843 = vmatprep.subr.mxu0 0.0
        %1844 = vmatpush1.msra.mxu0 %v1766
        %1845 = vmatprep.subr.mxu0 0.0
        %1846 = vmatpush1.msra.mxu0 %v1765
        %1847 = vmatprep.subr.mxu0 0.0
        %1848 = vmatpush1.msra.mxu0 %v1764
        %1849 = vmatprep.subr.mxu0 0.0
        %1850 = vmatpush1.msra.mxu0 %v1763
        %1851 = vmatprep.subr.mxu0 0.0
        %1852 = vmatpush2.msra.mxu0 0.0
        %1853 = vmatprep.subr.mxu0 0.0
        %1854 = vmatpush2.msra.mxu0 0.0
        %1855 = vmatprep.subr.mxu0 0.0
        %1856 = vmatpush2.msra.mxu0 0.0
        %1857 = vmatprep.subr.mxu0 0.0
        %1858 = vmatpush2.msra.mxu0 0.0
        %1859 = vmatprep.subr.mxu0 0.0
        %1860 = vmatpush2.msra.mxu0 0.0
        %1861 = vmatprep.subr.mxu0 0.0
        %1862 = vmatpush2.msra.mxu0 0.0
        %1863 = vmatprep.subr.mxu0 0.0
        %1864 = vmatpush2.msra.mxu0 0.0
        %1865 = vmatprep.subr.mxu0 0.0
        %1866 = vmatpush2.msra.mxu0 0.0
        %1867 = vmatprep.subr.mxu0 0.0
        %1868 = vmatpush2.msra.mxu0 0.0
        %1869 = vmatprep.subr.mxu0 0.0
        %1870 = vmatpush2.msra.mxu0 0.0
        %1871 = vmatprep.subr.mxu0 0.0
        %1872 = vmatpush2.msra.mxu0 0.0
        %1873 = vmatprep.subr.mxu0 0.0
        %1874 = vmatpush2.msra.mxu0 0.0
        %1875 = vmatprep.subr.mxu0 0.0
        %1876 = vmatpush2.msra.mxu0 0.0
        %1877 = vmatprep.subr.mxu0 0.0
        %1878 = vmatpush2.msra.mxu0 0.0
        %1879 = vmatprep.subr.mxu0 0.0
        %1880 = vmatpush2.msra.mxu0 0.0
        %1881 = vmatprep.subr.mxu0 0.0
        %1882 = vmatpush2.msra.mxu0 0.0
        %1883 = vmatprep.mubr.f32.mxu0 0.0
        %1884 = vmatmul.mubr.f32.gmra.mxu0 %v1772
        %v1885 = vpop.f32.mrf.mxu0
        %v1886 = vadd.f32 0.0, %v1885
        %v1887 = vpop.f32.mrf.mxu0
        %1888 = vmatprep.mubr.f32.mxu0 0.0
        %1889 = vmatmul.mubr.f32.gmra.mxu0 %v1775
        %v1890 = vpop.f32.mrf.mxu0
        %v1891 = vadd.f32 0.0, %v1890
        %v1892 = vpop.f32.mrf.mxu0
        %1893 = vmatprep.mubr.f32.mxu0 0.0
        %1894 = vmatmul.mubr.f32.gmra.mxu0 %v1778
        %v1895 = vpop.f32.mrf.mxu0
        %v1896 = vadd.f32 0.0, %v1895
        %v1897 = vpop.f32.mrf.mxu0
        %1898 = vmatprep.mubr.f32.mxu0 0.0
        %1899 = vmatmul.mubr.f32.gmra.mxu0 %v1781
        %v1900 = vpop.f32.mrf.mxu0
        %v1901 = vadd.f32 0.0, %v1900
        %v1902 = vpop.f32.mrf.mxu0
        %1903 = vmatprep.mubr.f32.mxu0 0.0
        %1904 = vmatmul.mubr.f32.gmra.mxu0 %v1784
        %v1905 = vpop.f32.mrf.mxu0
        %v1906 = vadd.f32 0.0, %v1905
        %v1907 = vpop.f32.mrf.mxu0
        %1908 = vmatprep.mubr.f32.mxu0 0.0
        %1909 = vmatmul.mubr.f32.gmra.mxu0 %v1787
        %v1910 = vpop.f32.mrf.mxu0
        %v1911 = vadd.f32 0.0, %v1910
        %v1912 = vpop.f32.mrf.mxu0
        %1913 = vmatprep.mubr.f32.mxu0 0.0
        %1914 = vmatmul.mubr.f32.gmra.mxu0 %v1790
        %v1915 = vpop.f32.mrf.mxu0
        %v1916 = vadd.f32 0.0, %v1915
        %v1917 = vpop.f32.mrf.mxu0
        %1918 = vmatprep.mubr.f32.mxu0 0.0
        %1919 = vmatmul.mubr.f32.gmra.mxu0 %v1793
        %v1920 = vpop.f32.mrf.mxu0
        %v1921 = vadd.f32 0.0, %v1920
        %v1922 = vpop.f32.mrf.mxu0
        %1923 = vmatprep.mubr.f32.mxu0 0.0
        %1924 = vmatmul.mubr.f32.gmra.mxu0 %v1796
        %v1925 = vpop.f32.mrf.mxu0
        %v1926 = vadd.f32 0.0, %v1925
        %v1927 = vpop.f32.mrf.mxu0
        %1928 = vmatprep.mubr.f32.mxu0 0.0
        %1929 = vmatmul.mubr.f32.gmra.mxu0 %v1799
        %v1930 = vpop.f32.mrf.mxu0
        %v1931 = vadd.f32 0.0, %v1930
        %v1932 = vpop.f32.mrf.mxu0
        %1933 = vmatprep.mubr.f32.mxu0 0.0
        %1934 = vmatmul.mubr.f32.gmra.mxu0 %v1802
        %v1935 = vpop.f32.mrf.mxu0
        %v1936 = vadd.f32 0.0, %v1935
        %v1937 = vpop.f32.mrf.mxu0
        %1938 = vmatprep.mubr.f32.mxu0 0.0
        %1939 = vmatmul.mubr.f32.gmra.mxu0 %v1805
        %v1940 = vpop.f32.mrf.mxu0
        %v1941 = vadd.f32 0.0, %v1940
        %v1942 = vpop.f32.mrf.mxu0
        %1943 = vmatprep.mubr.f32.mxu0 0.0
        %1944 = vmatmul.mubr.f32.gmra.mxu0 %v1808
        %v1945 = vpop.f32.mrf.mxu0
        %v1946 = vadd.f32 0.0, %v1945
        %v1947 = vpop.f32.mrf.mxu0
        %1948 = vmatprep.mubr.f32.mxu0 0.0
        %1949 = vmatmul.mubr.f32.gmra.mxu0 %v1811
        %v1950 = vpop.f32.mrf.mxu0
        %v1951 = vadd.f32 0.0, %v1950
        %v1952 = vpop.f32.mrf.mxu0
        %1953 = vmatprep.mubr.f32.mxu0 0.0
        %1954 = vmatmul.mubr.f32.gmra.mxu0 %v1814
        %v1955 = vpop.f32.mrf.mxu0
        %v1956 = vadd.f32 0.0, %v1955
        %v1957 = vpop.f32.mrf.mxu0
        %1958 = vmatprep.mubr.f32.mxu0 0.0
        %1959 = vmatmul.mubr.f32.gmra.mxu0 %v1817
        %v1960 = vpop.f32.mrf.mxu0
        %v1961 = vadd.f32 0.0, %v1960
        %v1962 = vpop.f32.mrf.mxu0
        %1963 = vdwg.mxu0
        %v1964 = vadd.f32 %v1634, %v1886
        %v1965 = vadd.f32 %v1635, %v1891
        %v1966 = vadd.f32 %v1636, %v1896
        %v1967 = vadd.f32 %v1637, %v1901
        %v1968 = vadd.f32 %v1638, %v1906
        %v1969 = vadd.f32 %v1639, %v1911
        %v1970 = vadd.f32 %v1640, %v1916
        %v1971 = vadd.f32 %v1641, %v1921
        %v1972 = vadd.f32 %v1642, %v1926
        %v1973 = vadd.f32 %v1643, %v1931
        %v1974 = vadd.f32 %v1644, %v1936
        %v1975 = vadd.f32 %v1645, %v1941
        %v1976 = vadd.f32 %v1646, %v1946
        %v1977 = vadd.f32 %v1647, %v1951
        %v1978 = vadd.f32 %v1648, %v1956
        %v1979 = vadd.f32 %v1649, %v1961
        %v1980 = vld [vmem:[%s601 + $0x2] sm:$0xff]
        %v1981 = vld [vmem:[%s601 + $0x12] sm:$0xff]
        %v1982 = vld [vmem:[%s601 + $0x22] sm:$0xff]
        %v1983 = vld [vmem:[%s601 + $0x32] sm:$0xff]
        %v1984 = vld [vmem:[%s601 + $0x42] sm:$0xff]
        %v1985 = vld [vmem:[%s601 + $0x52] sm:$0xff]
        %v1986 = vld [vmem:[%s601 + $0x62] sm:$0xff]
        %v1987 = vld [vmem:[%s601 + $0x72] sm:$0xff]
        %v1988 = vld [vmem:[%s601 + $0xc2] sm:$0xff]
        %v1989 = vld [vmem:[%s601 + $0xd2] sm:$0xff]
        %v1990 = vld [vmem:[%s601 + $0xe2] sm:$0xff]
        %v1991 = vld [vmem:[%s601 + $0xf2] sm:$0xff]
        %v1992 = vld [vmem:[%s601 + $0x102] sm:$0xff]
        %v1993 = vld [vmem:[%s601 + $0x112] sm:$0xff]
        %v1994 = vld [vmem:[%s601 + $0x122] sm:$0xff]
        %v1995 = vld [vmem:[%s601 + $0x132] sm:$0xff]
        %2012 = vrot.lane.b32.xlu0 %v1980, 32
        %v2013 = vpop.permute.xlu0 %2012
        %2014 = vrot.lane.b32.xlu0 %v1981, 32
        %v2015 = vpop.permute.xlu0 %2014
        %2016 = vrot.lane.b32.xlu0 %v1982, 32
        %v2017 = vpop.permute.xlu0 %2016
        %2018 = vrot.lane.b32.xlu0 %v1983, 32
        %v2019 = vpop.permute.xlu0 %2018
        %2020 = vrot.lane.b32.xlu0 %v1984, 32
        %v2021 = vpop.permute.xlu0 %2020
        %2022 = vrot.lane.b32.xlu0 %v1985, 32
        %v2023 = vpop.permute.xlu0 %2022
        %2024 = vrot.lane.b32.xlu0 %v1986, 32
        %v2025 = vpop.permute.xlu0 %2024
        %2026 = vrot.lane.b32.xlu0 %v1987, 32
        %v2027 = vpop.permute.xlu0 %2026
        %2028 = vrot.lane.b32.xlu0 %v1988, 32
        %v2029 = vpop.permute.xlu0 %2028
        %2030 = vrot.lane.b32.xlu0 %v1989, 32
        %v2031 = vpop.permute.xlu0 %2030
        %2032 = vrot.lane.b32.xlu0 %v1990, 32
        %v2033 = vpop.permute.xlu0 %2032
        %2034 = vrot.lane.b32.xlu0 %v1991, 32
        %v2035 = vpop.permute.xlu0 %2034
        %2036 = vrot.lane.b32.xlu0 %v1992, 32
        %v2037 = vpop.permute.xlu0 %2036
        %2038 = vrot.lane.b32.xlu0 %v1993, 32
        %v2039 = vpop.permute.xlu0 %2038
        %2040 = vrot.lane.b32.xlu0 %v1994, 32
        %v2041 = vpop.permute.xlu0 %2040
        %2042 = vrot.lane.b32.xlu0 %v1995, 32
        %v2043 = vpop.permute.xlu0 %2042
        %v2060 = vsel %vm389, %v1980, %v2013
        %v2061 = vsel %vm389, %v1981, %v2015
        %v2062 = vsel %vm389, %v1982, %v2017
        %v2063 = vsel %vm389, %v1983, %v2019
        %v2064 = vsel %vm389, %v1984, %v2021
        %v2065 = vsel %vm389, %v1985, %v2023
        %v2066 = vsel %vm389, %v1986, %v2025
        %v2067 = vsel %vm389, %v1987, %v2027
        %v2068 = vsel %vm389, %v1988, %v2029
        %v2069 = vsel %vm389, %v1989, %v2031
        %v2070 = vsel %vm389, %v1990, %v2033
        %v2071 = vsel %vm389, %v1991, %v2035
        %v2072 = vsel %vm389, %v1992, %v2037
        %v2073 = vsel %vm389, %v1993, %v2039
        %v2074 = vsel %vm389, %v1994, %v2041
        %v2075 = vsel %vm389, %v1995, %v2043
        %s2076 = scalar_lea.vmem %s4, 256
        %v2077 = vld [vmem:[%s2076] sm:$0xff]
        %v2078 = vld [vmem:[%s2076 + $0x8] sm:$0xff]
        %v2079 = vld [vmem:[%s2076 + $0x10] sm:$0xff]
        %v2080 = vld [vmem:[%s2076 + $0x18] sm:$0xff]
        %v2081 = vld [vmem:[%s2076 + $0x20] sm:$0xff]
        %v2082 = vld [vmem:[%s2076 + $0x28] sm:$0xff]
        %v2083 = vld [vmem:[%s2076 + $0x30] sm:$0xff]
        %v2084 = vld [vmem:[%s2076 + $0x38] sm:$0xff]
        %v2086 = vsel %vm780, %v2060, 0
        %v2089 = vsel %vm780, %v2061, 0
        %v2092 = vsel %vm780, %v2062, 0
        %v2095 = vsel %vm780, %v2063, 0
        %v2098 = vsel %vm780, %v2064, 0
        %v2101 = vsel %vm780, %v2065, 0
        %v2104 = vsel %vm780, %v2066, 0
        %v2107 = vsel %vm780, %v2067, 0
        %v2110 = vsel %vm780, %v2068, 0
        %v2113 = vsel %vm780, %v2069, 0
        %v2116 = vsel %vm780, %v2070, 0
        %v2119 = vsel %vm780, %v2071, 0
        %v2122 = vsel %vm780, %v2072, 0
        %v2125 = vsel %vm780, %v2073, 0
        %v2128 = vsel %vm780, %v2074, 0
        %v2131 = vsel %vm780, %v2075, 0
        %2133 = vmatprep.subr.mxu0 0.0
        %2134 = vmatpush1.msra.mxu0 0.0
        %2135 = vmatprep.subr.mxu0 0.0
        %2136 = vmatpush1.msra.mxu0 0.0
        %2137 = vmatprep.subr.mxu0 0.0
        %2138 = vmatpush1.msra.mxu0 0.0
        %2139 = vmatprep.subr.mxu0 0.0
        %2140 = vmatpush1.msra.mxu0 0.0
        %2141 = vmatprep.subr.mxu0 0.0
        %2142 = vmatpush1.msra.mxu0 0.0
        %2143 = vmatprep.subr.mxu0 0.0
        %2144 = vmatpush1.msra.mxu0 0.0
        %2145 = vmatprep.subr.mxu0 0.0
        %2146 = vmatpush1.msra.mxu0 0.0
        %2147 = vmatprep.subr.mxu0 0.0
        %2148 = vmatpush1.msra.mxu0 0.0
        %2149 = vmatprep.subr.mxu0 0.0
        %2150 = vmatpush1.msra.mxu0 %v2084
        %2151 = vmatprep.subr.mxu0 0.0
        %2152 = vmatpush1.msra.mxu0 %v2083
        %2153 = vmatprep.subr.mxu0 0.0
        %2154 = vmatpush1.msra.mxu0 %v2082
        %2155 = vmatprep.subr.mxu0 0.0
        %2156 = vmatpush1.msra.mxu0 %v2081
        %2157 = vmatprep.subr.mxu0 0.0
        %2158 = vmatpush1.msra.mxu0 %v2080
        %2159 = vmatprep.subr.mxu0 0.0
        %2160 = vmatpush1.msra.mxu0 %v2079
        %2161 = vmatprep.subr.mxu0 0.0
        %2162 = vmatpush1.msra.mxu0 %v2078
        %2163 = vmatprep.subr.mxu0 0.0
        %2164 = vmatpush1.msra.mxu0 %v2077
        %2165 = vmatprep.subr.mxu0 0.0
        %2166 = vmatpush2.msra.mxu0 0.0
        %2167 = vmatprep.subr.mxu0 0.0
        %2168 = vmatpush2.msra.mxu0 0.0
        %2169 = vmatprep.subr.mxu0 0.0
        %2170 = vmatpush2.msra.mxu0 0.0
        %2171 = vmatprep.subr.mxu0 0.0
        %2172 = vmatpush2.msra.mxu0 0.0
        %2173 = vmatprep.subr.mxu0 0.0
        %2174 = vmatpush2.msra.mxu0 0.0
        %2175 = vmatprep.subr.mxu0 0.0
        %2176 = vmatpush2.msra.mxu0 0.0
        %2177 = vmatprep.subr.mxu0 0.0
        %2178 = vmatpush2.msra.mxu0 0.0
        %2179 = vmatprep.subr.mxu0 0.0
        %2180 = vmatpush2.msra.mxu0 0.0
        %2181 = vmatprep.subr.mxu0 0.0
        %2182 = vmatpush2.msra.mxu0 0.0
        %2183 = vmatprep.subr.mxu0 0.0
        %2184 = vmatpush2.msra.mxu0 0.0
        %2185 = vmatprep.subr.mxu0 0.0
        %2186 = vmatpush2.msra.mxu0 0.0
        %2187 = vmatprep.subr.mxu0 0.0
        %2188 = vmatpush2.msra.mxu0 0.0
        %2189 = vmatprep.subr.mxu0 0.0
        %2190 = vmatpush2.msra.mxu0 0.0
        %2191 = vmatprep.subr.mxu0 0.0
        %2192 = vmatpush2.msra.mxu0 0.0
        %2193 = vmatprep.subr.mxu0 0.0
        %2194 = vmatpush2.msra.mxu0 0.0
        %2195 = vmatprep.subr.mxu0 0.0
        %2196 = vmatpush2.msra.mxu0 0.0
        %2197 = vmatprep.mubr.f32.mxu0 0.0
        %2198 = vmatmul.mubr.f32.gmra.mxu0 %v2086
        %v2199 = vpop.f32.mrf.mxu0
        %v2200 = vadd.f32 0.0, %v2199
        %v2201 = vpop.f32.mrf.mxu0
        %2202 = vmatprep.mubr.f32.mxu0 0.0
        %2203 = vmatmul.mubr.f32.gmra.mxu0 %v2089
        %v2204 = vpop.f32.mrf.mxu0
        %v2205 = vadd.f32 0.0, %v2204
        %v2206 = vpop.f32.mrf.mxu0
        %2207 = vmatprep.mubr.f32.mxu0 0.0
        %2208 = vmatmul.mubr.f32.gmra.mxu0 %v2092
        %v2209 = vpop.f32.mrf.mxu0
        %v2210 = vadd.f32 0.0, %v2209
        %v2211 = vpop.f32.mrf.mxu0
        %2212 = vmatprep.mubr.f32.mxu0 0.0
        %2213 = vmatmul.mubr.f32.gmra.mxu0 %v2095
        %v2214 = vpop.f32.mrf.mxu0
        %v2215 = vadd.f32 0.0, %v2214
        %v2216 = vpop.f32.mrf.mxu0
        %2217 = vmatprep.mubr.f32.mxu0 0.0
        %2218 = vmatmul.mubr.f32.gmra.mxu0 %v2098
        %v2219 = vpop.f32.mrf.mxu0
        %v2220 = vadd.f32 0.0, %v2219
        %v2221 = vpop.f32.mrf.mxu0
        %2222 = vmatprep.mubr.f32.mxu0 0.0
        %2223 = vmatmul.mubr.f32.gmra.mxu0 %v2101
        %v2224 = vpop.f32.mrf.mxu0
        %v2225 = vadd.f32 0.0, %v2224
        %v2226 = vpop.f32.mrf.mxu0
        %2227 = vmatprep.mubr.f32.mxu0 0.0
        %2228 = vmatmul.mubr.f32.gmra.mxu0 %v2104
        %v2229 = vpop.f32.mrf.mxu0
        %v2230 = vadd.f32 0.0, %v2229
        %v2231 = vpop.f32.mrf.mxu0
        %2232 = vmatprep.mubr.f32.mxu0 0.0
        %2233 = vmatmul.mubr.f32.gmra.mxu0 %v2107
        %v2234 = vpop.f32.mrf.mxu0
        %v2235 = vadd.f32 0.0, %v2234
        %v2236 = vpop.f32.mrf.mxu0
        %2237 = vmatprep.mubr.f32.mxu0 0.0
        %2238 = vmatmul.mubr.f32.gmra.mxu0 %v2110
        %v2239 = vpop.f32.mrf.mxu0
        %v2240 = vadd.f32 0.0, %v2239
        %v2241 = vpop.f32.mrf.mxu0
        %2242 = vmatprep.mubr.f32.mxu0 0.0
        %2243 = vmatmul.mubr.f32.gmra.mxu0 %v2113
        %v2244 = vpop.f32.mrf.mxu0
        %v2245 = vadd.f32 0.0, %v2244
        %v2246 = vpop.f32.mrf.mxu0
        %2247 = vmatprep.mubr.f32.mxu0 0.0
        %2248 = vmatmul.mubr.f32.gmra.mxu0 %v2116
        %v2249 = vpop.f32.mrf.mxu0
        %v2250 = vadd.f32 0.0, %v2249
        %v2251 = vpop.f32.mrf.mxu0
        %2252 = vmatprep.mubr.f32.mxu0 0.0
        %2253 = vmatmul.mubr.f32.gmra.mxu0 %v2119
        %v2254 = vpop.f32.mrf.mxu0
        %v2255 = vadd.f32 0.0, %v2254
        %v2256 = vpop.f32.mrf.mxu0
        %2257 = vmatprep.mubr.f32.mxu0 0.0
        %2258 = vmatmul.mubr.f32.gmra.mxu0 %v2122
        %v2259 = vpop.f32.mrf.mxu0
        %v2260 = vadd.f32 0.0, %v2259
        %v2261 = vpop.f32.mrf.mxu0
        %2262 = vmatprep.mubr.f32.mxu0 0.0
        %2263 = vmatmul.mubr.f32.gmra.mxu0 %v2125
        %v2264 = vpop.f32.mrf.mxu0
        %v2265 = vadd.f32 0.0, %v2264
        %v2266 = vpop.f32.mrf.mxu0
        %2267 = vmatprep.mubr.f32.mxu0 0.0
        %2268 = vmatmul.mubr.f32.gmra.mxu0 %v2128
        %v2269 = vpop.f32.mrf.mxu0
        %v2270 = vadd.f32 0.0, %v2269
        %v2271 = vpop.f32.mrf.mxu0
        %2272 = vmatprep.mubr.f32.mxu0 0.0
        %2273 = vmatmul.mubr.f32.gmra.mxu0 %v2131
        %v2274 = vpop.f32.mrf.mxu0
        %v2275 = vadd.f32 0.0, %v2274
        %v2276 = vpop.f32.mrf.mxu0
        %2277 = vdwg.mxu0
        %v2278 = vadd.f32 %v1964, %v2200
        %v2279 = vadd.f32 %v1965, %v2205
        %v2280 = vadd.f32 %v1966, %v2210
        %v2281 = vadd.f32 %v1967, %v2215
        %v2282 = vadd.f32 %v1968, %v2220
        %v2283 = vadd.f32 %v1969, %v2225
        %v2284 = vadd.f32 %v1970, %v2230
        %v2285 = vadd.f32 %v1971, %v2235
        %v2286 = vadd.f32 %v1972, %v2240
        %v2287 = vadd.f32 %v1973, %v2245
        %v2288 = vadd.f32 %v1974, %v2250
        %v2289 = vadd.f32 %v1975, %v2255
        %v2290 = vadd.f32 %v1976, %v2260
        %v2291 = vadd.f32 %v1977, %v2265
        %v2292 = vadd.f32 %v1978, %v2270
        %v2293 = vadd.f32 %v1979, %v2275
        %v2294 = vld [vmem:[%s601 + $0x3] sm:$0xff]
        %v2295 = vld [vmem:[%s601 + $0x13] sm:$0xff]
        %v2296 = vld [vmem:[%s601 + $0x23] sm:$0xff]
        %v2297 = vld [vmem:[%s601 + $0x33] sm:$0xff]
        %v2298 = vld [vmem:[%s601 + $0x43] sm:$0xff]
        %v2299 = vld [vmem:[%s601 + $0x53] sm:$0xff]
        %v2300 = vld [vmem:[%s601 + $0x63] sm:$0xff]
        %v2301 = vld [vmem:[%s601 + $0x73] sm:$0xff]
        %v2302 = vld [vmem:[%s601 + $0xc3] sm:$0xff]
        %v2303 = vld [vmem:[%s601 + $0xd3] sm:$0xff]
        %v2304 = vld [vmem:[%s601 + $0xe3] sm:$0xff]
        %v2305 = vld [vmem:[%s601 + $0xf3] sm:$0xff]
        %v2306 = vld [vmem:[%s601 + $0x103] sm:$0xff]
        %v2307 = vld [vmem:[%s601 + $0x113] sm:$0xff]
        %v2308 = vld [vmem:[%s601 + $0x123] sm:$0xff]
        %v2309 = vld [vmem:[%s601 + $0x133] sm:$0xff]
        %v2310 = vld [vmem:[%s601 + $0x4] sm:$0xff]
        %v2311 = vld [vmem:[%s601 + $0x14] sm:$0xff]
        %v2312 = vld [vmem:[%s601 + $0x24] sm:$0xff]
        %v2313 = vld [vmem:[%s601 + $0x34] sm:$0xff]
        %v2314 = vld [vmem:[%s601 + $0x44] sm:$0xff]
        %v2315 = vld [vmem:[%s601 + $0x54] sm:$0xff]
        %v2316 = vld [vmem:[%s601 + $0x64] sm:$0xff]
        %v2317 = vld [vmem:[%s601 + $0x74] sm:$0xff]
        %v2318 = vld [vmem:[%s601 + $0xc4] sm:$0xff]
        %v2319 = vld [vmem:[%s601 + $0xd4] sm:$0xff]
        %v2320 = vld [vmem:[%s601 + $0xe4] sm:$0xff]
        %v2321 = vld [vmem:[%s601 + $0xf4] sm:$0xff]
        %v2322 = vld [vmem:[%s601 + $0x104] sm:$0xff]
        %v2323 = vld [vmem:[%s601 + $0x114] sm:$0xff]
        %v2324 = vld [vmem:[%s601 + $0x124] sm:$0xff]
        %v2325 = vld [vmem:[%s601 + $0x134] sm:$0xff]
        %2342 = vrot.lane.b32.xlu0 %v2310, 32
        %v2343 = vpop.permute.xlu0 %2342
        %2344 = vrot.lane.b32.xlu0 %v2311, 32
        %v2345 = vpop.permute.xlu0 %2344
        %2346 = vrot.lane.b32.xlu0 %v2312, 32
        %v2347 = vpop.permute.xlu0 %2346
        %2348 = vrot.lane.b32.xlu0 %v2313, 32
        %v2349 = vpop.permute.xlu0 %2348
        %2350 = vrot.lane.b32.xlu0 %v2314, 32
        %v2351 = vpop.permute.xlu0 %2350
        %2352 = vrot.lane.b32.xlu0 %v2315, 32
        %v2353 = vpop.permute.xlu0 %2352
        %2354 = vrot.lane.b32.xlu0 %v2316, 32
        %v2355 = vpop.permute.xlu0 %2354
        %2356 = vrot.lane.b32.xlu0 %v2317, 32
        %v2357 = vpop.permute.xlu0 %2356
        %2358 = vrot.lane.b32.xlu0 %v2318, 32
        %v2359 = vpop.permute.xlu0 %2358
        %2360 = vrot.lane.b32.xlu0 %v2319, 32
        %v2361 = vpop.permute.xlu0 %2360
        %2362 = vrot.lane.b32.xlu0 %v2320, 32
        %v2363 = vpop.permute.xlu0 %2362
        %2364 = vrot.lane.b32.xlu0 %v2321, 32
        %v2365 = vpop.permute.xlu0 %2364
        %2366 = vrot.lane.b32.xlu0 %v2322, 32
        %v2367 = vpop.permute.xlu0 %2366
        %2368 = vrot.lane.b32.xlu0 %v2323, 32
        %v2369 = vpop.permute.xlu0 %2368
        %2370 = vrot.lane.b32.xlu0 %v2324, 32
        %v2371 = vpop.permute.xlu0 %2370
        %2372 = vrot.lane.b32.xlu0 %v2325, 32
        %v2373 = vpop.permute.xlu0 %2372
        %v2390 = vsel %vm389, %v2294, %v2343
        %v2391 = vsel %vm389, %v2295, %v2345
        %v2392 = vsel %vm389, %v2296, %v2347
        %v2393 = vsel %vm389, %v2297, %v2349
        %v2394 = vsel %vm389, %v2298, %v2351
        %v2395 = vsel %vm389, %v2299, %v2353
        %v2396 = vsel %vm389, %v2300, %v2355
        %v2397 = vsel %vm389, %v2301, %v2357
        %v2398 = vsel %vm389, %v2302, %v2359
        %v2399 = vsel %vm389, %v2303, %v2361
        %v2400 = vsel %vm389, %v2304, %v2363
        %v2401 = vsel %vm389, %v2305, %v2365
        %v2402 = vsel %vm389, %v2306, %v2367
        %v2403 = vsel %vm389, %v2307, %v2369
        %v2404 = vsel %vm389, %v2308, %v2371
        %v2405 = vsel %vm389, %v2309, %v2373
        %s2406 = scalar_lea.vmem %s4, 320
        %v2407 = vld [vmem:[%s2406] sm:$0xff]
        %v2408 = vld [vmem:[%s2406 + $0x8] sm:$0xff]
        %v2409 = vld [vmem:[%s2406 + $0x10] sm:$0xff]
        %v2410 = vld [vmem:[%s2406 + $0x18] sm:$0xff]
        %v2411 = vld [vmem:[%s2406 + $0x20] sm:$0xff]
        %v2412 = vld [vmem:[%s2406 + $0x28] sm:$0xff]
        %v2413 = vld [vmem:[%s2406 + $0x30] sm:$0xff]
        %v2414 = vld [vmem:[%s2406 + $0x38] sm:$0xff]
        %v2416 = vsel %vm780, %v2390, 0
        %v2419 = vsel %vm780, %v2391, 0
        %v2422 = vsel %vm780, %v2392, 0
        %v2425 = vsel %vm780, %v2393, 0
        %v2428 = vsel %vm780, %v2394, 0
        %v2431 = vsel %vm780, %v2395, 0
        %v2434 = vsel %vm780, %v2396, 0
        %v2437 = vsel %vm780, %v2397, 0
        %v2440 = vsel %vm780, %v2398, 0
        %v2443 = vsel %vm780, %v2399, 0
        %v2446 = vsel %vm780, %v2400, 0
        %v2449 = vsel %vm780, %v2401, 0
        %v2452 = vsel %vm780, %v2402, 0
        %v2455 = vsel %vm780, %v2403, 0
        %v2458 = vsel %vm780, %v2404, 0
        %v2461 = vsel %vm780, %v2405, 0
        %2463 = vmatprep.subr.mxu0 0.0
        %2464 = vmatpush1.msra.mxu0 0.0
        %2465 = vmatprep.subr.mxu0 0.0
        %2466 = vmatpush1.msra.mxu0 0.0
        %2467 = vmatprep.subr.mxu0 0.0
        %2468 = vmatpush1.msra.mxu0 0.0
        %2469 = vmatprep.subr.mxu0 0.0
        %2470 = vmatpush1.msra.mxu0 0.0
        %2471 = vmatprep.subr.mxu0 0.0
        %2472 = vmatpush1.msra.mxu0 0.0
        %2473 = vmatprep.subr.mxu0 0.0
        %2474 = vmatpush1.msra.mxu0 0.0
        %2475 = vmatprep.subr.mxu0 0.0
        %2476 = vmatpush1.msra.mxu0 0.0
        %2477 = vmatprep.subr.mxu0 0.0
        %2478 = vmatpush1.msra.mxu0 0.0
        %2479 = vmatprep.subr.mxu0 0.0
        %2480 = vmatpush1.msra.mxu0 %v2414
        %2481 = vmatprep.subr.mxu0 0.0
        %2482 = vmatpush1.msra.mxu0 %v2413
        %2483 = vmatprep.subr.mxu0 0.0
        %2484 = vmatpush1.msra.mxu0 %v2412
        %2485 = vmatprep.subr.mxu0 0.0
        %2486 = vmatpush1.msra.mxu0 %v2411
        %2487 = vmatprep.subr.mxu0 0.0
        %2488 = vmatpush1.msra.mxu0 %v2410
        %2489 = vmatprep.subr.mxu0 0.0
        %2490 = vmatpush1.msra.mxu0 %v2409
        %2491 = vmatprep.subr.mxu0 0.0
        %2492 = vmatpush1.msra.mxu0 %v2408
        %2493 = vmatprep.subr.mxu0 0.0
        %2494 = vmatpush1.msra.mxu0 %v2407
        %2495 = vmatprep.subr.mxu0 0.0
        %2496 = vmatpush2.msra.mxu0 0.0
        %2497 = vmatprep.subr.mxu0 0.0
        %2498 = vmatpush2.msra.mxu0 0.0
        %2499 = vmatprep.subr.mxu0 0.0
        %2500 = vmatpush2.msra.mxu0 0.0
        %2501 = vmatprep.subr.mxu0 0.0
        %2502 = vmatpush2.msra.mxu0 0.0
        %2503 = vmatprep.subr.mxu0 0.0
        %2504 = vmatpush2.msra.mxu0 0.0
        %2505 = vmatprep.subr.mxu0 0.0
        %2506 = vmatpush2.msra.mxu0 0.0
        %2507 = vmatprep.subr.mxu0 0.0
        %2508 = vmatpush2.msra.mxu0 0.0
        %2509 = vmatprep.subr.mxu0 0.0
        %2510 = vmatpush2.msra.mxu0 0.0
        %2511 = vmatprep.subr.mxu0 0.0
        %2512 = vmatpush2.msra.mxu0 0.0
        %2513 = vmatprep.subr.mxu0 0.0
        %2514 = vmatpush2.msra.mxu0 0.0
        %2515 = vmatprep.subr.mxu0 0.0
        %2516 = vmatpush2.msra.mxu0 0.0
        %2517 = vmatprep.subr.mxu0 0.0
        %2518 = vmatpush2.msra.mxu0 0.0
        %2519 = vmatprep.subr.mxu0 0.0
        %2520 = vmatpush2.msra.mxu0 0.0
        %2521 = vmatprep.subr.mxu0 0.0
        %2522 = vmatpush2.msra.mxu0 0.0
        %2523 = vmatprep.subr.mxu0 0.0
        %2524 = vmatpush2.msra.mxu0 0.0
        %2525 = vmatprep.subr.mxu0 0.0
        %2526 = vmatpush2.msra.mxu0 0.0
        %2527 = vmatprep.mubr.f32.mxu0 0.0
        %2528 = vmatmul.mubr.f32.gmra.mxu0 %v2416
        %v2529 = vpop.f32.mrf.mxu0
        %v2530 = vadd.f32 0.0, %v2529
        %v2531 = vpop.f32.mrf.mxu0
        %2532 = vmatprep.mubr.f32.mxu0 0.0
        %2533 = vmatmul.mubr.f32.gmra.mxu0 %v2419
        %v2534 = vpop.f32.mrf.mxu0
        %v2535 = vadd.f32 0.0, %v2534
        %v2536 = vpop.f32.mrf.mxu0
        %2537 = vmatprep.mubr.f32.mxu0 0.0
        %2538 = vmatmul.mubr.f32.gmra.mxu0 %v2422
        %v2539 = vpop.f32.mrf.mxu0
        %v2540 = vadd.f32 0.0, %v2539
        %v2541 = vpop.f32.mrf.mxu0
        %2542 = vmatprep.mubr.f32.mxu0 0.0
        %2543 = vmatmul.mubr.f32.gmra.mxu0 %v2425
        %v2544 = vpop.f32.mrf.mxu0
        %v2545 = vadd.f32 0.0, %v2544
        %v2546 = vpop.f32.mrf.mxu0
        %2547 = vmatprep.mubr.f32.mxu0 0.0
        %2548 = vmatmul.mubr.f32.gmra.mxu0 %v2428
        %v2549 = vpop.f32.mrf.mxu0
        %v2550 = vadd.f32 0.0, %v2549
        %v2551 = vpop.f32.mrf.mxu0
        %2552 = vmatprep.mubr.f32.mxu0 0.0
        %2553 = vmatmul.mubr.f32.gmra.mxu0 %v2431
        %v2554 = vpop.f32.mrf.mxu0
        %v2555 = vadd.f32 0.0, %v2554
        %v2556 = vpop.f32.mrf.mxu0
        %2557 = vmatprep.mubr.f32.mxu0 0.0
        %2558 = vmatmul.mubr.f32.gmra.mxu0 %v2434
        %v2559 = vpop.f32.mrf.mxu0
        %v2560 = vadd.f32 0.0, %v2559
        %v2561 = vpop.f32.mrf.mxu0
        %2562 = vmatprep.mubr.f32.mxu0 0.0
        %2563 = vmatmul.mubr.f32.gmra.mxu0 %v2437
        %v2564 = vpop.f32.mrf.mxu0
        %v2565 = vadd.f32 0.0, %v2564
        %v2566 = vpop.f32.mrf.mxu0
        %2567 = vmatprep.mubr.f32.mxu0 0.0
        %2568 = vmatmul.mubr.f32.gmra.mxu0 %v2440
        %v2569 = vpop.f32.mrf.mxu0
        %v2570 = vadd.f32 0.0, %v2569
        %v2571 = vpop.f32.mrf.mxu0
        %2572 = vmatprep.mubr.f32.mxu0 0.0
        %2573 = vmatmul.mubr.f32.gmra.mxu0 %v2443
        %v2574 = vpop.f32.mrf.mxu0
        %v2575 = vadd.f32 0.0, %v2574
        %v2576 = vpop.f32.mrf.mxu0
        %2577 = vmatprep.mubr.f32.mxu0 0.0
        %2578 = vmatmul.mubr.f32.gmra.mxu0 %v2446
        %v2579 = vpop.f32.mrf.mxu0
        %v2580 = vadd.f32 0.0, %v2579
        %v2581 = vpop.f32.mrf.mxu0
        %2582 = vmatprep.mubr.f32.mxu0 0.0
        %2583 = vmatmul.mubr.f32.gmra.mxu0 %v2449
        %v2584 = vpop.f32.mrf.mxu0
        %v2585 = vadd.f32 0.0, %v2584
        %v2586 = vpop.f32.mrf.mxu0
        %2587 = vmatprep.mubr.f32.mxu0 0.0
        %2588 = vmatmul.mubr.f32.gmra.mxu0 %v2452
        %v2589 = vpop.f32.mrf.mxu0
        %v2590 = vadd.f32 0.0, %v2589
        %v2591 = vpop.f32.mrf.mxu0
        %2592 = vmatprep.mubr.f32.mxu0 0.0
        %2593 = vmatmul.mubr.f32.gmra.mxu0 %v2455
        %v2594 = vpop.f32.mrf.mxu0
        %v2595 = vadd.f32 0.0, %v2594
        %v2596 = vpop.f32.mrf.mxu0
        %2597 = vmatprep.mubr.f32.mxu0 0.0
        %2598 = vmatmul.mubr.f32.gmra.mxu0 %v2458
        %v2599 = vpop.f32.mrf.mxu0
        %v2600 = vadd.f32 0.0, %v2599
        %v2601 = vpop.f32.mrf.mxu0
        %2602 = vmatprep.mubr.f32.mxu0 0.0
        %2603 = vmatmul.mubr.f32.gmra.mxu0 %v2461
        %v2604 = vpop.f32.mrf.mxu0
        %v2605 = vadd.f32 0.0, %v2604
        %v2606 = vpop.f32.mrf.mxu0
        %2607 = vdwg.mxu0
        %v2608 = vadd.f32 %v2278, %v2530
        %v2609 = vadd.f32 %v2279, %v2535
        %v2610 = vadd.f32 %v2280, %v2540
        %v2611 = vadd.f32 %v2281, %v2545
        %v2612 = vadd.f32 %v2282, %v2550
        %v2613 = vadd.f32 %v2283, %v2555
        %v2614 = vadd.f32 %v2284, %v2560
        %v2615 = vadd.f32 %v2285, %v2565
        %v2616 = vadd.f32 %v2286, %v2570
        %v2617 = vadd.f32 %v2287, %v2575
        %v2618 = vadd.f32 %v2288, %v2580
        %v2619 = vadd.f32 %v2289, %v2585
        %v2620 = vadd.f32 %v2290, %v2590
        %v2621 = vadd.f32 %v2291, %v2595
        %v2622 = vadd.f32 %v2292, %v2600
        %v2623 = vadd.f32 %v2293, %v2605
        %s2624 = scalar_lea.vmem [#allocation2], 48
        %v2625 = vld [vmem:[%s2624 + $0x1] sm:$0xff]
        %v2626 = vld [vmem:[%s2624 + $0x11] sm:$0xff]
        %v2627 = vld [vmem:[%s2624 + $0x21] sm:$0xff]
        %v2628 = vld [vmem:[%s2624 + $0x31] sm:$0xff]
        %v2629 = vld [vmem:[%s2624 + $0x41] sm:$0xff]
        %v2630 = vld [vmem:[%s2624 + $0x51] sm:$0xff]
        %v2631 = vld [vmem:[%s2624 + $0x61] sm:$0xff]
        %v2632 = vld [vmem:[%s2624 + $0x71] sm:$0xff]
        %v2633 = vld [vmem:[%s2624 + $0xc1] sm:$0xff]
        %v2634 = vld [vmem:[%s2624 + $0xd1] sm:$0xff]
        %v2635 = vld [vmem:[%s2624 + $0xe1] sm:$0xff]
        %v2636 = vld [vmem:[%s2624 + $0xf1] sm:$0xff]
        %v2637 = vld [vmem:[%s2624 + $0x101] sm:$0xff]
        %v2638 = vld [vmem:[%s2624 + $0x111] sm:$0xff]
        %v2639 = vld [vmem:[%s2624 + $0x121] sm:$0xff]
        %v2640 = vld [vmem:[%s2624 + $0x131] sm:$0xff]
        %s2641 = scalar_lea.vmem [#allocation2], 64
        %v2642 = vld [vmem:[%s2641] sm:$0xff]
        %v2643 = vld [vmem:[%s2641 + $0x10] sm:$0xff]
        %v2644 = vld [vmem:[%s2641 + $0x20] sm:$0xff]
        %v2645 = vld [vmem:[%s2641 + $0x30] sm:$0xff]
        %v2646 = vld [vmem:[%s2641 + $0x40] sm:$0xff]
        %v2647 = vld [vmem:[%s2641 + $0x50] sm:$0xff]
        %v2648 = vld [vmem:[%s2641 + $0x60] sm:$0xff]
        %v2649 = vld [vmem:[%s2641 + $0x70] sm:$0xff]
        %v2650 = vld [vmem:[%s2641 + $0xc0] sm:$0xff]
        %v2651 = vld [vmem:[%s2641 + $0xd0] sm:$0xff]
        %v2652 = vld [vmem:[%s2641 + $0xe0] sm:$0xff]
        %v2653 = vld [vmem:[%s2641 + $0xf0] sm:$0xff]
        %v2654 = vld [vmem:[%s2641 + $0x100] sm:$0xff]
        %v2655 = vld [vmem:[%s2641 + $0x110] sm:$0xff]
        %v2656 = vld [vmem:[%s2641 + $0x120] sm:$0xff]
        %v2657 = vld [vmem:[%s2641 + $0x130] sm:$0xff]
        %2674 = vrot.lane.b32.xlu0 %v2642, 32
        %v2675 = vpop.permute.xlu0 %2674
        %2676 = vrot.lane.b32.xlu0 %v2643, 32
        %v2677 = vpop.permute.xlu0 %2676
        %2678 = vrot.lane.b32.xlu0 %v2644, 32
        %v2679 = vpop.permute.xlu0 %2678
        %2680 = vrot.lane.b32.xlu0 %v2645, 32
        %v2681 = vpop.permute.xlu0 %2680
        %2682 = vrot.lane.b32.xlu0 %v2646, 32
        %v2683 = vpop.permute.xlu0 %2682
        %2684 = vrot.lane.b32.xlu0 %v2647, 32
        %v2685 = vpop.permute.xlu0 %2684
        %2686 = vrot.lane.b32.xlu0 %v2648, 32
        %v2687 = vpop.permute.xlu0 %2686
        %2688 = vrot.lane.b32.xlu0 %v2649, 32
        %v2689 = vpop.permute.xlu0 %2688
        %2690 = vrot.lane.b32.xlu0 %v2650, 32
        %v2691 = vpop.permute.xlu0 %2690
        %2692 = vrot.lane.b32.xlu0 %v2651, 32
        %v2693 = vpop.permute.xlu0 %2692
        %2694 = vrot.lane.b32.xlu0 %v2652, 32
        %v2695 = vpop.permute.xlu0 %2694
        %2696 = vrot.lane.b32.xlu0 %v2653, 32
        %v2697 = vpop.permute.xlu0 %2696
        %2698 = vrot.lane.b32.xlu0 %v2654, 32
        %v2699 = vpop.permute.xlu0 %2698
        %2700 = vrot.lane.b32.xlu0 %v2655, 32
        %v2701 = vpop.permute.xlu0 %2700
        %2702 = vrot.lane.b32.xlu0 %v2656, 32
        %v2703 = vpop.permute.xlu0 %2702
        %2704 = vrot.lane.b32.xlu0 %v2657, 32
        %v2705 = vpop.permute.xlu0 %2704
        %v2722 = vsel %vm389, %v2625, %v2675
        %v2723 = vsel %vm389, %v2626, %v2677
        %v2724 = vsel %vm389, %v2627, %v2679
        %v2725 = vsel %vm389, %v2628, %v2681
        %v2726 = vsel %vm389, %v2629, %v2683
        %v2727 = vsel %vm389, %v2630, %v2685
        %v2728 = vsel %vm389, %v2631, %v2687
        %v2729 = vsel %vm389, %v2632, %v2689
        %v2730 = vsel %vm389, %v2633, %v2691
        %v2731 = vsel %vm389, %v2634, %v2693
        %v2732 = vsel %vm389, %v2635, %v2695
        %v2733 = vsel %vm389, %v2636, %v2697
        %v2734 = vsel %vm389, %v2637, %v2699
        %v2735 = vsel %vm389, %v2638, %v2701
        %v2736 = vsel %vm389, %v2639, %v2703
        %v2737 = vsel %vm389, %v2640, %v2705
        %s2738 = scalar_lea.vmem %s4, 384
        %v2739 = vld [vmem:[%s2738] sm:$0xff]
        %v2740 = vld [vmem:[%s2738 + $0x8] sm:$0xff]
        %v2741 = vld [vmem:[%s2738 + $0x10] sm:$0xff]
        %v2742 = vld [vmem:[%s2738 + $0x18] sm:$0xff]
        %v2743 = vld [vmem:[%s2738 + $0x20] sm:$0xff]
        %v2744 = vld [vmem:[%s2738 + $0x28] sm:$0xff]
        %v2745 = vld [vmem:[%s2738 + $0x30] sm:$0xff]
        %v2746 = vld [vmem:[%s2738 + $0x38] sm:$0xff]
        %v2748 = vsel %vm780, %v2722, 0
        %v2751 = vsel %vm780, %v2723, 0
        %v2754 = vsel %vm780, %v2724, 0
        %v2757 = vsel %vm780, %v2725, 0
        %v2760 = vsel %vm780, %v2726, 0
        %v2763 = vsel %vm780, %v2727, 0
        %v2766 = vsel %vm780, %v2728, 0
        %v2769 = vsel %vm780, %v2729, 0
        %v2772 = vsel %vm780, %v2730, 0
        %v2775 = vsel %vm780, %v2731, 0
        %v2778 = vsel %vm780, %v2732, 0
        %v2781 = vsel %vm780, %v2733, 0
        %v2784 = vsel %vm780, %v2734, 0
        %v2787 = vsel %vm780, %v2735, 0
        %v2790 = vsel %vm780, %v2736, 0
        %v2793 = vsel %vm780, %v2737, 0
        %2795 = vmatprep.subr.mxu0 0.0
        %2796 = vmatpush1.msra.mxu0 0.0
        %2797 = vmatprep.subr.mxu0 0.0
        %2798 = vmatpush1.msra.mxu0 0.0
        %2799 = vmatprep.subr.mxu0 0.0
        %2800 = vmatpush1.msra.mxu0 0.0
        %2801 = vmatprep.subr.mxu0 0.0
        %2802 = vmatpush1.msra.mxu0 0.0
        %2803 = vmatprep.subr.mxu0 0.0
        %2804 = vmatpush1.msra.mxu0 0.0
        %2805 = vmatprep.subr.mxu0 0.0
        %2806 = vmatpush1.msra.mxu0 0.0
        %2807 = vmatprep.subr.mxu0 0.0
        %2808 = vmatpush1.msra.mxu0 0.0
        %2809 = vmatprep.subr.mxu0 0.0
        %2810 = vmatpush1.msra.mxu0 0.0
        %2811 = vmatprep.subr.mxu0 0.0
        %2812 = vmatpush1.msra.mxu0 %v2746
        %2813 = vmatprep.subr.mxu0 0.0
        %2814 = vmatpush1.msra.mxu0 %v2745
        %2815 = vmatprep.subr.mxu0 0.0
        %2816 = vmatpush1.msra.mxu0 %v2744
        %2817 = vmatprep.subr.mxu0 0.0
        %2818 = vmatpush1.msra.mxu0 %v2743
        %2819 = vmatprep.subr.mxu0 0.0
        %2820 = vmatpush1.msra.mxu0 %v2742
        %2821 = vmatprep.subr.mxu0 0.0
        %2822 = vmatpush1.msra.mxu0 %v2741
        %2823 = vmatprep.subr.mxu0 0.0
        %2824 = vmatpush1.msra.mxu0 %v2740
        %2825 = vmatprep.subr.mxu0 0.0
        %2826 = vmatpush1.msra.mxu0 %v2739
        %2827 = vmatprep.subr.mxu0 0.0
        %2828 = vmatpush2.msra.mxu0 0.0
        %2829 = vmatprep.subr.mxu0 0.0
        %2830 = vmatpush2.msra.mxu0 0.0
        %2831 = vmatprep.subr.mxu0 0.0
        %2832 = vmatpush2.msra.mxu0 0.0
        %2833 = vmatprep.subr.mxu0 0.0
        %2834 = vmatpush2.msra.mxu0 0.0
        %2835 = vmatprep.subr.mxu0 0.0
        %2836 = vmatpush2.msra.mxu0 0.0
        %2837 = vmatprep.subr.mxu0 0.0
        %2838 = vmatpush2.msra.mxu0 0.0
        %2839 = vmatprep.subr.mxu0 0.0
        %2840 = vmatpush2.msra.mxu0 0.0
        %2841 = vmatprep.subr.mxu0 0.0
        %2842 = vmatpush2.msra.mxu0 0.0
        %2843 = vmatprep.subr.mxu0 0.0
        %2844 = vmatpush2.msra.mxu0 0.0
        %2845 = vmatprep.subr.mxu0 0.0
        %2846 = vmatpush2.msra.mxu0 0.0
        %2847 = vmatprep.subr.mxu0 0.0
        %2848 = vmatpush2.msra.mxu0 0.0
        %2849 = vmatprep.subr.mxu0 0.0
        %2850 = vmatpush2.msra.mxu0 0.0
        %2851 = vmatprep.subr.mxu0 0.0
        %2852 = vmatpush2.msra.mxu0 0.0
        %2853 = vmatprep.subr.mxu0 0.0
        %2854 = vmatpush2.msra.mxu0 0.0
        %2855 = vmatprep.subr.mxu0 0.0
        %2856 = vmatpush2.msra.mxu0 0.0
        %2857 = vmatprep.subr.mxu0 0.0
        %2858 = vmatpush2.msra.mxu0 0.0
        %2859 = vmatprep.mubr.f32.mxu0 0.0
        %2860 = vmatmul.mubr.f32.gmra.mxu0 %v2748
        %v2861 = vpop.f32.mrf.mxu0
        %v2862 = vadd.f32 0.0, %v2861
        %v2863 = vpop.f32.mrf.mxu0
        %2864 = vmatprep.mubr.f32.mxu0 0.0
        %2865 = vmatmul.mubr.f32.gmra.mxu0 %v2751
        %v2866 = vpop.f32.mrf.mxu0
        %v2867 = vadd.f32 0.0, %v2866
        %v2868 = vpop.f32.mrf.mxu0
        %2869 = vmatprep.mubr.f32.mxu0 0.0
        %2870 = vmatmul.mubr.f32.gmra.mxu0 %v2754
        %v2871 = vpop.f32.mrf.mxu0
        %v2872 = vadd.f32 0.0, %v2871
        %v2873 = vpop.f32.mrf.mxu0
        %2874 = vmatprep.mubr.f32.mxu0 0.0
        %2875 = vmatmul.mubr.f32.gmra.mxu0 %v2757
        %v2876 = vpop.f32.mrf.mxu0
        %v2877 = vadd.f32 0.0, %v2876
        %v2878 = vpop.f32.mrf.mxu0
        %2879 = vmatprep.mubr.f32.mxu0 0.0
        %2880 = vmatmul.mubr.f32.gmra.mxu0 %v2760
        %v2881 = vpop.f32.mrf.mxu0
        %v2882 = vadd.f32 0.0, %v2881
        %v2883 = vpop.f32.mrf.mxu0
        %2884 = vmatprep.mubr.f32.mxu0 0.0
        %2885 = vmatmul.mubr.f32.gmra.mxu0 %v2763
        %v2886 = vpop.f32.mrf.mxu0
        %v2887 = vadd.f32 0.0, %v2886
        %v2888 = vpop.f32.mrf.mxu0
        %2889 = vmatprep.mubr.f32.mxu0 0.0
        %2890 = vmatmul.mubr.f32.gmra.mxu0 %v2766
        %v2891 = vpop.f32.mrf.mxu0
        %v2892 = vadd.f32 0.0, %v2891
        %v2893 = vpop.f32.mrf.mxu0
        %2894 = vmatprep.mubr.f32.mxu0 0.0
        %2895 = vmatmul.mubr.f32.gmra.mxu0 %v2769
        %v2896 = vpop.f32.mrf.mxu0
        %v2897 = vadd.f32 0.0, %v2896
        %v2898 = vpop.f32.mrf.mxu0
        %2899 = vmatprep.mubr.f32.mxu0 0.0
        %2900 = vmatmul.mubr.f32.gmra.mxu0 %v2772
        %v2901 = vpop.f32.mrf.mxu0
        %v2902 = vadd.f32 0.0, %v2901
        %v2903 = vpop.f32.mrf.mxu0
        %2904 = vmatprep.mubr.f32.mxu0 0.0
        %2905 = vmatmul.mubr.f32.gmra.mxu0 %v2775
        %v2906 = vpop.f32.mrf.mxu0
        %v2907 = vadd.f32 0.0, %v2906
        %v2908 = vpop.f32.mrf.mxu0
        %2909 = vmatprep.mubr.f32.mxu0 0.0
        %2910 = vmatmul.mubr.f32.gmra.mxu0 %v2778
        %v2911 = vpop.f32.mrf.mxu0
        %v2912 = vadd.f32 0.0, %v2911
        %v2913 = vpop.f32.mrf.mxu0
        %2914 = vmatprep.mubr.f32.mxu0 0.0
        %2915 = vmatmul.mubr.f32.gmra.mxu0 %v2781
        %v2916 = vpop.f32.mrf.mxu0
        %v2917 = vadd.f32 0.0, %v2916
        %v2918 = vpop.f32.mrf.mxu0
        %2919 = vmatprep.mubr.f32.mxu0 0.0
        %2920 = vmatmul.mubr.f32.gmra.mxu0 %v2784
        %v2921 = vpop.f32.mrf.mxu0
        %v2922 = vadd.f32 0.0, %v2921
        %v2923 = vpop.f32.mrf.mxu0
        %2924 = vmatprep.mubr.f32.mxu0 0.0
        %2925 = vmatmul.mubr.f32.gmra.mxu0 %v2787
        %v2926 = vpop.f32.mrf.mxu0
        %v2927 = vadd.f32 0.0, %v2926
        %v2928 = vpop.f32.mrf.mxu0
        %2929 = vmatprep.mubr.f32.mxu0 0.0
        %2930 = vmatmul.mubr.f32.gmra.mxu0 %v2790
        %v2931 = vpop.f32.mrf.mxu0
        %v2932 = vadd.f32 0.0, %v2931
        %v2933 = vpop.f32.mrf.mxu0
        %2934 = vmatprep.mubr.f32.mxu0 0.0
        %2935 = vmatmul.mubr.f32.gmra.mxu0 %v2793
        %v2936 = vpop.f32.mrf.mxu0
        %v2937 = vadd.f32 0.0, %v2936
        %v2938 = vpop.f32.mrf.mxu0
        %2939 = vdwg.mxu0
        %v2940 = vadd.f32 %v2608, %v2862
        %v2941 = vadd.f32 %v2609, %v2867
        %v2942 = vadd.f32 %v2610, %v2872
        %v2943 = vadd.f32 %v2611, %v2877
        %v2944 = vadd.f32 %v2612, %v2882
        %v2945 = vadd.f32 %v2613, %v2887
        %v2946 = vadd.f32 %v2614, %v2892
        %v2947 = vadd.f32 %v2615, %v2897
        %v2948 = vadd.f32 %v2616, %v2902
        %v2949 = vadd.f32 %v2617, %v2907
        %v2950 = vadd.f32 %v2618, %v2912
        %v2951 = vadd.f32 %v2619, %v2917
        %v2952 = vadd.f32 %v2620, %v2922
        %v2953 = vadd.f32 %v2621, %v2927
        %v2954 = vadd.f32 %v2622, %v2932
        %v2955 = vadd.f32 %v2623, %v2937
        %v2956 = vld [vmem:[%s2624 + $0x2] sm:$0xff]
        %v2957 = vld [vmem:[%s2624 + $0x12] sm:$0xff]
        %v2958 = vld [vmem:[%s2624 + $0x22] sm:$0xff]
        %v2959 = vld [vmem:[%s2624 + $0x32] sm:$0xff]
        %v2960 = vld [vmem:[%s2624 + $0x42] sm:$0xff]
        %v2961 = vld [vmem:[%s2624 + $0x52] sm:$0xff]
        %v2962 = vld [vmem:[%s2624 + $0x62] sm:$0xff]
        %v2963 = vld [vmem:[%s2624 + $0x72] sm:$0xff]
        %v2964 = vld [vmem:[%s2624 + $0xc2] sm:$0xff]
        %v2965 = vld [vmem:[%s2624 + $0xd2] sm:$0xff]
        %v2966 = vld [vmem:[%s2624 + $0xe2] sm:$0xff]
        %v2967 = vld [vmem:[%s2624 + $0xf2] sm:$0xff]
        %v2968 = vld [vmem:[%s2624 + $0x102] sm:$0xff]
        %v2969 = vld [vmem:[%s2624 + $0x112] sm:$0xff]
        %v2970 = vld [vmem:[%s2624 + $0x122] sm:$0xff]
        %v2971 = vld [vmem:[%s2624 + $0x132] sm:$0xff]
        %v2972 = vld [vmem:[%s2641 + $0x2] sm:$0xff]
        %v2973 = vld [vmem:[%s2641 + $0x12] sm:$0xff]
        %v2974 = vld [vmem:[%s2641 + $0x22] sm:$0xff]
        %v2975 = vld [vmem:[%s2641 + $0x32] sm:$0xff]
        %v2976 = vld [vmem:[%s2641 + $0x42] sm:$0xff]
        %v2977 = vld [vmem:[%s2641 + $0x52] sm:$0xff]
        %v2978 = vld [vmem:[%s2641 + $0x62] sm:$0xff]
        %v2979 = vld [vmem:[%s2641 + $0x72] sm:$0xff]
        %v2980 = vld [vmem:[%s2641 + $0xc2] sm:$0xff]
        %v2981 = vld [vmem:[%s2641 + $0xd2] sm:$0xff]
        %v2982 = vld [vmem:[%s2641 + $0xe2] sm:$0xff]
        %v2983 = vld [vmem:[%s2641 + $0xf2] sm:$0xff]
        %v2984 = vld [vmem:[%s2641 + $0x102] sm:$0xff]
        %v2985 = vld [vmem:[%s2641 + $0x112] sm:$0xff]
        %v2986 = vld [vmem:[%s2641 + $0x122] sm:$0xff]
        %v2987 = vld [vmem:[%s2641 + $0x132] sm:$0xff]
        %3004 = vrot.lane.b32.xlu0 %v2972, 32
        %v3005 = vpop.permute.xlu0 %3004
        %3006 = vrot.lane.b32.xlu0 %v2973, 32
        %v3007 = vpop.permute.xlu0 %3006
        %3008 = vrot.lane.b32.xlu0 %v2974, 32
        %v3009 = vpop.permute.xlu0 %3008
        %3010 = vrot.lane.b32.xlu0 %v2975, 32
        %v3011 = vpop.permute.xlu0 %3010
        %3012 = vrot.lane.b32.xlu0 %v2976, 32
        %v3013 = vpop.permute.xlu0 %3012
        %3014 = vrot.lane.b32.xlu0 %v2977, 32
        %v3015 = vpop.permute.xlu0 %3014
        %3016 = vrot.lane.b32.xlu0 %v2978, 32
        %v3017 = vpop.permute.xlu0 %3016
        %3018 = vrot.lane.b32.xlu0 %v2979, 32
        %v3019 = vpop.permute.xlu0 %3018
        %3020 = vrot.lane.b32.xlu0 %v2980, 32
        %v3021 = vpop.permute.xlu0 %3020
        %3022 = vrot.lane.b32.xlu0 %v2981, 32
        %v3023 = vpop.permute.xlu0 %3022
        %3024 = vrot.lane.b32.xlu0 %v2982, 32
        %v3025 = vpop.permute.xlu0 %3024
        %3026 = vrot.lane.b32.xlu0 %v2983, 32
        %v3027 = vpop.permute.xlu0 %3026
        %3028 = vrot.lane.b32.xlu0 %v2984, 32
        %v3029 = vpop.permute.xlu0 %3028
        %3030 = vrot.lane.b32.xlu0 %v2985, 32
        %v3031 = vpop.permute.xlu0 %3030
        %3032 = vrot.lane.b32.xlu0 %v2986, 32
        %v3033 = vpop.permute.xlu0 %3032
        %3034 = vrot.lane.b32.xlu0 %v2987, 32
        %v3035 = vpop.permute.xlu0 %3034
        %v3052 = vsel %vm389, %v2956, %v3005
        %v3053 = vsel %vm389, %v2957, %v3007
        %v3054 = vsel %vm389, %v2958, %v3009
        %v3055 = vsel %vm389, %v2959, %v3011
        %v3056 = vsel %vm389, %v2960, %v3013
        %v3057 = vsel %vm389, %v2961, %v3015
        %v3058 = vsel %vm389, %v2962, %v3017
        %v3059 = vsel %vm389, %v2963, %v3019
        %v3060 = vsel %vm389, %v2964, %v3021
        %v3061 = vsel %vm389, %v2965, %v3023
        %v3062 = vsel %vm389, %v2966, %v3025
        %v3063 = vsel %vm389, %v2967, %v3027
        %v3064 = vsel %vm389, %v2968, %v3029
        %v3065 = vsel %vm389, %v2969, %v3031
        %v3066 = vsel %vm389, %v2970, %v3033
        %v3067 = vsel %vm389, %v2971, %v3035
        %s3068 = scalar_lea.vmem %s4, 448
        %v3069 = vld [vmem:[%s3068] sm:$0xff]
        %v3070 = vld [vmem:[%s3068 + $0x8] sm:$0xff]
        %v3071 = vld [vmem:[%s3068 + $0x10] sm:$0xff]
        %v3072 = vld [vmem:[%s3068 + $0x18] sm:$0xff]
        %v3073 = vld [vmem:[%s3068 + $0x20] sm:$0xff]
        %v3074 = vld [vmem:[%s3068 + $0x28] sm:$0xff]
        %v3075 = vld [vmem:[%s3068 + $0x30] sm:$0xff]
        %v3076 = vld [vmem:[%s3068 + $0x38] sm:$0xff]
        %v3078 = vsel %vm780, %v3052, 0
        %v3081 = vsel %vm780, %v3053, 0
        %v3084 = vsel %vm780, %v3054, 0
        %v3087 = vsel %vm780, %v3055, 0
        %v3090 = vsel %vm780, %v3056, 0
        %v3093 = vsel %vm780, %v3057, 0
        %v3096 = vsel %vm780, %v3058, 0
        %v3099 = vsel %vm780, %v3059, 0
        %v3102 = vsel %vm780, %v3060, 0
        %v3105 = vsel %vm780, %v3061, 0
        %v3108 = vsel %vm780, %v3062, 0
        %v3111 = vsel %vm780, %v3063, 0
        %v3114 = vsel %vm780, %v3064, 0
        %v3117 = vsel %vm780, %v3065, 0
        %v3120 = vsel %vm780, %v3066, 0
        %v3123 = vsel %vm780, %v3067, 0
        %3125 = vmatprep.subr.mxu0 0.0
        %3126 = vmatpush1.msra.mxu0 0.0
        %3127 = vmatprep.subr.mxu0 0.0
        %3128 = vmatpush1.msra.mxu0 0.0
        %3129 = vmatprep.subr.mxu0 0.0
        %3130 = vmatpush1.msra.mxu0 0.0
        %3131 = vmatprep.subr.mxu0 0.0
        %3132 = vmatpush1.msra.mxu0 0.0
        %3133 = vmatprep.subr.mxu0 0.0
        %3134 = vmatpush1.msra.mxu0 0.0
        %3135 = vmatprep.subr.mxu0 0.0
        %3136 = vmatpush1.msra.mxu0 0.0
        %3137 = vmatprep.subr.mxu0 0.0
        %3138 = vmatpush1.msra.mxu0 0.0
        %3139 = vmatprep.subr.mxu0 0.0
        %3140 = vmatpush1.msra.mxu0 0.0
        %3141 = vmatprep.subr.mxu0 0.0
        %3142 = vmatpush1.msra.mxu0 %v3076
        %3143 = vmatprep.subr.mxu0 0.0
        %3144 = vmatpush1.msra.mxu0 %v3075
        %3145 = vmatprep.subr.mxu0 0.0
        %3146 = vmatpush1.msra.mxu0 %v3074
        %3147 = vmatprep.subr.mxu0 0.0
        %3148 = vmatpush1.msra.mxu0 %v3073
        %3149 = vmatprep.subr.mxu0 0.0
        %3150 = vmatpush1.msra.mxu0 %v3072
        %3151 = vmatprep.subr.mxu0 0.0
        %3152 = vmatpush1.msra.mxu0 %v3071
        %3153 = vmatprep.subr.mxu0 0.0
        %3154 = vmatpush1.msra.mxu0 %v3070
        %3155 = vmatprep.subr.mxu0 0.0
        %3156 = vmatpush1.msra.mxu0 %v3069
        %3157 = vmatprep.subr.mxu0 0.0
        %3158 = vmatpush2.msra.mxu0 0.0
        %3159 = vmatprep.subr.mxu0 0.0
        %3160 = vmatpush2.msra.mxu0 0.0
        %3161 = vmatprep.subr.mxu0 0.0
        %3162 = vmatpush2.msra.mxu0 0.0
        %3163 = vmatprep.subr.mxu0 0.0
        %3164 = vmatpush2.msra.mxu0 0.0
        %3165 = vmatprep.subr.mxu0 0.0
        %3166 = vmatpush2.msra.mxu0 0.0
        %3167 = vmatprep.subr.mxu0 0.0
        %3168 = vmatpush2.msra.mxu0 0.0
        %3169 = vmatprep.subr.mxu0 0.0
        %3170 = vmatpush2.msra.mxu0 0.0
        %3171 = vmatprep.subr.mxu0 0.0
        %3172 = vmatpush2.msra.mxu0 0.0
        %3173 = vmatprep.subr.mxu0 0.0
        %3174 = vmatpush2.msra.mxu0 0.0
        %3175 = vmatprep.subr.mxu0 0.0
        %3176 = vmatpush2.msra.mxu0 0.0
        %3177 = vmatprep.subr.mxu0 0.0
        %3178 = vmatpush2.msra.mxu0 0.0
        %3179 = vmatprep.subr.mxu0 0.0
        %3180 = vmatpush2.msra.mxu0 0.0
        %3181 = vmatprep.subr.mxu0 0.0
        %3182 = vmatpush2.msra.mxu0 0.0
        %3183 = vmatprep.subr.mxu0 0.0
        %3184 = vmatpush2.msra.mxu0 0.0
        %3185 = vmatprep.subr.mxu0 0.0
        %3186 = vmatpush2.msra.mxu0 0.0
        %3187 = vmatprep.subr.mxu0 0.0
        %3188 = vmatpush2.msra.mxu0 0.0
        %3189 = vmatprep.mubr.f32.mxu0 0.0
        %3190 = vmatmul.mubr.f32.gmra.mxu0 %v3078
        %v3191 = vpop.f32.mrf.mxu0
        %v3192 = vadd.f32 0.0, %v3191
        %v3193 = vpop.f32.mrf.mxu0
        %3194 = vmatprep.mubr.f32.mxu0 0.0
        %3195 = vmatmul.mubr.f32.gmra.mxu0 %v3081
        %v3196 = vpop.f32.mrf.mxu0
        %v3197 = vadd.f32 0.0, %v3196
        %v3198 = vpop.f32.mrf.mxu0
        %3199 = vmatprep.mubr.f32.mxu0 0.0
        %3200 = vmatmul.mubr.f32.gmra.mxu0 %v3084
        %v3201 = vpop.f32.mrf.mxu0
        %v3202 = vadd.f32 0.0, %v3201
        %v3203 = vpop.f32.mrf.mxu0
        %3204 = vmatprep.mubr.f32.mxu0 0.0
        %3205 = vmatmul.mubr.f32.gmra.mxu0 %v3087
        %v3206 = vpop.f32.mrf.mxu0
        %v3207 = vadd.f32 0.0, %v3206
        %v3208 = vpop.f32.mrf.mxu0
        %3209 = vmatprep.mubr.f32.mxu0 0.0
        %3210 = vmatmul.mubr.f32.gmra.mxu0 %v3090
        %v3211 = vpop.f32.mrf.mxu0
        %v3212 = vadd.f32 0.0, %v3211
        %v3213 = vpop.f32.mrf.mxu0
        %3214 = vmatprep.mubr.f32.mxu0 0.0
        %3215 = vmatmul.mubr.f32.gmra.mxu0 %v3093
        %v3216 = vpop.f32.mrf.mxu0
        %v3217 = vadd.f32 0.0, %v3216
        %v3218 = vpop.f32.mrf.mxu0
        %3219 = vmatprep.mubr.f32.mxu0 0.0
        %3220 = vmatmul.mubr.f32.gmra.mxu0 %v3096
        %v3221 = vpop.f32.mrf.mxu0
        %v3222 = vadd.f32 0.0, %v3221
        %v3223 = vpop.f32.mrf.mxu0
        %3224 = vmatprep.mubr.f32.mxu0 0.0
        %3225 = vmatmul.mubr.f32.gmra.mxu0 %v3099
        %v3226 = vpop.f32.mrf.mxu0
        %v3227 = vadd.f32 0.0, %v3226
        %v3228 = vpop.f32.mrf.mxu0
        %3229 = vmatprep.mubr.f32.mxu0 0.0
        %3230 = vmatmul.mubr.f32.gmra.mxu0 %v3102
        %v3231 = vpop.f32.mrf.mxu0
        %v3232 = vadd.f32 0.0, %v3231
        %v3233 = vpop.f32.mrf.mxu0
        %3234 = vmatprep.mubr.f32.mxu0 0.0
        %3235 = vmatmul.mubr.f32.gmra.mxu0 %v3105
        %v3236 = vpop.f32.mrf.mxu0
        %v3237 = vadd.f32 0.0, %v3236
        %v3238 = vpop.f32.mrf.mxu0
        %3239 = vmatprep.mubr.f32.mxu0 0.0
        %3240 = vmatmul.mubr.f32.gmra.mxu0 %v3108
        %v3241 = vpop.f32.mrf.mxu0
        %v3242 = vadd.f32 0.0, %v3241
        %v3243 = vpop.f32.mrf.mxu0
        %3244 = vmatprep.mubr.f32.mxu0 0.0
        %3245 = vmatmul.mubr.f32.gmra.mxu0 %v3111
        %v3246 = vpop.f32.mrf.mxu0
        %v3247 = vadd.f32 0.0, %v3246
        %v3248 = vpop.f32.mrf.mxu0
        %3249 = vmatprep.mubr.f32.mxu0 0.0
        %3250 = vmatmul.mubr.f32.gmra.mxu0 %v3114
        %v3251 = vpop.f32.mrf.mxu0
        %v3252 = vadd.f32 0.0, %v3251
        %v3253 = vpop.f32.mrf.mxu0
        %3254 = vmatprep.mubr.f32.mxu0 0.0
        %3255 = vmatmul.mubr.f32.gmra.mxu0 %v3117
        %v3256 = vpop.f32.mrf.mxu0
        %v3257 = vadd.f32 0.0, %v3256
        %v3258 = vpop.f32.mrf.mxu0
        %3259 = vmatprep.mubr.f32.mxu0 0.0
        %3260 = vmatmul.mubr.f32.gmra.mxu0 %v3120
        %v3261 = vpop.f32.mrf.mxu0
        %v3262 = vadd.f32 0.0, %v3261
        %v3263 = vpop.f32.mrf.mxu0
        %3264 = vmatprep.mubr.f32.mxu0 0.0
        %3265 = vmatmul.mubr.f32.gmra.mxu0 %v3123
        %v3266 = vpop.f32.mrf.mxu0
        %v3267 = vadd.f32 0.0, %v3266
        %v3268 = vpop.f32.mrf.mxu0
        %3269 = vdwg.mxu0
        %v3270 = vadd.f32 %v2940, %v3192
        %v3271 = vadd.f32 %v2941, %v3197
        %v3272 = vadd.f32 %v2942, %v3202
        %v3273 = vadd.f32 %v2943, %v3207
        %v3274 = vadd.f32 %v2944, %v3212
        %v3275 = vadd.f32 %v2945, %v3217
        %v3276 = vadd.f32 %v2946, %v3222
        %v3277 = vadd.f32 %v2947, %v3227
        %v3278 = vadd.f32 %v2948, %v3232
        %v3279 = vadd.f32 %v2949, %v3237
        %v3280 = vadd.f32 %v2950, %v3242
        %v3281 = vadd.f32 %v2951, %v3247
        %v3282 = vadd.f32 %v2952, %v3252
        %v3283 = vadd.f32 %v2953, %v3257
        %v3284 = vadd.f32 %v2954, %v3262
        %v3285 = vadd.f32 %v2955, %v3267
        %v3286 = vld [vmem:[%s2624 + $0x3] sm:$0xff]
        %v3287 = vld [vmem:[%s2624 + $0x13] sm:$0xff]
        %v3288 = vld [vmem:[%s2624 + $0x23] sm:$0xff]
        %v3289 = vld [vmem:[%s2624 + $0x33] sm:$0xff]
        %v3290 = vld [vmem:[%s2624 + $0x43] sm:$0xff]
        %v3291 = vld [vmem:[%s2624 + $0x53] sm:$0xff]
        %v3292 = vld [vmem:[%s2624 + $0x63] sm:$0xff]
        %v3293 = vld [vmem:[%s2624 + $0x73] sm:$0xff]
        %v3294 = vld [vmem:[%s2624 + $0xc3] sm:$0xff]
        %v3295 = vld [vmem:[%s2624 + $0xd3] sm:$0xff]
        %v3296 = vld [vmem:[%s2624 + $0xe3] sm:$0xff]
        %v3297 = vld [vmem:[%s2624 + $0xf3] sm:$0xff]
        %v3298 = vld [vmem:[%s2624 + $0x103] sm:$0xff]
        %v3299 = vld [vmem:[%s2624 + $0x113] sm:$0xff]
        %v3300 = vld [vmem:[%s2624 + $0x123] sm:$0xff]
        %v3301 = vld [vmem:[%s2624 + $0x133] sm:$0xff]
        %v3302 = vld [vmem:[%s2641 + $0x4] sm:$0xff]
        %v3303 = vld [vmem:[%s2641 + $0x14] sm:$0xff]
        %v3304 = vld [vmem:[%s2641 + $0x24] sm:$0xff]
        %v3305 = vld [vmem:[%s2641 + $0x34] sm:$0xff]
        %v3306 = vld [vmem:[%s2641 + $0x44] sm:$0xff]
        %v3307 = vld [vmem:[%s2641 + $0x54] sm:$0xff]
        %v3308 = vld [vmem:[%s2641 + $0x64] sm:$0xff]
        %v3309 = vld [vmem:[%s2641 + $0x74] sm:$0xff]
        %v3310 = vld [vmem:[%s2641 + $0xc4] sm:$0xff]
        %v3311 = vld [vmem:[%s2641 + $0xd4] sm:$0xff]
        %v3312 = vld [vmem:[%s2641 + $0xe4] sm:$0xff]
        %v3313 = vld [vmem:[%s2641 + $0xf4] sm:$0xff]
        %v3314 = vld [vmem:[%s2641 + $0x104] sm:$0xff]
        %v3315 = vld [vmem:[%s2641 + $0x114] sm:$0xff]
        %v3316 = vld [vmem:[%s2641 + $0x124] sm:$0xff]
        %v3317 = vld [vmem:[%s2641 + $0x134] sm:$0xff]
        %3334 = vrot.lane.b32.xlu0 %v3302, 32
        %v3335 = vpop.permute.xlu0 %3334
        %3336 = vrot.lane.b32.xlu0 %v3303, 32
        %v3337 = vpop.permute.xlu0 %3336
        %3338 = vrot.lane.b32.xlu0 %v3304, 32
        %v3339 = vpop.permute.xlu0 %3338
        %3340 = vrot.lane.b32.xlu0 %v3305, 32
        %v3341 = vpop.permute.xlu0 %3340
        %3342 = vrot.lane.b32.xlu0 %v3306, 32
        %v3343 = vpop.permute.xlu0 %3342
        %3344 = vrot.lane.b32.xlu0 %v3307, 32
        %v3345 = vpop.permute.xlu0 %3344
        %3346 = vrot.lane.b32.xlu0 %v3308, 32
        %v3347 = vpop.permute.xlu0 %3346
        %3348 = vrot.lane.b32.xlu0 %v3309, 32
        %v3349 = vpop.permute.xlu0 %3348
        %3350 = vrot.lane.b32.xlu0 %v3310, 32
        %v3351 = vpop.permute.xlu0 %3350
        %3352 = vrot.lane.b32.xlu0 %v3311, 32
        %v3353 = vpop.permute.xlu0 %3352
        %3354 = vrot.lane.b32.xlu0 %v3312, 32
        %v3355 = vpop.permute.xlu0 %3354
        %3356 = vrot.lane.b32.xlu0 %v3313, 32
        %v3357 = vpop.permute.xlu0 %3356
        %3358 = vrot.lane.b32.xlu0 %v3314, 32
        %v3359 = vpop.permute.xlu0 %3358
        %3360 = vrot.lane.b32.xlu0 %v3315, 32
        %v3361 = vpop.permute.xlu0 %3360
        %3362 = vrot.lane.b32.xlu0 %v3316, 32
        %v3363 = vpop.permute.xlu0 %3362
        %3364 = vrot.lane.b32.xlu0 %v3317, 32
        %v3365 = vpop.permute.xlu0 %3364
        %v3382 = vsel %vm389, %v3286, %v3335
        %v3383 = vsel %vm389, %v3287, %v3337
        %v3384 = vsel %vm389, %v3288, %v3339
        %v3385 = vsel %vm389, %v3289, %v3341
        %v3386 = vsel %vm389, %v3290, %v3343
        %v3387 = vsel %vm389, %v3291, %v3345
        %v3388 = vsel %vm389, %v3292, %v3347
        %v3389 = vsel %vm389, %v3293, %v3349
        %v3390 = vsel %vm389, %v3294, %v3351
        %v3391 = vsel %vm389, %v3295, %v3353
        %v3392 = vsel %vm389, %v3296, %v3355
        %v3393 = vsel %vm389, %v3297, %v3357
        %v3394 = vsel %vm389, %v3298, %v3359
        %v3395 = vsel %vm389, %v3299, %v3361
        %v3396 = vsel %vm389, %v3300, %v3363
        %v3397 = vsel %vm389, %v3301, %v3365
        %s3398 = scalar_lea.vmem %s4, 512
        %v3399 = vld [vmem:[%s3398] sm:$0xff]
        %v3400 = vld [vmem:[%s3398 + $0x8] sm:$0xff]
        %v3401 = vld [vmem:[%s3398 + $0x10] sm:$0xff]
        %v3402 = vld [vmem:[%s3398 + $0x18] sm:$0xff]
        %v3403 = vld [vmem:[%s3398 + $0x20] sm:$0xff]
        %v3404 = vld [vmem:[%s3398 + $0x28] sm:$0xff]
        %v3405 = vld [vmem:[%s3398 + $0x30] sm:$0xff]
        %v3406 = vld [vmem:[%s3398 + $0x38] sm:$0xff]
        %v3408 = vsel %vm780, %v3382, 0
        %v3411 = vsel %vm780, %v3383, 0
        %v3414 = vsel %vm780, %v3384, 0
        %v3417 = vsel %vm780, %v3385, 0
        %v3420 = vsel %vm780, %v3386, 0
        %v3423 = vsel %vm780, %v3387, 0
        %v3426 = vsel %vm780, %v3388, 0
        %v3429 = vsel %vm780, %v3389, 0
        %v3432 = vsel %vm780, %v3390, 0
        %v3435 = vsel %vm780, %v3391, 0
        %v3438 = vsel %vm780, %v3392, 0
        %v3441 = vsel %vm780, %v3393, 0
        %v3444 = vsel %vm780, %v3394, 0
        %v3447 = vsel %vm780, %v3395, 0
        %v3450 = vsel %vm780, %v3396, 0
        %v3453 = vsel %vm780, %v3397, 0
        %3455 = vmatprep.subr.mxu0 0.0
        %3456 = vmatpush1.msra.mxu0 0.0
        %3457 = vmatprep.subr.mxu0 0.0
        %3458 = vmatpush1.msra.mxu0 0.0
        %3459 = vmatprep.subr.mxu0 0.0
        %3460 = vmatpush1.msra.mxu0 0.0
        %3461 = vmatprep.subr.mxu0 0.0
        %3462 = vmatpush1.msra.mxu0 0.0
        %3463 = vmatprep.subr.mxu0 0.0
        %3464 = vmatpush1.msra.mxu0 0.0
        %3465 = vmatprep.subr.mxu0 0.0
        %3466 = vmatpush1.msra.mxu0 0.0
        %3467 = vmatprep.subr.mxu0 0.0
        %3468 = vmatpush1.msra.mxu0 0.0
        %3469 = vmatprep.subr.mxu0 0.0
        %3470 = vmatpush1.msra.mxu0 0.0
        %3471 = vmatprep.subr.mxu0 0.0
        %3472 = vmatpush1.msra.mxu0 %v3406
        %3473 = vmatprep.subr.mxu0 0.0
        %3474 = vmatpush1.msra.mxu0 %v3405
        %3475 = vmatprep.subr.mxu0 0.0
        %3476 = vmatpush1.msra.mxu0 %v3404
        %3477 = vmatprep.subr.mxu0 0.0
        %3478 = vmatpush1.msra.mxu0 %v3403
        %3479 = vmatprep.subr.mxu0 0.0
        %3480 = vmatpush1.msra.mxu0 %v3402
        %3481 = vmatprep.subr.mxu0 0.0
        %3482 = vmatpush1.msra.mxu0 %v3401
        %3483 = vmatprep.subr.mxu0 0.0
        %3484 = vmatpush1.msra.mxu0 %v3400
        %3485 = vmatprep.subr.mxu0 0.0
        %3486 = vmatpush1.msra.mxu0 %v3399
        %3487 = vmatprep.subr.mxu0 0.0
        %3488 = vmatpush2.msra.mxu0 0.0
        %3489 = vmatprep.subr.mxu0 0.0
        %3490 = vmatpush2.msra.mxu0 0.0
        %3491 = vmatprep.subr.mxu0 0.0
        %3492 = vmatpush2.msra.mxu0 0.0
        %3493 = vmatprep.subr.mxu0 0.0
        %3494 = vmatpush2.msra.mxu0 0.0
        %3495 = vmatprep.subr.mxu0 0.0
        %3496 = vmatpush2.msra.mxu0 0.0
        %3497 = vmatprep.subr.mxu0 0.0
        %3498 = vmatpush2.msra.mxu0 0.0
        %3499 = vmatprep.subr.mxu0 0.0
        %3500 = vmatpush2.msra.mxu0 0.0
        %3501 = vmatprep.subr.mxu0 0.0
        %3502 = vmatpush2.msra.mxu0 0.0
        %3503 = vmatprep.subr.mxu0 0.0
        %3504 = vmatpush2.msra.mxu0 0.0
        %3505 = vmatprep.subr.mxu0 0.0
        %3506 = vmatpush2.msra.mxu0 0.0
        %3507 = vmatprep.subr.mxu0 0.0
        %3508 = vmatpush2.msra.mxu0 0.0
        %3509 = vmatprep.subr.mxu0 0.0
        %3510 = vmatpush2.msra.mxu0 0.0
        %3511 = vmatprep.subr.mxu0 0.0
        %3512 = vmatpush2.msra.mxu0 0.0
        %3513 = vmatprep.subr.mxu0 0.0
        %3514 = vmatpush2.msra.mxu0 0.0
        %3515 = vmatprep.subr.mxu0 0.0
        %3516 = vmatpush2.msra.mxu0 0.0
        %3517 = vmatprep.subr.mxu0 0.0
        %3518 = vmatpush2.msra.mxu0 0.0
        %3519 = vmatprep.mubr.f32.mxu0 0.0
        %3520 = vmatmul.mubr.f32.gmra.mxu0 %v3408
        %v3521 = vpop.f32.mrf.mxu0
        %v3522 = vadd.f32 0.0, %v3521
        %v3523 = vpop.f32.mrf.mxu0
        %3524 = vmatprep.mubr.f32.mxu0 0.0
        %3525 = vmatmul.mubr.f32.gmra.mxu0 %v3411
        %v3526 = vpop.f32.mrf.mxu0
        %v3527 = vadd.f32 0.0, %v3526
        %v3528 = vpop.f32.mrf.mxu0
        %3529 = vmatprep.mubr.f32.mxu0 0.0
        %3530 = vmatmul.mubr.f32.gmra.mxu0 %v3414
        %v3531 = vpop.f32.mrf.mxu0
        %v3532 = vadd.f32 0.0, %v3531
        %v3533 = vpop.f32.mrf.mxu0
        %3534 = vmatprep.mubr.f32.mxu0 0.0
        %3535 = vmatmul.mubr.f32.gmra.mxu0 %v3417
        %v3536 = vpop.f32.mrf.mxu0
        %v3537 = vadd.f32 0.0, %v3536
        %v3538 = vpop.f32.mrf.mxu0
        %3539 = vmatprep.mubr.f32.mxu0 0.0
        %3540 = vmatmul.mubr.f32.gmra.mxu0 %v3420
        %v3541 = vpop.f32.mrf.mxu0
        %v3542 = vadd.f32 0.0, %v3541
        %v3543 = vpop.f32.mrf.mxu0
        %3544 = vmatprep.mubr.f32.mxu0 0.0
        %3545 = vmatmul.mubr.f32.gmra.mxu0 %v3423
        %v3546 = vpop.f32.mrf.mxu0
        %v3547 = vadd.f32 0.0, %v3546
        %v3548 = vpop.f32.mrf.mxu0
        %3549 = vmatprep.mubr.f32.mxu0 0.0
        %3550 = vmatmul.mubr.f32.gmra.mxu0 %v3426
        %v3551 = vpop.f32.mrf.mxu0
        %v3552 = vadd.f32 0.0, %v3551
        %v3553 = vpop.f32.mrf.mxu0
        %3554 = vmatprep.mubr.f32.mxu0 0.0
        %3555 = vmatmul.mubr.f32.gmra.mxu0 %v3429
        %v3556 = vpop.f32.mrf.mxu0
        %v3557 = vadd.f32 0.0, %v3556
        %v3558 = vpop.f32.mrf.mxu0
        %3559 = vmatprep.mubr.f32.mxu0 0.0
        %3560 = vmatmul.mubr.f32.gmra.mxu0 %v3432
        %v3561 = vpop.f32.mrf.mxu0
        %v3562 = vadd.f32 0.0, %v3561
        %v3563 = vpop.f32.mrf.mxu0
        %3564 = vmatprep.mubr.f32.mxu0 0.0
        %3565 = vmatmul.mubr.f32.gmra.mxu0 %v3435
        %v3566 = vpop.f32.mrf.mxu0
        %v3567 = vadd.f32 0.0, %v3566
        %v3568 = vpop.f32.mrf.mxu0
        %3569 = vmatprep.mubr.f32.mxu0 0.0
        %3570 = vmatmul.mubr.f32.gmra.mxu0 %v3438
        %v3571 = vpop.f32.mrf.mxu0
        %v3572 = vadd.f32 0.0, %v3571
        %v3573 = vpop.f32.mrf.mxu0
        %3574 = vmatprep.mubr.f32.mxu0 0.0
        %3575 = vmatmul.mubr.f32.gmra.mxu0 %v3441
        %v3576 = vpop.f32.mrf.mxu0
        %v3577 = vadd.f32 0.0, %v3576
        %v3578 = vpop.f32.mrf.mxu0
        %3579 = vmatprep.mubr.f32.mxu0 0.0
        %3580 = vmatmul.mubr.f32.gmra.mxu0 %v3444
        %v3581 = vpop.f32.mrf.mxu0
        %v3582 = vadd.f32 0.0, %v3581
        %v3583 = vpop.f32.mrf.mxu0
        %3584 = vmatprep.mubr.f32.mxu0 0.0
        %3585 = vmatmul.mubr.f32.gmra.mxu0 %v3447
        %v3586 = vpop.f32.mrf.mxu0
        %v3587 = vadd.f32 0.0, %v3586
        %v3588 = vpop.f32.mrf.mxu0
        %3589 = vmatprep.mubr.f32.mxu0 0.0
        %3590 = vmatmul.mubr.f32.gmra.mxu0 %v3450
        %v3591 = vpop.f32.mrf.mxu0
        %v3592 = vadd.f32 0.0, %v3591
        %v3593 = vpop.f32.mrf.mxu0
        %3594 = vmatprep.mubr.f32.mxu0 0.0
        %3595 = vmatmul.mubr.f32.gmra.mxu0 %v3453
        %v3596 = vpop.f32.mrf.mxu0
        %v3597 = vadd.f32 0.0, %v3596
        %v3598 = vpop.f32.mrf.mxu0
        %3599 = vdwg.mxu0
        %v3600 = vadd.f32 %v3270, %v3522
        %v3601 = vadd.f32 %v3271, %v3527
        %v3602 = vadd.f32 %v3272, %v3532
        %v3603 = vadd.f32 %v3273, %v3537
        %v3604 = vadd.f32 %v3274, %v3542
        %v3605 = vadd.f32 %v3275, %v3547
        %v3606 = vadd.f32 %v3276, %v3552
        %v3607 = vadd.f32 %v3277, %v3557
        %v3608 = vadd.f32 %v3278, %v3562
        %v3609 = vadd.f32 %v3279, %v3567
        %v3610 = vadd.f32 %v3280, %v3572
        %v3611 = vadd.f32 %v3281, %v3577
        %v3612 = vadd.f32 %v3282, %v3582
        %v3613 = vadd.f32 %v3283, %v3587
        %v3614 = vadd.f32 %v3284, %v3592
        %v3615 = vadd.f32 %v3285, %v3597
        %v3616 = vld [vmem:[%s6] sm:$0xff]
        %v3617 = vld [vmem:[%s6 + $0x8] sm:$0xff]
        %v3618 = vld [vmem:[%s6 + $0x10] sm:$0xff]
        %v3619 = vld [vmem:[%s6 + $0x18] sm:$0xff]
        %v3620 = vld [vmem:[%s7] sm:$0x1]
        %v3622 = vlaneseq
        %v3623 = vshrl.u32 %v3622, 7
        %v3624 = vsub.s32 0, %v3623
        %v3625 = vrot.slane %v3620, %v3624
        %v3628 = vsel %vm389, %v3600, 0
        %v3631 = vsel %vm389, %v3601, 0
        %v3634 = vsel %vm389, %v3602, 0
        %v3637 = vsel %vm389, %v3603, 0
        %v3640 = vsel %vm389, %v3604, 0
        %v3643 = vsel %vm389, %v3605, 0
        %v3646 = vsel %vm389, %v3606, 0
        %v3649 = vsel %vm389, %v3607, 0
        %v3652 = vsel %vm389, %v3608, 0
        %v3655 = vsel %vm389, %v3609, 0
        %v3658 = vsel %vm389, %v3610, 0
        %v3661 = vsel %vm389, %v3611, 0
        %v3664 = vsel %vm389, %v3612, 0
        %v3667 = vsel %vm389, %v3613, 0
        %v3670 = vsel %vm389, %v3614, 0
        %v3673 = vsel %vm389, %v3615, 0
        %3675 = vmatprep.subr.mxu0 0.0
        %3676 = vmatpush1.msra.mxu0 0.0
        %3677 = vmatprep.subr.mxu0 0.0
        %3678 = vmatpush1.msra.mxu0 0.0
        %3679 = vmatprep.subr.mxu0 0.0
        %3680 = vmatpush1.msra.mxu0 0.0
        %3681 = vmatprep.subr.mxu0 0.0
        %3682 = vmatpush1.msra.mxu0 0.0
        %3683 = vmatprep.subr.mxu0 0.0
        %3684 = vmatpush1.msra.mxu0 0.0
        %3685 = vmatprep.subr.mxu0 0.0
        %3686 = vmatpush1.msra.mxu0 0.0
        %3687 = vmatprep.subr.mxu0 0.0
        %3688 = vmatpush1.msra.mxu0 0.0
        %3689 = vmatprep.subr.mxu0 0.0
        %3690 = vmatpush1.msra.mxu0 0.0
        %3691 = vmatprep.subr.mxu0 0.0
        %3692 = vmatpush1.msra.mxu0 0.0
        %3693 = vmatprep.subr.mxu0 0.0
        %3694 = vmatpush1.msra.mxu0 0.0
        %3695 = vmatprep.subr.mxu0 0.0
        %3696 = vmatpush1.msra.mxu0 0.0
        %3697 = vmatprep.subr.mxu0 0.0
        %3698 = vmatpush1.msra.mxu0 0.0
        %3699 = vmatprep.subr.mxu0 0.0
        %3700 = vmatpush1.msra.mxu0 %v3619
        %3701 = vmatprep.subr.mxu0 0.0
        %3702 = vmatpush1.msra.mxu0 %v3618
        %3703 = vmatprep.subr.mxu0 0.0
        %3704 = vmatpush1.msra.mxu0 %v3617
        %3705 = vmatprep.subr.mxu0 0.0
        %3706 = vmatpush1.msra.mxu0 %v3616
        %3707 = vmatprep.subr.mxu0 0.0
        %3708 = vmatpush2.msra.mxu0 0.0
        %3709 = vmatprep.subr.mxu0 0.0
        %3710 = vmatpush2.msra.mxu0 0.0
        %3711 = vmatprep.subr.mxu0 0.0
        %3712 = vmatpush2.msra.mxu0 0.0
        %3713 = vmatprep.subr.mxu0 0.0
        %3714 = vmatpush2.msra.mxu0 0.0
        %3715 = vmatprep.subr.mxu0 0.0
        %3716 = vmatpush2.msra.mxu0 0.0
        %3717 = vmatprep.subr.mxu0 0.0
        %3718 = vmatpush2.msra.mxu0 0.0
        %3719 = vmatprep.subr.mxu0 0.0
        %3720 = vmatpush2.msra.mxu0 0.0
        %3721 = vmatprep.subr.mxu0 0.0
        %3722 = vmatpush2.msra.mxu0 0.0
        %3723 = vmatprep.subr.mxu0 0.0
        %3724 = vmatpush2.msra.mxu0 0.0
        %3725 = vmatprep.subr.mxu0 0.0
        %3726 = vmatpush2.msra.mxu0 0.0
        %3727 = vmatprep.subr.mxu0 0.0
        %3728 = vmatpush2.msra.mxu0 0.0
        %3729 = vmatprep.subr.mxu0 0.0
        %3730 = vmatpush2.msra.mxu0 0.0
        %3731 = vmatprep.subr.mxu0 0.0
        %3732 = vmatpush2.msra.mxu0 0.0
        %3733 = vmatprep.subr.mxu0 0.0
        %3734 = vmatpush2.msra.mxu0 0.0
        %3735 = vmatprep.subr.mxu0 0.0
        %3736 = vmatpush2.msra.mxu0 0.0
        %3737 = vmatprep.subr.mxu0 0.0
        %3738 = vmatpush2.msra.mxu0 0.0
        %3739 = vmatprep.mubr.f32.mxu0 0.0
        %3740 = vmatmul.mubr.f32.gmra.mxu0 %v3628
        %v3741 = vpop.f32.mrf.mxu0
        %v3742 = vadd.f32 %v3625, %v3741
        %v3743 = vpop.f32.mrf.mxu0
        %3744 = vmatprep.mubr.f32.mxu0 0.0
        %3745 = vmatmul.mubr.f32.gmra.mxu0 %v3631
        %v3746 = vpop.f32.mrf.mxu0
        %v3747 = vadd.f32 %v3625, %v3746
        %v3748 = vpop.f32.mrf.mxu0
        %3749 = vmatprep.mubr.f32.mxu0 0.0
        %3750 = vmatmul.mubr.f32.gmra.mxu0 %v3634
        %v3751 = vpop.f32.mrf.mxu0
        %v3752 = vadd.f32 %v3625, %v3751
        %v3753 = vpop.f32.mrf.mxu0
        %3754 = vmatprep.mubr.f32.mxu0 0.0
        %3755 = vmatmul.mubr.f32.gmra.mxu0 %v3637
        %v3756 = vpop.f32.mrf.mxu0
        %v3757 = vadd.f32 %v3625, %v3756
        %v3758 = vpop.f32.mrf.mxu0
        %3759 = vmatprep.mubr.f32.mxu0 0.0
        %3760 = vmatmul.mubr.f32.gmra.mxu0 %v3640
        %v3761 = vpop.f32.mrf.mxu0
        %v3762 = vadd.f32 %v3625, %v3761
        %v3763 = vpop.f32.mrf.mxu0
        %3764 = vmatprep.mubr.f32.mxu0 0.0
        %3765 = vmatmul.mubr.f32.gmra.mxu0 %v3643
        %v3766 = vpop.f32.mrf.mxu0
        %v3767 = vadd.f32 %v3625, %v3766
        %v3768 = vpop.f32.mrf.mxu0
        %3769 = vmatprep.mubr.f32.mxu0 0.0
        %3770 = vmatmul.mubr.f32.gmra.mxu0 %v3646
        %v3771 = vpop.f32.mrf.mxu0
        %v3772 = vadd.f32 %v3625, %v3771
        %v3773 = vpop.f32.mrf.mxu0
        %3774 = vmatprep.mubr.f32.mxu0 0.0
        %3775 = vmatmul.mubr.f32.gmra.mxu0 %v3649
        %v3776 = vpop.f32.mrf.mxu0
        %v3777 = vadd.f32 %v3625, %v3776
        %v3778 = vpop.f32.mrf.mxu0
        %3779 = vmatprep.mubr.f32.mxu0 0.0
        %3780 = vmatmul.mubr.f32.gmra.mxu0 %v3652
        %v3781 = vpop.f32.mrf.mxu0
        %v3782 = vadd.f32 %v3625, %v3781
        %v3783 = vpop.f32.mrf.mxu0
        %3784 = vmatprep.mubr.f32.mxu0 0.0
        %3785 = vmatmul.mubr.f32.gmra.mxu0 %v3655
        %v3786 = vpop.f32.mrf.mxu0
        %v3787 = vadd.f32 %v3625, %v3786
        %v3788 = vpop.f32.mrf.mxu0
        %3789 = vmatprep.mubr.f32.mxu0 0.0
        %3790 = vmatmul.mubr.f32.gmra.mxu0 %v3658
        %v3791 = vpop.f32.mrf.mxu0
        %v3792 = vadd.f32 %v3625, %v3791
        %v3793 = vpop.f32.mrf.mxu0
        %3794 = vmatprep.mubr.f32.mxu0 0.0
        %3795 = vmatmul.mubr.f32.gmra.mxu0 %v3661
        %v3796 = vpop.f32.mrf.mxu0
        %v3797 = vadd.f32 %v3625, %v3796
        %v3798 = vpop.f32.mrf.mxu0
        %3799 = vmatprep.mubr.f32.mxu0 0.0
        %3800 = vmatmul.mubr.f32.gmra.mxu0 %v3664
        %v3801 = vpop.f32.mrf.mxu0
        %v3802 = vadd.f32 %v3625, %v3801
        %v3803 = vpop.f32.mrf.mxu0
        %3804 = vmatprep.mubr.f32.mxu0 0.0
        %3805 = vmatmul.mubr.f32.gmra.mxu0 %v3667
        %v3806 = vpop.f32.mrf.mxu0
        %v3807 = vadd.f32 %v3625, %v3806
        %v3808 = vpop.f32.mrf.mxu0
        %3809 = vmatprep.mubr.f32.mxu0 0.0
        %3810 = vmatmul.mubr.f32.gmra.mxu0 %v3670
        %v3811 = vpop.f32.mrf.mxu0
        %v3812 = vadd.f32 %v3625, %v3811
        %v3813 = vpop.f32.mrf.mxu0
        %3814 = vmatprep.mubr.f32.mxu0 0.0
        %3815 = vmatmul.mubr.f32.gmra.mxu0 %v3673
        %v3816 = vpop.f32.mrf.mxu0
        %v3817 = vadd.f32 %v3625, %v3816
        %v3818 = vpop.f32.mrf.mxu0
        %3819 = vdwg.mxu0
        %v3820 = vsel %vm389, %v3742, 0.0
        %v3821 = vsel %vm389, %v3747, 0.0
        %v3822 = vadd.f32 %v3820, %v3821
        %v3823 = vsel %vm389, %v3752, 0.0
        %v3824 = vadd.f32 %v3822, %v3823
        %v3825 = vsel %vm389, %v3757, 0.0
        %v3826 = vadd.f32 %v3824, %v3825
        %v3827 = vsel %vm389, %v3762, 0.0
        %v3828 = vadd.f32 %v3826, %v3827
        %v3829 = vsel %vm389, %v3767, 0.0
        %v3830 = vadd.f32 %v3828, %v3829
        %v3831 = vsel %vm389, %v3772, 0.0
        %v3832 = vadd.f32 %v3830, %v3831
        %v3833 = vsel %vm389, %v3777, 0.0
        %v3834 = vadd.f32 %v3832, %v3833
        %3835 = vadd.xlane.f32.xlu0 %v3834
        %v3836 = vpop.xlane.xlu0 %3835
        %v3837 = vrot.slane %v3836, 4
        %v3838 = vadd.f32 %v3836, %v3837
        %v3839 = vrot.slane %v3838, 2
        %v3840 = vadd.f32 %v3838, %v3839
        %v3841 = vrot.slane %v3840, 1
        %v3842 = vadd.f32 %v3840, %v3841
        %s3843 = vtos %v3842
        %v3844 = vstv %s3843
        %v3845 = vsel %vm389, %v3782, 0.0
        %v3846 = vsel %vm389, %v3787, 0.0
        %v3847 = vadd.f32 %v3845, %v3846
        %v3848 = vsel %vm389, %v3792, 0.0
        %v3849 = vadd.f32 %v3847, %v3848
        %v3850 = vsel %vm389, %v3797, 0.0
        %v3851 = vadd.f32 %v3849, %v3850
        %v3852 = vsel %vm389, %v3802, 0.0
        %v3853 = vadd.f32 %v3851, %v3852
        %v3854 = vsel %vm389, %v3807, 0.0
        %v3855 = vadd.f32 %v3853, %v3854
        %v3856 = vsel %vm389, %v3812, 0.0
        %v3857 = vadd.f32 %v3855, %v3856
        %v3858 = vsel %vm389, %v3817, 0.0
        %v3859 = vadd.f32 %v3857, %v3858
        %3860 = vadd.xlane.f32.xlu0 %v3859
        %v3861 = vpop.xlane.xlu0 %3860
        %v3862 = vrot.slane %v3861, 4
        %v3863 = vadd.f32 %v3861, %v3862
        %v3864 = vrot.slane %v3863, 2
        %v3865 = vadd.f32 %v3863, %v3864
        %v3866 = vrot.slane %v3865, 1
        %v3867 = vadd.f32 %v3865, %v3866
        %s3868 = vtos %v3867
        %v3869 = vstv %s3868
        %v3870 = vmul.f32 %v3742, %v3742
        %v3871 = vmul.f32 %v3747, %v3747
        %v3872 = vmul.f32 %v3752, %v3752
        %v3873 = vmul.f32 %v3757, %v3757
        %v3874 = vmul.f32 %v3762, %v3762
        %v3875 = vmul.f32 %v3767, %v3767
        %v3876 = vmul.f32 %v3772, %v3772
        %v3877 = vmul.f32 %v3777, %v3777
        %v3878 = vsel %vm389, %v3870, 0.0
        %v3879 = vsel %vm389, %v3871, 0.0
        %v3880 = vadd.f32 %v3878, %v3879
        %v3881 = vsel %vm389, %v3872, 0.0
        %v3882 = vadd.f32 %v3880, %v3881
        %v3883 = vsel %vm389, %v3873, 0.0
        %v3884 = vadd.f32 %v3882, %v3883
        %v3885 = vsel %vm389, %v3874, 0.0
        %v3886 = vadd.f32 %v3884, %v3885
        %v3887 = vsel %vm389, %v3875, 0.0
        %v3888 = vadd.f32 %v3886, %v3887
        %v3889 = vsel %vm389, %v3876, 0.0
        %v3890 = vadd.f32 %v3888, %v3889
        %v3891 = vsel %vm389, %v3877, 0.0
        %v3892 = vadd.f32 %v3890, %v3891
        %3893 = vadd.xlane.f32.xlu0 %v3892
        %v3894 = vpop.xlane.xlu0 %3893
        %v3895 = vrot.slane %v3894, 4
        %v3896 = vadd.f32 %v3894, %v3895
        %v3897 = vrot.slane %v3896, 2
        %v3898 = vadd.f32 %v3896, %v3897
        %v3899 = vrot.slane %v3898, 1
        %v3900 = vadd.f32 %v3898, %v3899
        %s3901 = vtos %v3900
        %v3902 = vstv %s3901
        %v3903 = vmul.f32 %v3782, %v3782
        %v3904 = vmul.f32 %v3787, %v3787
        %v3905 = vmul.f32 %v3792, %v3792
        %v3906 = vmul.f32 %v3797, %v3797
        %v3907 = vmul.f32 %v3802, %v3802
        %v3908 = vmul.f32 %v3807, %v3807
        %v3909 = vmul.f32 %v3812, %v3812
        %v3910 = vmul.f32 %v3817, %v3817
        %v3911 = vsel %vm389, %v3903, 0.0
        %v3912 = vsel %vm389, %v3904, 0.0
        %v3913 = vadd.f32 %v3911, %v3912
        %v3914 = vsel %vm389, %v3905, 0.0
        %v3915 = vadd.f32 %v3913, %v3914
        %v3916 = vsel %vm389, %v3906, 0.0
        %v3917 = vadd.f32 %v3915, %v3916
        %v3918 = vsel %vm389, %v3907, 0.0
        %v3919 = vadd.f32 %v3917, %v3918
        %v3920 = vsel %vm389, %v3908, 0.0
        %v3921 = vadd.f32 %v3919, %v3920
        %v3922 = vsel %vm389, %v3909, 0.0
        %v3923 = vadd.f32 %v3921, %v3922
        %v3924 = vsel %vm389, %v3910, 0.0
        %v3925 = vadd.f32 %v3923, %v3924
        %3926 = vadd.xlane.f32.xlu0 %v3925
        %v3927 = vpop.xlane.xlu0 %3926
        %v3928 = vrot.slane %v3927, 4
        %v3929 = vadd.f32 %v3927, %v3928
        %v3930 = vrot.slane %v3929, 2
        %v3931 = vadd.f32 %v3929, %v3930
        %v3932 = vrot.slane %v3931, 1
        %v3933 = vadd.f32 %v3931, %v3932
        %s3934 = vtos %v3933
        %v3935 = vstv %s3934
        %v3936 = vmul.f32 %v3742, %v3782
        %v3937 = vmul.f32 %v3747, %v3787
        %v3938 = vmul.f32 %v3752, %v3792
        %v3939 = vmul.f32 %v3757, %v3797
        %v3940 = vmul.f32 %v3762, %v3802
        %v3941 = vmul.f32 %v3767, %v3807
        %v3942 = vmul.f32 %v3772, %v3812
        %v3943 = vmul.f32 %v3777, %v3817
        %v3944 = vsel %vm389, %v3936, 0.0
        %v3945 = vsel %vm389, %v3937, 0.0
        %v3946 = vadd.f32 %v3944, %v3945
        %v3947 = vsel %vm389, %v3938, 0.0
        %v3948 = vadd.f32 %v3946, %v3947
        %v3949 = vsel %vm389, %v3939, 0.0
        %v3950 = vadd.f32 %v3948, %v3949
        %v3951 = vsel %vm389, %v3940, 0.0
        %v3952 = vadd.f32 %v3950, %v3951
        %v3953 = vsel %vm389, %v3941, 0.0
        %v3954 = vadd.f32 %v3952, %v3953
        %v3955 = vsel %vm389, %v3942, 0.0
        %v3956 = vadd.f32 %v3954, %v3955
        %v3957 = vsel %vm389, %v3943, 0.0
        %v3958 = vadd.f32 %v3956, %v3957
        %3959 = vadd.xlane.f32.xlu0 %v3958
        %v3960 = vpop.xlane.xlu0 %3959
        %v3961 = vrot.slane %v3960, 4
        %v3962 = vadd.f32 %v3960, %v3961
        %v3963 = vrot.slane %v3962, 2
        %v3964 = vadd.f32 %v3962, %v3963
        %v3965 = vrot.slane %v3964, 1
        %v3966 = vadd.f32 %v3964, %v3965
        %s3967 = vtos %v3966
        %v3968 = vstv %s3967
        %v3969 = vrsqrt.pop %v3902
        %v3970 = vmul.f32 %v3902, %v3969
        %vm3971 = vcmp.eq.f32.partialorder %v3902, inf
        %v3972 = vsel %vm3971, %v3902, %v3970
        %vm3973 = vcmp.eq.f32.partialorder %v3902, 0.0
        %v3974 = vand.u32 %v3902, 2147483648
        %v3975 = vsel %vm3973, %v3974, %v3972
        %v3976 = vmax.f32 %v3975, 1e-12
        %v3977 = vrsqrt.pop %v3935
        %v3978 = vmul.f32 %v3935, %v3977
        %vm3979 = vcmp.eq.f32.partialorder %v3935, inf
        %v3980 = vsel %vm3979, %v3935, %v3978
        %vm3981 = vcmp.eq.f32.partialorder %v3935, 0.0
        %v3982 = vand.u32 %v3935, 2147483648
        %v3983 = vsel %vm3981, %v3982, %v3980
        %v3984 = vmax.f32 %v3983, 1e-12
        %v3985 = vrcp.pop %v3976
        %v3986 = vmul.f32 %v3844, %v3985
        %v3987 = vrcp.pop %v3984
        %v3988 = vmul.f32 %v3869, %v3987
        %v3989 = vmul.f32 %v3976, %v3984
        %v3990 = vrcp.pop %v3989
        %v3991 = vmul.f32 %v3968, %v3990
        %v3992 = vmul.f32 %v3986, %v3988
        %v3993 = vrcp.pop 2048.0
        %v3994 = vmul.f32 %v3992, %v3993
        %v3995 = vsub.f32 %v3991, %v3994
        %v3996 = vmul.f32 %v3976, %v3976
        %v3997 = vrcp.pop %v3996
        %v3998 = vmul.f32 %v3902, %v3997
        %v3999 = vmul.f32 %v3986, %v3986
        %v4000 = vmul.f32 %v3999, %v3993
        %v4001 = vsub.f32 %v3998, %v4000
        %v4002 = vmax.f32 %v4001, 0.0
        %v4003 = vmul.f32 %v3984, %v3984
        %v4004 = vrcp.pop %v4003
        %v4005 = vmul.f32 %v3935, %v4004
        %v4006 = vmul.f32 %v3988, %v3988
        %v4007 = vmul.f32 %v4006, %v3993
        %v4008 = vsub.f32 %v4005, %v4007
        %v4009 = vmax.f32 %v4008, 0.0
        %v4010 = vrsqrt.pop %v4002
        %v4011 = vmul.f32 %v4002, %v4010
        %vm4012 = vcmp.eq.f32.partialorder %v4002, inf
        %v4013 = vsel %vm4012, %v4002, %v4011
        %vm4014 = vcmp.eq.f32.partialorder %v4002, 0.0
        %v4015 = vand.u32 %v4002, 2147483648
        %v4016 = vsel %vm4014, %v4015, %v4013
        %v4017 = vrsqrt.pop %v4009
        %v4018 = vmul.f32 %v4009, %v4017
        %vm4019 = vcmp.eq.f32.partialorder %v4009, inf
        %v4020 = vsel %vm4019, %v4009, %v4018
        %vm4021 = vcmp.eq.f32.partialorder %v4009, 0.0
        %v4022 = vand.u32 %v4009, 2147483648
        %v4023 = vsel %vm4021, %v4022, %v4020
        %v4024 = vmul.f32 %v4016, %v4023
        %v4025 = vadd.f32 %v4024, 1e-06
        %v4026 = vrcp.pop %v4025
        %v4027 = vmul.f32 %v3995, %v4026
        %v4028 = vsub.f32 1.0, %v4027
        %4029 = vst.msk [vmem:[%s344] sm:$0xff] %vm389, %v3742
        %4030 = vst.msk [vmem:[%s344 + $0x8] sm:$0xff] %vm389, %v3747
        %4031 = vst.msk [vmem:[%s344 + $0x10] sm:$0xff] %vm389, %v3752
        %4032 = vst.msk [vmem:[%s344 + $0x18] sm:$0xff] %vm389, %v3757
        %4033 = vst.msk [vmem:[%s344 + $0x20] sm:$0xff] %vm389, %v3762
        %4034 = vst.msk [vmem:[%s344 + $0x28] sm:$0xff] %vm389, %v3767
        %4035 = vst.msk [vmem:[%s344 + $0x30] sm:$0xff] %vm389, %v3772
        %4036 = vst.msk [vmem:[%s344 + $0x38] sm:$0xff] %vm389, %v3777
        %v4037 = vadd.f32 %v4028, 1.0
        %v4038 = vmul.f32 %v3782, %v4037
        %v4039 = vmul.f32 %v3787, %v4037
        %v4040 = vmul.f32 %v3792, %v4037
        %v4041 = vmul.f32 %v3797, %v4037
        %v4042 = vmul.f32 %v3802, %v4037
        %v4043 = vmul.f32 %v3807, %v4037
        %v4044 = vmul.f32 %v3812, %v4037
        %v4045 = vmul.f32 %v3817, %v4037
        %4046 = vst.msk [vmem:[%s351] sm:$0xff] %vm389, %v4038
        %4047 = vst.msk [vmem:[%s351 + $0x8] sm:$0xff] %vm389, %v4039
        %4048 = vst.msk [vmem:[%s351 + $0x10] sm:$0xff] %vm389, %v4040
        %4049 = vst.msk [vmem:[%s351 + $0x18] sm:$0xff] %vm389, %v4041
        %4050 = vst.msk [vmem:[%s351 + $0x20] sm:$0xff] %vm389, %v4042
        %4051 = vst.msk [vmem:[%s351 + $0x28] sm:$0xff] %vm389, %v4043
        %4052 = vst.msk [vmem:[%s351 + $0x30] sm:$0xff] %vm389, %v4044
        %4053 = vst.msk [vmem:[%s351 + $0x38] sm:$0xff] %vm389, %v4045
        %s4054 = sand.u32 %s213, 1
        %s4055 = scalar_lea.sflag [#allocation4], %s4054
        %s4056 = sand.u32 %s213, 1
        %s4057 = smul.addr %s4056, 64
        %s4058 = scalar_lea.vmem [#allocation3], %s4057
        %s4059 = sand.u32 %s239, 1
        %s4060 = scalar_lea.sflag [#allocation6], %s4059
        %s4061 = sand.u32 %s239, 1
        %s4062 = smul.addr %s4061, 64
        %s4063 = scalar_lea.vmem [#allocation5], %s4062
        // Predicated region
        $region53: #{tpu_custom_call.1} parent=51 // pred_check
          %p4064 = pneg %p223
        $region54: #{tpu_custom_call.1} parent=51 // pred_check_branch
          %4066 = sbr.rel (%p4064) target = $region56
        $region55: #{tpu_custom_call.1} parent=51 // pred_region
          %s4068 = ssub.s32 1024, 1024
          %4069 = vsyncadd %s4055, %s4068
          %s4070 = smul.addr %s27, 8
          %s4071 = smul.addr %s4070, 128
          %s4072 = scalar_lea.hbm %s8, %s4071
          %s4073 = sshll.u32 %s4058, 4
          %s4074 = int_to_ptr.vmem [resolvable:$true] %s4073
          %4079 = dma.vmem_to_hbm [thread:$0]  %s4074, 1024, %s4072, %s4055, 128, 128, 8
        $region56: #{tpu_custom_call.1} parent=51 // pred_fallthru
          _
        // Predicated region
        $region57: #{tpu_custom_call.1} parent=51 // pred_check
          %p4080 = pneg %p249
        $region58: #{tpu_custom_call.1} parent=51 // pred_check_branch
          %4082 = sbr.rel (%p4080) target = $region60
        $region59: #{tpu_custom_call.1} parent=51 // pred_region
          %s4084 = ssub.s32 1024, 1024
          %4085 = vsyncadd %s4060, %s4084
          %s4086 = smul.addr %s27, 8
          %s4087 = smul.addr %s4086, 128
          %s4088 = scalar_lea.hbm %s9, %s4087
          %s4089 = sshll.u32 %s4063, 4
          %s4090 = int_to_ptr.vmem [resolvable:$true] %s4089
          %4095 = dma.vmem_to_hbm [thread:$0]  %s4090, 1024, %s4088, %s4060, 128, 128, 8
        $region60: #{tpu_custom_call.1} parent=51 // pred_fallthru
          _
      $region52: #{tpu_custom_call.1} parent=5 // pred_fallthru
        _
      %p4096 = scmp.le.s32.totalorder 2, %s22
      // Predicated region
      $region61: #{tpu_custom_call.1} parent=5 // pred_check
        %p4097 = pneg %p4096
      $region62: #{tpu_custom_call.1} parent=5 // pred_check_branch
        %4099 = sbr.rel (%p4097) target = $region64
      $region63: #{tpu_custom_call.1} parent=5 // pred_region
        %s4100 = ssub.s32 %s22, 2
        // Predicated region
        $region65: #{tpu_custom_call.1} parent=63 // pred_check
          %p4101 = pneg %p229
        $region66: #{tpu_custom_call.1} parent=63 // pred_check_branch
          %4103 = sbr.rel (%p4101) target = $region68
        $region67: #{tpu_custom_call.1} parent=63 // pred_region
          %s4104 = sand.u32 %s214, 1
          %s4105 = scalar_lea.sflag [#allocation4], %s4104
          %s4106 = sand.u32 %s214, 1
          %s4107 = smul.addr %s4106, 64
          %s4108 = scalar_lea.vmem [#allocation3], %s4107
          %4109 = dma.done %s4105, 1024
        $region68: #{tpu_custom_call.1} parent=63 // pred_fallthru
          _
        // Predicated region
        $region69: #{tpu_custom_call.1} parent=63 // pred_check
          %p4110 = pneg %p255
        $region70: #{tpu_custom_call.1} parent=63 // pred_check_branch
          %4112 = sbr.rel (%p4110) target = $region72
        $region71: #{tpu_custom_call.1} parent=63 // pred_region
          %s4113 = sand.u32 %s240, 1
          %s4114 = scalar_lea.sflag [#allocation6], %s4113
          %s4115 = sand.u32 %s240, 1
          %s4116 = smul.addr %s4115, 64
          %s4117 = scalar_lea.vmem [#allocation5], %s4116
          %4118 = dma.done %s4114, 1024
        $region72: #{tpu_custom_call.1} parent=63 // pred_fallthru
          _
      $region64: #{tpu_custom_call.1} parent=5 // pred_fallthru
        _
    $region6: #{tpu_custom_call.1} parent=1 // loop_footer
      %s26 = sadd.s32 1, %s22
    $region7: #{tpu_custom_call.1} parent=1 // loop_footer_branch
      %21 = sbr.rel target = $region3
    $region8: #{tpu_custom_call.1} parent=1 // loop_exit
      _
    %4119 = vsyncpa [#allocation4], 1
    %s4120 = scalar_lea.sflag [#allocation4], 1
    %4121 = vsyncpa %s4120, 1
    %4122 = vsyncpa [#allocation6], 1
    %s4123 = scalar_lea.sflag [#allocation6], 1
    %4124 = vsyncpa %s4123, 1

</llo_original>
